<compile_context>
chip_gen: v6e
topology: v6e:2x2x1
jax: 0.10.0
libtpu: 0.0.40
codegen_flags: <defaults>
</compile_context>

<pallas_src>
from functools import partial

import jax
import jax.numpy as jnp
from jax import lax
from jax.experimental import pallas as pl
from jax.experimental.pallas import tpu as pltpu


def xf_attention_kernel(x_ref, wqkv_ref, wout_ref, params_ref, o_ref, *,
                        heads, dim_head):
    _, C, N = x_ref.shape                       # (1, C, H*W)
    dim, hidden = wout_ref.shape                # hidden = heads * dim_head
    scale = dim_head ** -0.5

    xT = x_ref[0]                               # (C, N): channels on sublanes
    # qkv 1x1 conv == one fat matmul: (3*hidden, C) @ (C, N) -> (3*hidden, N)
    qkvT = jnp.dot(wqkv_ref[...], xT, preferred_element_type=jnp.float32)

    head_outs = []
    for h in range(heads):                      # static unrolled head loop
        lo = h * dim_head
        qT = qkvT[lo:lo + dim_head, :]                          # (dh, N)
        kT = qkvT[hidden + lo:hidden + lo + dim_head, :]        # (dh, N)
        vT = qkvT[2 * hidden + lo:2 * hidden + lo + dim_head, :]

        # scores[i, j] = scale * q_i . k_j  -> (N, N)
        q = jnp.transpose(qT) * scale                           # (N, dh)
        s = jnp.dot(q, kT, preferred_element_type=jnp.float32)  # (N, N)

        # numerically stable softmax over keys (lane axis)
        m = jnp.max(s, axis=-1, keepdims=True)
        p = jnp.exp(s - m)
        l = jnp.sum(p, axis=-1, keepdims=True)
        attn = p / l

        # outT[d, i] = sum_j vT[d, j] * attn[i, j]   (trans_b dot) -> (dh, N)
        head_outs.append(
            lax.dot_general(vT, attn, (((1,), (1,)), ((), ())),
                            preferred_element_type=jnp.float32))

    attn_outT = jnp.concatenate(head_outs, axis=0)              # (hidden, N)

    # output 1x1 conv: (dim, hidden) @ (hidden, N) + bias
    yT = jnp.dot(wout_ref[...], attn_outT,
                 preferred_element_type=jnp.float32)            # (dim, N)
    bias = params_ref[:, 0:1]
    gamma = params_ref[:, 1:2]
    beta = params_ref[:, 2:3]
    yT = yT + bias

    # GroupNorm(1, dim): normalize over all (dim * N) elements of this batch.
    n_elems = jnp.float32(dim * N)
    mu = jnp.sum(jnp.sum(yT, axis=1, keepdims=True),
                 axis=0, keepdims=True) / n_elems               # (1, 1)
    d = yT - mu
    var = jnp.sum(jnp.sum(d * d, axis=1, keepdims=True),
                  axis=0, keepdims=True) / n_elems              # (1, 1)
    yn = d * lax.rsqrt(var + 1e-5)
    yn = yn * gamma + beta

    o_ref[...] = yn.reshape(1, dim, N).astype(o_ref.dtype)      # lane-dense store


def xf_attention_forward(x, w_qkv, w_out, b_out, gn_w, gn_b, *,
                         heads=4, dim_head=32):
    """XFAttention forward.

    x:      (B, dim, H, W)   NCHW
    w_qkv:  (3*hidden, dim, 1, 1)   (Conv2d, bias=False)
    w_out:  (dim, hidden, 1, 1), b_out: (dim,)
    gn_w, gn_b: (dim,)   GroupNorm(1, dim) affine
    """
    B, C, H, W = x.shape
    hidden = heads * dim_head
    N = H * W

    # Free reshapes only — no HBM transpose / pad round trips.
    x2 = x.reshape(B, C, N)
    wqkv2 = w_qkv.reshape(3 * hidden, C)
    wout2 = w_out.reshape(C, hidden)
    params = jnp.stack([b_out, gn_w, gn_b], axis=1).astype(jnp.float32)  # (dim, 3)

    out = pl.pallas_call(
        partial(xf_attention_kernel, heads=heads, dim_head=dim_head),
        out_shape=jax.ShapeDtypeStruct((B, C, N), x.dtype),
        grid=(B,),
        in_specs=[
            pl.BlockSpec((1, C, N), lambda b: (b, 0, 0)),        # x (per batch)
            pl.BlockSpec((3 * hidden, C), lambda b: (0, 0)),     # qkv weight
            pl.BlockSpec((C, hidden), lambda b: (0, 0)),         # out weight
            pl.BlockSpec((C, 3), lambda b: (0, 0)),              # bias/gamma/beta
        ],
        out_specs=pl.BlockSpec((1, C, N), lambda b: (b, 0, 0)),
        compiler_params=pltpu.CompilerParams(
            dimension_semantics=("parallel",)),
    )(x2, wqkv2, wout2, params)

    return out.reshape(B, C, H, W)


def xf_attention_reference(x, w_qkv, w_out, b_out, gn_w, gn_b, *,
                           heads=4, dim_head=32):
    """Pure-JAX reference mirroring the PyTorch module exactly."""
    B, C, H, W = x.shape
    hidden = heads * dim_head
    N = H * W
    scale = dim_head ** -0.5

    xf = x.reshape(B, C, N)
    qkv = jnp.einsum('oc,bcn->bon', w_qkv.reshape(3 * hidden, C), xf)
    q, k, v = jnp.split(qkv, 3, axis=1)                 # each (B, hidden, N)

    def to_heads(t):                                    # 'b (h c) n -> b h n c'
        return t.reshape(B, heads, dim_head, N).transpose(0, 1, 3, 2)

    q, k, v = map(to_heads, (q, k, v))                  # (B, heads, N, dh)
    s = jnp.einsum('bhnd,bhmd->bhnm', q, k) * scale
    a = jax.nn.softmax(s, axis=-1)
    o = jnp.einsum('bhnm,bhmd->bhnd', a, v)             # (B, heads, N, dh)
    o = o.transpose(0, 1, 3, 2).reshape(B, hidden, N)   # 'b h n c -> b (h c) n'

    y = jnp.einsum('oh,bhn->bon', w_out.reshape(C, hidden), o) \
        + b_out[None, :, None]
    mu = y.mean(axis=(1, 2), keepdims=True)             # GroupNorm(1, dim)
    var = ((y - mu) ** 2).mean(axis=(1, 2), keepdims=True)
    yn = (y - mu) / jnp.sqrt(var + 1e-5)
    yn = yn * gn_w[None, :, None] + gn_b[None, :, None]
    return yn.reshape(B, C, H, W)


if __name__ == "__main__":
    B, dim, H, W = 2, 32, 16, 16
    heads, dim_head = 4, 32
    hidden = heads * dim_head

    key = jax.random.PRNGKey(0)
    ks = jax.random.split(key, 6)
    x = jax.random.normal(ks[0], (B, dim, H, W), jnp.float32)
    w_qkv = 0.1 * jax.random.normal(ks[1], (3 * hidden, dim, 1, 1), jnp.float32)
    w_out = 0.1 * jax.random.normal(ks[2], (dim, hidden, 1, 1), jnp.float32)
    b_out = 0.1 * jax.random.normal(ks[3], (dim,), jnp.float32)
    gn_w = 1.0 + 0.1 * jax.random.normal(ks[4], (dim,), jnp.float32)
    gn_b = 0.1 * jax.random.normal(ks[5], (dim,), jnp.float32)

    out = jax.block_until_ready(
        xf_attention_forward(x, w_qkv, w_out, b_out, gn_w, gn_b,
                             heads=heads, dim_head=dim_head))
    ref = xf_attention_reference(x, w_qkv, w_out, b_out, gn_w, gn_b,
                                 heads=heads, dim_head=dim_head)

    assert out.shape == (B, dim, H, W)
    err = float(jnp.max(jnp.abs(out - ref)))
    assert err < 2e-2, f"mismatch vs reference: {err}"
    print("KERNEL_OK")
</pallas_src>

<mosaic_0001>
module attributes {stable_mosaic.version = 11 : i64} {
  func.func @xf_attention_kernel(%arg0: i32, %arg1: memref<1x32x256xf32, #tpu.memory_space<vmem>>, %arg2: memref<384x32xf32, #tpu.memory_space<vmem>>, %arg3: memref<32x128xf32, #tpu.memory_space<vmem>>, %arg4: memref<32x3xf32, #tpu.memory_space<vmem>>, %arg5: memref<1x32x256xf32, #tpu.memory_space<vmem>>) attributes {dimension_semantics = [#tpu.dimension_semantics<parallel>], iteration_bounds = array<i64: 2>, scalar_prefetch = 0 : i64, scratch_operands = 0 : i64, tpu.core_type = #tpu.core_type<tc>, window_params = [{transform_indices = @transform_0, window_bounds = array<i64: 1, 32, 256>}, {pipeline_mode = #tpu.pipeline_mode<synchronous>, transform_indices = @transform_1, window_bounds = array<i64: 384, 32>}, {pipeline_mode = #tpu.pipeline_mode<synchronous>, transform_indices = @transform_2, window_bounds = array<i64: 32, 128>}, {pipeline_mode = #tpu.pipeline_mode<synchronous>, transform_indices = @transform_3, window_bounds = array<i64: 32, 3>}, {transform_indices = @transform_4, window_bounds = array<i64: 1, 32, 256>}]} {
    %c0 = arith.constant 0 : index
    %c0_0 = arith.constant 0 : index
    %c0_1 = arith.constant 0 : index
    %0 = vector.load %arg1[%c0, %c0_0, %c0_1] : memref<1x32x256xf32, #tpu.memory_space<vmem>>, vector<1x32x256xf32>
    %1 = vector.shape_cast %0 : vector<1x32x256xf32> to vector<32x256xf32>
    %c0_2 = arith.constant 0 : index
    %c0_3 = arith.constant 0 : index
    %2 = vector.load %arg2[%c0_2, %c0_3] : memref<384x32xf32, #tpu.memory_space<vmem>>, vector<384x32xf32>
    %cst = arith.constant dense<0.000000e+00> : vector<384x256xf32>
    %3 = tpu.matmul %2, %1, %cst {dimension_numbers = #tpu.dot_dimension_numbers<[1], [0], [0], [1], [0, 0, 1, 1], [], []>} : vector<384x32xf32>, vector<32x256xf32>, vector<384x256xf32> -> vector<384x256xf32>
    %4 = vector.extract_strided_slice %3 {offsets = [0, 0], sizes = [32, 256], strides = [1, 1]} : vector<384x256xf32> to vector<32x256xf32>
    %5 = vector.extract_strided_slice %3 {offsets = [128, 0], sizes = [32, 256], strides = [1, 1]} : vector<384x256xf32> to vector<32x256xf32>
    %6 = vector.extract_strided_slice %3 {offsets = [256, 0], sizes = [32, 256], strides = [1, 1]} : vector<384x256xf32> to vector<32x256xf32>
    %7 = tpu.transpose %4, [1, 0] : vector<32x256xf32> -> vector<256x32xf32>
    %cst_4 = arith.constant 0.176776692 : f32
    %8 = vector.broadcast %cst_4 : f32 to vector<256x32xf32>
    %9 = arith.mulf %7, %8 : vector<256x32xf32>
    %cst_5 = arith.constant dense<0.000000e+00> : vector<256x256xf32>
    %10 = tpu.matmul %9, %5, %cst_5 {dimension_numbers = #tpu.dot_dimension_numbers<[1], [0], [0], [1], [0, 0, 1, 1], [], []>} : vector<256x32xf32>, vector<32x256xf32>, vector<256x256xf32> -> vector<256x256xf32>
    %cst_6 = arith.constant dense<0xFF800000> : vector<256xf32>
    %11 = vector.multi_reduction <maximumf>, %10, %cst_6 [1] : vector<256x256xf32> to vector<256xf32>
    %12 = vector.shape_cast %11 : vector<256xf32> to vector<256x1xf32>
    %13 = vector.broadcast %12 : vector<256x1xf32> to vector<256x256xf32>
    %14 = arith.subf %10, %13 : vector<256x256xf32>
    %15 = math.exp %14 : vector<256x256xf32>
    %cst_7 = arith.constant dense<0.000000e+00> : vector<256xf32>
    %16 = vector.multi_reduction <add>, %15, %cst_7 [1] : vector<256x256xf32> to vector<256xf32>
    %17 = vector.shape_cast %16 : vector<256xf32> to vector<256x1xf32>
    %18 = vector.broadcast %17 : vector<256x1xf32> to vector<256x256xf32>
    %19 = arith.divf %15, %18 : vector<256x256xf32>
    %cst_8 = arith.constant dense<0.000000e+00> : vector<32x256xf32>
    %20 = tpu.matmul %6, %19, %cst_8 {dimension_numbers = #tpu.dot_dimension_numbers<[1], [1], [0], [0], [0, 0, 1, 0], [], []>} : vector<32x256xf32>, vector<256x256xf32>, vector<32x256xf32> -> vector<32x256xf32>
    %21 = vector.extract_strided_slice %3 {offsets = [32, 0], sizes = [32, 256], strides = [1, 1]} : vector<384x256xf32> to vector<32x256xf32>
    %22 = vector.extract_strided_slice %3 {offsets = [160, 0], sizes = [32, 256], strides = [1, 1]} : vector<384x256xf32> to vector<32x256xf32>
    %23 = vector.extract_strided_slice %3 {offsets = [288, 0], sizes = [32, 256], strides = [1, 1]} : vector<384x256xf32> to vector<32x256xf32>
    %24 = tpu.transpose %21, [1, 0] : vector<32x256xf32> -> vector<256x32xf32>
    %cst_9 = arith.constant 0.176776692 : f32
    %25 = vector.broadcast %cst_9 : f32 to vector<256x32xf32>
    %26 = arith.mulf %24, %25 : vector<256x32xf32>
    %cst_10 = arith.constant dense<0.000000e+00> : vector<256x256xf32>
    %27 = tpu.matmul %26, %22, %cst_10 {dimension_numbers = #tpu.dot_dimension_numbers<[1], [0], [0], [1], [0, 0, 1, 1], [], []>} : vector<256x32xf32>, vector<32x256xf32>, vector<256x256xf32> -> vector<256x256xf32>
    %cst_11 = arith.constant dense<0xFF800000> : vector<256xf32>
    %28 = vector.multi_reduction <maximumf>, %27, %cst_11 [1] : vector<256x256xf32> to vector<256xf32>
    %29 = vector.shape_cast %28 : vector<256xf32> to vector<256x1xf32>
    %30 = vector.broadcast %29 : vector<256x1xf32> to vector<256x256xf32>
    %31 = arith.subf %27, %30 : vector<256x256xf32>
    %32 = math.exp %31 : vector<256x256xf32>
    %cst_12 = arith.constant dense<0.000000e+00> : vector<256xf32>
    %33 = vector.multi_reduction <add>, %32, %cst_12 [1] : vector<256x256xf32> to vector<256xf32>
    %34 = vector.shape_cast %33 : vector<256xf32> to vector<256x1xf32>
    %35 = vector.broadcast %34 : vector<256x1xf32> to vector<256x256xf32>
    %36 = arith.divf %32, %35 : vector<256x256xf32>
    %cst_13 = arith.constant dense<0.000000e+00> : vector<32x256xf32>
    %37 = tpu.matmul %23, %36, %cst_13 {dimension_numbers = #tpu.dot_dimension_numbers<[1], [1], [0], [0], [0, 0, 1, 0], [], []>} : vector<32x256xf32>, vector<256x256xf32>, vector<32x256xf32> -> vector<32x256xf32>
    %38 = vector.extract_strided_slice %3 {offsets = [64, 0], sizes = [32, 256], strides = [1, 1]} : vector<384x256xf32> to vector<32x256xf32>
    %39 = vector.extract_strided_slice %3 {offsets = [192, 0], sizes = [32, 256], strides = [1, 1]} : vector<384x256xf32> to vector<32x256xf32>
    %40 = vector.extract_strided_slice %3 {offsets = [320, 0], sizes = [32, 256], strides = [1, 1]} : vector<384x256xf32> to vector<32x256xf32>
    %41 = tpu.transpose %38, [1, 0] : vector<32x256xf32> -> vector<256x32xf32>
    %cst_14 = arith.constant 0.176776692 : f32
    %42 = vector.broadcast %cst_14 : f32 to vector<256x32xf32>
    %43 = arith.mulf %41, %42 : vector<256x32xf32>
    %cst_15 = arith.constant dense<0.000000e+00> : vector<256x256xf32>
    %44 = tpu.matmul %43, %39, %cst_15 {dimension_numbers = #tpu.dot_dimension_numbers<[1], [0], [0], [1], [0, 0, 1, 1], [], []>} : vector<256x32xf32>, vector<32x256xf32>, vector<256x256xf32> -> vector<256x256xf32>
    %cst_16 = arith.constant dense<0xFF800000> : vector<256xf32>
    %45 = vector.multi_reduction <maximumf>, %44, %cst_16 [1] : vector<256x256xf32> to vector<256xf32>
    %46 = vector.shape_cast %45 : vector<256xf32> to vector<256x1xf32>
    %47 = vector.broadcast %46 : vector<256x1xf32> to vector<256x256xf32>
    %48 = arith.subf %44, %47 : vector<256x256xf32>
    %49 = math.exp %48 : vector<256x256xf32>
    %cst_17 = arith.constant dense<0.000000e+00> : vector<256xf32>
    %50 = vector.multi_reduction <add>, %49, %cst_17 [1] : vector<256x256xf32> to vector<256xf32>
    %51 = vector.shape_cast %50 : vector<256xf32> to vector<256x1xf32>
    %52 = vector.broadcast %51 : vector<256x1xf32> to vector<256x256xf32>
    %53 = arith.divf %49, %52 : vector<256x256xf32>
    %cst_18 = arith.constant dense<0.000000e+00> : vector<32x256xf32>
    %54 = tpu.matmul %40, %53, %cst_18 {dimension_numbers = #tpu.dot_dimension_numbers<[1], [1], [0], [0], [0, 0, 1, 0], [], []>} : vector<32x256xf32>, vector<256x256xf32>, vector<32x256xf32> -> vector<32x256xf32>
    %55 = vector.extract_strided_slice %3 {offsets = [96, 0], sizes = [32, 256], strides = [1, 1]} : vector<384x256xf32> to vector<32x256xf32>
    %56 = vector.extract_strided_slice %3 {offsets = [224, 0], sizes = [32, 256], strides = [1, 1]} : vector<384x256xf32> to vector<32x256xf32>
    %57 = vector.extract_strided_slice %3 {offsets = [352, 0], sizes = [32, 256], strides = [1, 1]} : vector<384x256xf32> to vector<32x256xf32>
    %58 = tpu.transpose %55, [1, 0] : vector<32x256xf32> -> vector<256x32xf32>
    %cst_19 = arith.constant 0.176776692 : f32
    %59 = vector.broadcast %cst_19 : f32 to vector<256x32xf32>
    %60 = arith.mulf %58, %59 : vector<256x32xf32>
    %cst_20 = arith.constant dense<0.000000e+00> : vector<256x256xf32>
    %61 = tpu.matmul %60, %56, %cst_20 {dimension_numbers = #tpu.dot_dimension_numbers<[1], [0], [0], [1], [0, 0, 1, 1], [], []>} : vector<256x32xf32>, vector<32x256xf32>, vector<256x256xf32> -> vector<256x256xf32>
    %cst_21 = arith.constant dense<0xFF800000> : vector<256xf32>
    %62 = vector.multi_reduction <maximumf>, %61, %cst_21 [1] : vector<256x256xf32> to vector<256xf32>
    %63 = vector.shape_cast %62 : vector<256xf32> to vector<256x1xf32>
    %64 = vector.broadcast %63 : vector<256x1xf32> to vector<256x256xf32>
    %65 = arith.subf %61, %64 : vector<256x256xf32>
    %66 = math.exp %65 : vector<256x256xf32>
    %cst_22 = arith.constant dense<0.000000e+00> : vector<256xf32>
    %67 = vector.multi_reduction <add>, %66, %cst_22 [1] : vector<256x256xf32> to vector<256xf32>
    %68 = vector.shape_cast %67 : vector<256xf32> to vector<256x1xf32>
    %69 = vector.broadcast %68 : vector<256x1xf32> to vector<256x256xf32>
    %70 = arith.divf %66, %69 : vector<256x256xf32>
    %cst_23 = arith.constant dense<0.000000e+00> : vector<32x256xf32>
    %71 = tpu.matmul %57, %70, %cst_23 {dimension_numbers = #tpu.dot_dimension_numbers<[1], [1], [0], [0], [0, 0, 1, 0], [], []>} : vector<32x256xf32>, vector<256x256xf32>, vector<32x256xf32> -> vector<32x256xf32>
    %72 = tpu.concatenate %20, %37, %54, %71 in 0 : vector<32x256xf32>, vector<32x256xf32>, vector<32x256xf32>, vector<32x256xf32> -> vector<128x256xf32>
    %c0_24 = arith.constant 0 : index
    %c0_25 = arith.constant 0 : index
    %73 = vector.load %arg3[%c0_24, %c0_25] : memref<32x128xf32, #tpu.memory_space<vmem>>, vector<32x128xf32>
    %cst_26 = arith.constant dense<0.000000e+00> : vector<32x256xf32>
    %74 = tpu.matmul %73, %72, %cst_26 {dimension_numbers = #tpu.dot_dimension_numbers<[1], [0], [0], [1], [0, 0, 1, 1], [], []>} : vector<32x128xf32>, vector<128x256xf32>, vector<32x256xf32> -> vector<32x256xf32>
    %c0_27 = arith.constant 0 : index
    %c0_28 = arith.constant 0 : index
    %75 = vector.load %arg4[%c0_27, %c0_28] : memref<32x3xf32, #tpu.memory_space<vmem>>, vector<32x1xf32>
    %c0_29 = arith.constant 0 : index
    %c1 = arith.constant 1 : index
    %76 = vector.load %arg4[%c0_29, %c1] : memref<32x3xf32, #tpu.memory_space<vmem>>, vector<32x1xf32>
    %c0_30 = arith.constant 0 : index
    %c2 = arith.constant 2 : index
    %77 = vector.load %arg4[%c0_30, %c2] : memref<32x3xf32, #tpu.memory_space<vmem>>, vector<32x1xf32>
    %78 = vector.broadcast %75 : vector<32x1xf32> to vector<32x256xf32>
    %79 = arith.addf %74, %78 : vector<32x256xf32>
    %cst_31 = arith.constant dense<0.000000e+00> : vector<32xf32>
    %80 = vector.multi_reduction <add>, %79, %cst_31 [1] : vector<32x256xf32> to vector<32xf32>
    %81 = vector.shape_cast %80 : vector<32xf32> to vector<32x1xf32>
    %cst_32 = arith.constant dense<0.000000e+00> : vector<1xf32>
    %82 = vector.multi_reduction <add>, %81, %cst_32 [0] : vector<32x1xf32> to vector<1xf32>
    %83 = vector.shape_cast %82 : vector<1xf32> to vector<1x1xf32>
    %cst_33 = arith.constant 8.192000e+03 : f32
    %84 = vector.broadcast %cst_33 : f32 to vector<1x1xf32>
    %85 = arith.divf %83, %84 : vector<1x1xf32>
    %86 = vector.broadcast %85 : vector<1x1xf32> to vector<32x256xf32>
    %87 = arith.subf %79, %86 : vector<32x256xf32>
    %88 = arith.mulf %87, %87 : vector<32x256xf32>
    %cst_34 = arith.constant dense<0.000000e+00> : vector<32xf32>
    %89 = vector.multi_reduction <add>, %88, %cst_34 [1] : vector<32x256xf32> to vector<32xf32>
    %90 = vector.shape_cast %89 : vector<32xf32> to vector<32x1xf32>
    %cst_35 = arith.constant dense<0.000000e+00> : vector<1xf32>
    %91 = vector.multi_reduction <add>, %90, %cst_35 [0] : vector<32x1xf32> to vector<1xf32>
    %92 = vector.shape_cast %91 : vector<1xf32> to vector<1x1xf32>
    %cst_36 = arith.constant 8.192000e+03 : f32
    %93 = vector.broadcast %cst_36 : f32 to vector<1x1xf32>
    %94 = arith.divf %92, %93 : vector<1x1xf32>
    %cst_37 = arith.constant 9.99999974E-6 : f32
    %95 = vector.broadcast %cst_37 : f32 to vector<1x1xf32>
    %96 = arith.addf %94, %95 : vector<1x1xf32>
    %97 = math.rsqrt %96 : vector<1x1xf32>
    %98 = vector.broadcast %97 : vector<1x1xf32> to vector<32x256xf32>
    %99 = arith.mulf %87, %98 : vector<32x256xf32>
    %100 = vector.broadcast %76 : vector<32x1xf32> to vector<32x256xf32>
    %101 = arith.mulf %99, %100 : vector<32x256xf32>
    %102 = vector.broadcast %77 : vector<32x1xf32> to vector<32x256xf32>
    %103 = arith.addf %101, %102 : vector<32x256xf32>
    %104 = vector.shape_cast %103 : vector<32x256xf32> to vector<1x32x256xf32>
    %c0_38 = arith.constant 0 : index
    %c0_39 = arith.constant 0 : index
    %c0_40 = arith.constant 0 : index
    %105 = vector.load %arg5[%c0_38, %c0_39, %c0_40] : memref<1x32x256xf32, #tpu.memory_space<vmem>>, vector<1x32x256xf32>
    tpu.vector_store %arg5[%c0_38, %c0_39, %c0_40], %104 {strides = array<i32>} : memref<1x32x256xf32, #tpu.memory_space<vmem>>, vector<1x32x256xf32>,
    return
  }
  func.func @transform_0(%arg0: i32) -> (i32, i32, i32) {
    %c0_i32 = arith.constant 0 : i32
    %c0_i32_0 = arith.constant 0 : i32
    %c0_i32_1 = arith.constant 0 : i32
    return %arg0, %c0_i32, %c0_i32_0 : i32, i32, i32
  }
  func.func @transform_1(%arg0: i32) -> (i32, i32) {
    %c0_i32 = arith.constant 0 : i32
    %c0_i32_0 = arith.constant 0 : i32
    %c0_i32_1 = arith.constant 0 : i32
    return %c0_i32, %c0_i32_0 : i32, i32
  }
  func.func @transform_2(%arg0: i32) -> (i32, i32) {
    %c0_i32 = arith.constant 0 : i32
    %c0_i32_0 = arith.constant 0 : i32
    %c0_i32_1 = arith.constant 0 : i32
    return %c0_i32, %c0_i32_0 : i32, i32
  }
  func.func @transform_3(%arg0: i32) -> (i32, i32) {
    %c0_i32 = arith.constant 0 : i32
    %c0_i32_0 = arith.constant 0 : i32
    %c0_i32_1 = arith.constant 0 : i32
    return %c0_i32, %c0_i32_0 : i32, i32
  }
  func.func @transform_4(%arg0: i32) -> (i32, i32, i32) {
    %c0_i32 = arith.constant 0 : i32
    %c0_i32_0 = arith.constant 0 : i32
    %c0_i32_1 = arith.constant 0 : i32
    return %arg0, %c0_i32, %c0_i32_0 : i32, i32, i32
  }
}

</mosaic_0001>

<llo_original>
// kernel: tpu_custom_call.1
$region0: #{tpu_custom_call.1}
  #allocation0 [shape = 'u32[]', space=smem, size = 0x4, offset = 0x4, fixed_abs, tag = 'smem constant byte address 0x4 - core index']
  #allocation1 [shape = 'u32[144,128]{1,0:T(1,128)}', space=vmem, size = 0x12000, scoped, tag = 'internal scratch']
  %s0 = inlined_call_operand.vmem [shape: f32[2,32,256], index: 0, kind: input, shape index: {}]
  %s1 = inlined_call_operand.vmem [shape: f32[384,32], index: 1, kind: input, shape index: {}]
  %s2 = inlined_call_operand.vmem [shape: f32[32,128], index: 2, kind: input, shape index: {}]
  %s3 = inlined_call_operand.vmem [shape: f32[32,3], index: 3, kind: input, shape index: {}]
  %s4 = inlined_call_operand.hbm [shape: f32[2,32,256], index: 4, kind: output, shape index: {}]
  %s5 = sld [smem:[#allocation0]]
  $region49: #{tpu_custom_call.1} parent=0
    _
  %s7 = ssub.s32 1, %s5
  %s8 = scalar_select 0, %s7, %s5
  $region1: #{tpu_custom_call.1} parent=0
    #allocation2 [shape = 'u8[65536]{0}', space=vmem, size = 0x10000, scoped, tag = 'output window, operand 0']
    #allocation3 [shape = 's32[2]{0}', space=sflag, size = 0x8, scoped, tag = 'scoped memory for tpu_custom_call.1']
    %9 = vsyncpa [#allocation3], 0
    %s10 = scalar_lea.sflag [#allocation3], 1
    %11 = vsyncpa %s10, 0
    loop: start=0, step=1, limit=4
    $region2: #{tpu_custom_call.1} parent=1 // loop_pre_header
      _
    $region3: #{tpu_custom_call.1} parent=1 // loop_header
      %s13 = sphi 0, %s17
      %p14 = scmp.ge.s32.totalorder %s13, 4
      %s23 = sphi 0, %s25
      %s26 = sphi 0, %s23
      %s27 = sphi 0, %s26
      %s43 = sphi 0, %s27
      %s47 = sphi 0, %s47
      %s49 = sphi 0, %s47
      %s50 = sphi 0, %s49
      %s64 = sphi 0, %s50
      %s68 = sphi 0, %s68
      %s70 = sphi 0, %s68
      %s71 = sphi 0, %s70
      %s85 = sphi 0, %s71
      %s89 = sphi 0, %s89
      %s91 = sphi 0, %s89
      %s92 = sphi 0, %s91
      %s106 = sphi 0, %s92
      %s112 = sphi 0, %s114
      %s115 = sphi 0, %s112
      %s116 = sphi 0, %s115
      %s132 = sphi 0, %s116
    $region4: #{tpu_custom_call.1} parent=1 // loop_header_branch
      %16 = sbr.rel (%p14) target = $region8
    $region5: #{tpu_custom_call.1} parent=1 // loop_body
      %s18 = ssub.s32 %s13, 1
      %s19 = ssub.s32 %s13, 2
      %s20 = sadd.s32 %s13, 1
      %s21 = ssub.s32 %s13, %s20
      %p22 = scmp.eq.s32.totalorder %s21, 0
      %s24 = sadd.s32 %s23, 1
      %s25 = scalar_select %p22, %s23, %s24
      %p28 = pneg %p22
      %p29 = scmp.eq.s32.totalorder %s13, 1
      %p30 = por %p28, %p29
      %p31 = scmp.ne.s32.totalorder %s23, %s26
      %p32 = scmp.eq.s32.totalorder %s13, 0
      %p33 = por %p31, %p32
      %p34 = scmp.ne.s32.totalorder %s23, %s26
      %p35 = scmp.eq.s32.totalorder %s18, 1
      %p36 = por %p34, %p35
      %p37 = scmp.ne.s32.totalorder %s26, %s27
      %p38 = scmp.eq.s32.totalorder %s18, 0
      %p39 = por %p37, %p38
      %p40 = scmp.ne.s32.totalorder %s26, %s27
      %p41 = scmp.eq.s32.totalorder %s19, 1
      %p42 = por %p40, %p41
      %p44 = scmp.ne.s32.totalorder %s27, %s43
      %p45 = scmp.eq.s32.totalorder %s19, 0
      %p46 = por %p44, %p45
      %s48 = sadd.s32 %s47, 1
      %p51 = scmp.eq.s32.totalorder %s13, 1
      %p52 = scmp.ne.s32.totalorder %s47, %s49
      %p53 = scmp.eq.s32.totalorder %s13, 0
      %p54 = por %p52, %p53
      %p55 = scmp.ne.s32.totalorder %s47, %s49
      %p56 = scmp.eq.s32.totalorder %s18, 1
      %p57 = por %p55, %p56
      %p58 = scmp.ne.s32.totalorder %s49, %s50
      %p59 = scmp.eq.s32.totalorder %s18, 0
      %p60 = por %p58, %p59
      %p61 = scmp.ne.s32.totalorder %s49, %s50
      %p62 = scmp.eq.s32.totalorder %s19, 1
      %p63 = por %p61, %p62
      %p65 = scmp.ne.s32.totalorder %s50, %s64
      %p66 = scmp.eq.s32.totalorder %s19, 0
      %p67 = por %p65, %p66
      %s69 = sadd.s32 %s68, 1
      %p72 = scmp.eq.s32.totalorder %s13, 1
      %p73 = scmp.ne.s32.totalorder %s68, %s70
      %p74 = scmp.eq.s32.totalorder %s13, 0
      %p75 = por %p73, %p74
      %p76 = scmp.ne.s32.totalorder %s68, %s70
      %p77 = scmp.eq.s32.totalorder %s18, 1
      %p78 = por %p76, %p77
      %p79 = scmp.ne.s32.totalorder %s70, %s71
      %p80 = scmp.eq.s32.totalorder %s18, 0
      %p81 = por %p79, %p80
      %p82 = scmp.ne.s32.totalorder %s70, %s71
      %p83 = scmp.eq.s32.totalorder %s19, 1
      %p84 = por %p82, %p83
      %p86 = scmp.ne.s32.totalorder %s71, %s85
      %p87 = scmp.eq.s32.totalorder %s19, 0
      %p88 = por %p86, %p87
      %s90 = sadd.s32 %s89, 1
      %p93 = scmp.eq.s32.totalorder %s13, 1
      %p94 = scmp.ne.s32.totalorder %s89, %s91
      %p95 = scmp.eq.s32.totalorder %s13, 0
      %p96 = por %p94, %p95
      %p97 = scmp.ne.s32.totalorder %s89, %s91
      %p98 = scmp.eq.s32.totalorder %s18, 1
      %p99 = por %p97, %p98
      %p100 = scmp.ne.s32.totalorder %s91, %s92
      %p101 = scmp.eq.s32.totalorder %s18, 0
      %p102 = por %p100, %p101
      %p103 = scmp.ne.s32.totalorder %s91, %s92
      %p104 = scmp.eq.s32.totalorder %s19, 1
      %p105 = por %p103, %p104
      %p107 = scmp.ne.s32.totalorder %s92, %s106
      %p108 = scmp.eq.s32.totalorder %s19, 0
      %p109 = por %p107, %p108
      %s110 = ssub.s32 %s13, %s20
      %p111 = scmp.eq.s32.totalorder %s110, 0
      %s113 = sadd.s32 %s112, 1
      %s114 = scalar_select %p111, %s112, %s113
      %p117 = pneg %p111
      %p118 = scmp.eq.s32.totalorder %s13, 1
      %p119 = por %p117, %p118
      %p120 = scmp.ne.s32.totalorder %s112, %s115
      %p121 = scmp.eq.s32.totalorder %s13, 0
      %p122 = por %p120, %p121
      %p123 = scmp.ne.s32.totalorder %s112, %s115
      %p124 = scmp.eq.s32.totalorder %s18, 1
      %p125 = por %p123, %p124
      %p126 = scmp.ne.s32.totalorder %s115, %s116
      %p127 = scmp.eq.s32.totalorder %s18, 0
      %p128 = por %p126, %p127
      %p129 = scmp.ne.s32.totalorder %s115, %s116
      %p130 = scmp.eq.s32.totalorder %s19, 1
      %p131 = por %p129, %p130
      %p133 = scmp.ne.s32.totalorder %s116, %s132
      %p134 = scmp.eq.s32.totalorder %s19, 0
      %p135 = por %p133, %p134
      %p136 = scmp.le.s32.totalorder 1, %s13
      %p137 = scmp.lt.s32.totalorder %s13, 3
      %p138 = pnand %p136, %p137
      %p139 = pneg %p138
      // Predicated region
      $region9: #{tpu_custom_call.1} parent=5 // pred_check
        _
      $region10: #{tpu_custom_call.1} parent=5 // pred_check_branch
        %141 = sbr.rel (%p138) target = $region12
      $region11: #{tpu_custom_call.1} parent=5 // pred_region
        %s142 = ssub.s32 %s13, 1
        // Predicated region
        $region13: #{tpu_custom_call.1} parent=11 // pred_check
          %p143 = pneg %p60
        $region14: #{tpu_custom_call.1} parent=11 // pred_check_branch
          %145 = sbr.rel (%p143) target = $region16
        $region15: #{tpu_custom_call.1} parent=11 // pred_region
          _
        $region16: #{tpu_custom_call.1} parent=11 // pred_fallthru
          _
        // Predicated region
        $region17: #{tpu_custom_call.1} parent=11 // pred_check
          %p146 = pneg %p81
        $region18: #{tpu_custom_call.1} parent=11 // pred_check_branch
          %148 = sbr.rel (%p146) target = $region20
        $region19: #{tpu_custom_call.1} parent=11 // pred_region
          _
        $region20: #{tpu_custom_call.1} parent=11 // pred_fallthru
          _
        // Predicated region
        $region21: #{tpu_custom_call.1} parent=11 // pred_check
          %p149 = pneg %p102
        $region22: #{tpu_custom_call.1} parent=11 // pred_check_branch
          %151 = sbr.rel (%p149) target = $region24
        $region23: #{tpu_custom_call.1} parent=11 // pred_region
          _
        $region24: #{tpu_custom_call.1} parent=11 // pred_fallthru
          _
      $region12: #{tpu_custom_call.1} parent=5 // pred_fallthru
        _
      %p152 = scmp.lt.s32.totalorder %s13, 2
      // Predicated region
      $region25: #{tpu_custom_call.1} parent=5 // pred_check
        %p153 = pneg %p152
      $region26: #{tpu_custom_call.1} parent=5 // pred_check_branch
        %155 = sbr.rel (%p153) target = $region28
      $region27: #{tpu_custom_call.1} parent=5 // pred_region
        // Predicated region
        $region29: #{tpu_custom_call.1} parent=27 // pred_check
          %p156 = pneg %p33
        $region30: #{tpu_custom_call.1} parent=27 // pred_check_branch
          %158 = sbr.rel (%p156) target = $region32
        $region31: #{tpu_custom_call.1} parent=27 // pred_region
          %p159 = scmp.lt.s32.totalorder %s13, 1
          %s160 = scalar_select %p159, %s13, 1
          %s161 = smul.addr %s160, 8
          %s162 = smul.addr %s161, 8
          %s163 = scalar_lea.vmem %s0, %s162
        $region32: #{tpu_custom_call.1} parent=27 // pred_fallthru
          _
      $region28: #{tpu_custom_call.1} parent=5 // pred_fallthru
        _
      %p164 = scmp.le.s32.totalorder 1, %s13
      %p165 = scmp.lt.s32.totalorder %s13, 3
      %p166 = pnand %p164, %p165
      %p167 = pneg %p166
      // Predicated region
      $region33: #{tpu_custom_call.1} parent=5 // pred_check
        _
      $region34: #{tpu_custom_call.1} parent=5 // pred_check_branch
        %169 = sbr.rel (%p166) target = $region36
      $region35: #{tpu_custom_call.1} parent=5 // pred_region
        %s170 = ssub.s32 %s13, 1
        %p171 = scmp.lt.s32.totalorder %s18, 1
        %s172 = scalar_select %p171, %s18, 1
        %s173 = smul.addr %s172, 8
        %s174 = smul.addr %s173, 8
        %s175 = scalar_lea.vmem %s0, %s174
        %p176 = pneg %p39
        %p177 = pneg %p36
        %p178 = pneg %p60
        %p179 = pneg %p57
        %p180 = pneg %p81
        %p181 = pneg %p78
        %p182 = pneg %p102
        %p183 = pneg %p99
        %p184 = pneg %p128
        %p185 = pneg %p125
        %s186 = sand.u32 %s115, 1
        %s187 = scalar_lea.sflag [#allocation3], %s186
        %s188 = sand.u32 %s115, 1
        %s189 = smul.addr %s188, 64
        %s190 = scalar_lea.vmem [#allocation2], %s189
        %p191 = scmp.lt.s32.totalorder %s18, 1
        %s192 = scalar_select %p191, %s18, 1
        %s193 = smul.addr %s192, 8
        %s194 = smul.addr %s193, 8
        %s195 = scalar_lea.vmem %s0, %s194
        %v196 = vld [vmem:[%s195] sm:$0xff]
        %v197 = vld [vmem:[%s195 + $0x8] sm:$0xff]
        %v198 = vld [vmem:[%s195 + $0x10] sm:$0xff]
        %v199 = vld [vmem:[%s195 + $0x18] sm:$0xff]
        %v200 = vld [vmem:[%s195 + $0x20] sm:$0xff]
        %v201 = vld [vmem:[%s195 + $0x28] sm:$0xff]
        %v202 = vld [vmem:[%s195 + $0x30] sm:$0xff]
        %v203 = vld [vmem:[%s195 + $0x38] sm:$0xff]
        %v204 = vld [vmem:[%s1] sm:$0xff]
        %v205 = vld [vmem:[%s1 + $0x8] sm:$0xff]
        %v206 = vld [vmem:[%s1 + $0x10] sm:$0xff]
        %v207 = vld [vmem:[%s1 + $0x18] sm:$0xff]
        %v208 = vld [vmem:[%s1 + $0x20] sm:$0xff]
        %v209 = vld [vmem:[%s1 + $0x28] sm:$0xff]
        %v210 = vld [vmem:[%s1 + $0x30] sm:$0xff]
        %v211 = vld [vmem:[%s1 + $0x38] sm:$0xff]
        %v212 = vld [vmem:[%s1 + $0x40] sm:$0xff]
        %v213 = vld [vmem:[%s1 + $0x48] sm:$0xff]
        %v214 = vld [vmem:[%s1 + $0x50] sm:$0xff]
        %v215 = vld [vmem:[%s1 + $0x58] sm:$0xff]
        %v216 = vld [vmem:[%s1 + $0x60] sm:$0xff]
        %v217 = vld [vmem:[%s1 + $0x68] sm:$0xff]
        %v218 = vld [vmem:[%s1 + $0x70] sm:$0xff]
        %v219 = vld [vmem:[%s1 + $0x78] sm:$0xff]
        %v220 = vld [vmem:[%s1 + $0x80] sm:$0xff]
        %v221 = vld [vmem:[%s1 + $0x88] sm:$0xff]
        %v222 = vld [vmem:[%s1 + $0x90] sm:$0xff]
        %v223 = vld [vmem:[%s1 + $0x98] sm:$0xff]
        %v224 = vld [vmem:[%s1 + $0xa0] sm:$0xff]
        %v225 = vld [vmem:[%s1 + $0xa8] sm:$0xff]
        %v226 = vld [vmem:[%s1 + $0xb0] sm:$0xff]
        %v227 = vld [vmem:[%s1 + $0xb8] sm:$0xff]
        %v228 = vld [vmem:[%s1 + $0xc0] sm:$0xff]
        %v229 = vld [vmem:[%s1 + $0xc8] sm:$0xff]
        %v230 = vld [vmem:[%s1 + $0xd0] sm:$0xff]
        %v231 = vld [vmem:[%s1 + $0xd8] sm:$0xff]
        %v232 = vld [vmem:[%s1 + $0xe0] sm:$0xff]
        %v233 = vld [vmem:[%s1 + $0xe8] sm:$0xff]
        %v234 = vld [vmem:[%s1 + $0xf0] sm:$0xff]
        %v235 = vld [vmem:[%s1 + $0xf8] sm:$0xff]
        %v236 = vld [vmem:[%s1 + $0x100] sm:$0xff]
        %v237 = vld [vmem:[%s1 + $0x108] sm:$0xff]
        %v238 = vld [vmem:[%s1 + $0x110] sm:$0xff]
        %v239 = vld [vmem:[%s1 + $0x118] sm:$0xff]
        %v240 = vld [vmem:[%s1 + $0x120] sm:$0xff]
        %v241 = vld [vmem:[%s1 + $0x128] sm:$0xff]
        %v242 = vld [vmem:[%s1 + $0x130] sm:$0xff]
        %v243 = vld [vmem:[%s1 + $0x138] sm:$0xff]
        %v244 = vld [vmem:[%s1 + $0x140] sm:$0xff]
        %v245 = vld [vmem:[%s1 + $0x148] sm:$0xff]
        %v246 = vld [vmem:[%s1 + $0x150] sm:$0xff]
        %v247 = vld [vmem:[%s1 + $0x158] sm:$0xff]
        %v248 = vld [vmem:[%s1 + $0x160] sm:$0xff]
        %v249 = vld [vmem:[%s1 + $0x168] sm:$0xff]
        %v250 = vld [vmem:[%s1 + $0x170] sm:$0xff]
        %v251 = vld [vmem:[%s1 + $0x178] sm:$0xff]
        %vm252 = vcmask 261120
        %v254 = vsel %vm252, %v204, 0
        %v257 = vsel %vm252, %v205, 0
        %v260 = vsel %vm252, %v206, 0
        %v263 = vsel %vm252, %v207, 0
        %v266 = vsel %vm252, %v208, 0
        %v269 = vsel %vm252, %v209, 0
        %v272 = vsel %vm252, %v210, 0
        %v275 = vsel %vm252, %v211, 0
        %v278 = vsel %vm252, %v212, 0
        %v281 = vsel %vm252, %v213, 0
        %v284 = vsel %vm252, %v214, 0
        %v287 = vsel %vm252, %v215, 0
        %v290 = vsel %vm252, %v216, 0
        %v293 = vsel %vm252, %v217, 0
        %v296 = vsel %vm252, %v218, 0
        %v299 = vsel %vm252, %v219, 0
        %v302 = vsel %vm252, %v220, 0
        %v305 = vsel %vm252, %v221, 0
        %v308 = vsel %vm252, %v222, 0
        %v311 = vsel %vm252, %v223, 0
        %v314 = vsel %vm252, %v224, 0
        %v317 = vsel %vm252, %v225, 0
        %v320 = vsel %vm252, %v226, 0
        %v323 = vsel %vm252, %v227, 0
        %v326 = vsel %vm252, %v228, 0
        %v329 = vsel %vm252, %v229, 0
        %v332 = vsel %vm252, %v230, 0
        %v335 = vsel %vm252, %v231, 0
        %v338 = vsel %vm252, %v232, 0
        %v341 = vsel %vm252, %v233, 0
        %v344 = vsel %vm252, %v234, 0
        %v347 = vsel %vm252, %v235, 0
        %v350 = vsel %vm252, %v236, 0
        %v353 = vsel %vm252, %v237, 0
        %v356 = vsel %vm252, %v238, 0
        %v359 = vsel %vm252, %v239, 0
        %v362 = vsel %vm252, %v240, 0
        %v365 = vsel %vm252, %v241, 0
        %v368 = vsel %vm252, %v242, 0
        %v371 = vsel %vm252, %v243, 0
        %v374 = vsel %vm252, %v244, 0
        %v377 = vsel %vm252, %v245, 0
        %v380 = vsel %vm252, %v246, 0
        %v383 = vsel %vm252, %v247, 0
        %v386 = vsel %vm252, %v248, 0
        %v389 = vsel %vm252, %v249, 0
        %v392 = vsel %vm252, %v250, 0
        %v395 = vsel %vm252, %v251, 0
        %397 = vmatprep.subr.mxu0 0.0
        %398 = vmatpush1.msra.mxu0 0.0
        %399 = vmatprep.subr.mxu0 0.0
        %400 = vmatpush1.msra.mxu0 0.0
        %401 = vmatprep.subr.mxu0 0.0
        %402 = vmatpush1.msra.mxu0 0.0
        %403 = vmatprep.subr.mxu0 0.0
        %404 = vmatpush1.msra.mxu0 0.0
        %405 = vmatprep.subr.mxu0 0.0
        %406 = vmatpush1.msra.mxu0 0.0
        %407 = vmatprep.subr.mxu0 0.0
        %408 = vmatpush1.msra.mxu0 0.0
        %409 = vmatprep.subr.mxu0 0.0
        %410 = vmatpush1.msra.mxu0 0.0
        %411 = vmatprep.subr.mxu0 0.0
        %412 = vmatpush1.msra.mxu0 0.0
        %413 = vmatprep.subr.mxu0 0.0
        %414 = vmatpush1.msra.mxu0 0.0
        %415 = vmatprep.subr.mxu0 0.0
        %416 = vmatpush1.msra.mxu0 0.0
        %417 = vmatprep.subr.mxu0 0.0
        %418 = vmatpush1.msra.mxu0 0.0
        %419 = vmatprep.subr.mxu0 0.0
        %420 = vmatpush1.msra.mxu0 0.0
        %421 = vmatprep.subr.mxu0 %v203
        %422 = vmatpush1.msra.mxu0 %v202
        %423 = vmatprep.subr.mxu0 %v201
        %424 = vmatpush1.msra.mxu0 %v200
        %425 = vmatprep.subr.mxu0 %v199
        %426 = vmatpush1.msra.mxu0 %v198
        %427 = vmatprep.subr.mxu0 %v197
        %428 = vmatpush1.msra.mxu0 %v196
        %429 = vmatprep.subr.mxu0 0.0
        %430 = vmatpush2.msra.mxu0 0.0
        %431 = vmatprep.subr.mxu0 0.0
        %432 = vmatpush2.msra.mxu0 0.0
        %433 = vmatprep.subr.mxu0 0.0
        %434 = vmatpush2.msra.mxu0 0.0
        %435 = vmatprep.subr.mxu0 0.0
        %436 = vmatpush2.msra.mxu0 0.0
        %437 = vmatprep.subr.mxu0 0.0
        %438 = vmatpush2.msra.mxu0 0.0
        %439 = vmatprep.subr.mxu0 0.0
        %440 = vmatpush2.msra.mxu0 0.0
        %441 = vmatprep.subr.mxu0 0.0
        %442 = vmatpush2.msra.mxu0 0.0
        %443 = vmatprep.subr.mxu0 0.0
        %444 = vmatpush2.msra.mxu0 0.0
        %445 = vmatprep.subr.mxu0 0.0
        %446 = vmatpush2.msra.mxu0 0.0
        %447 = vmatprep.subr.mxu0 0.0
        %448 = vmatpush2.msra.mxu0 0.0
        %449 = vmatprep.subr.mxu0 0.0
        %450 = vmatpush2.msra.mxu0 0.0
        %451 = vmatprep.subr.mxu0 0.0
        %452 = vmatpush2.msra.mxu0 0.0
        %453 = vmatprep.subr.mxu0 0.0
        %454 = vmatpush2.msra.mxu0 0.0
        %455 = vmatprep.subr.mxu0 0.0
        %456 = vmatpush2.msra.mxu0 0.0
        %457 = vmatprep.subr.mxu0 0.0
        %458 = vmatpush2.msra.mxu0 0.0
        %459 = vmatprep.subr.mxu0 0.0
        %460 = vmatpush2.msra.mxu0 0.0
        %461 = vmatprep.mubr.f32.mxu0 0.0
        %462 = vmatmul.mubr.f32.gmra.mxu0 %v254
        %v463 = vpop.f32.mrf.mxu0
        %v464 = vadd.f32 0.0, %v463
        %v465 = vpop.f32.mrf.mxu0
        %v466 = vadd.f32 0.0, %v465
        %467 = vmatprep.mubr.f32.mxu0 0.0
        %468 = vmatmul.mubr.f32.gmra.mxu0 %v257
        %v469 = vpop.f32.mrf.mxu0
        %v470 = vadd.f32 0.0, %v469
        %v471 = vpop.f32.mrf.mxu0
        %v472 = vadd.f32 0.0, %v471
        %473 = vmatprep.mubr.f32.mxu0 0.0
        %474 = vmatmul.mubr.f32.gmra.mxu0 %v260
        %v475 = vpop.f32.mrf.mxu0
        %v476 = vadd.f32 0.0, %v475
        %v477 = vpop.f32.mrf.mxu0
        %v478 = vadd.f32 0.0, %v477
        %479 = vmatprep.mubr.f32.mxu0 0.0
        %480 = vmatmul.mubr.f32.gmra.mxu0 %v263
        %v481 = vpop.f32.mrf.mxu0
        %v482 = vadd.f32 0.0, %v481
        %v483 = vpop.f32.mrf.mxu0
        %v484 = vadd.f32 0.0, %v483
        %485 = vmatprep.mubr.f32.mxu0 0.0
        %486 = vmatmul.mubr.f32.gmra.mxu0 %v266
        %v487 = vpop.f32.mrf.mxu0
        %v488 = vadd.f32 0.0, %v487
        %v489 = vpop.f32.mrf.mxu0
        %v490 = vadd.f32 0.0, %v489
        %491 = vmatprep.mubr.f32.mxu0 0.0
        %492 = vmatmul.mubr.f32.gmra.mxu0 %v269
        %v493 = vpop.f32.mrf.mxu0
        %v494 = vadd.f32 0.0, %v493
        %v495 = vpop.f32.mrf.mxu0
        %v496 = vadd.f32 0.0, %v495
        %497 = vmatprep.mubr.f32.mxu0 0.0
        %498 = vmatmul.mubr.f32.gmra.mxu0 %v272
        %v499 = vpop.f32.mrf.mxu0
        %v500 = vadd.f32 0.0, %v499
        %v501 = vpop.f32.mrf.mxu0
        %v502 = vadd.f32 0.0, %v501
        %503 = vmatprep.mubr.f32.mxu0 0.0
        %504 = vmatmul.mubr.f32.gmra.mxu0 %v275
        %v505 = vpop.f32.mrf.mxu0
        %v506 = vadd.f32 0.0, %v505
        %v507 = vpop.f32.mrf.mxu0
        %v508 = vadd.f32 0.0, %v507
        %509 = vmatprep.mubr.f32.mxu0 0.0
        %510 = vmatmul.mubr.f32.gmra.mxu0 %v278
        %v511 = vpop.f32.mrf.mxu0
        %v512 = vadd.f32 0.0, %v511
        %v513 = vpop.f32.mrf.mxu0
        %v514 = vadd.f32 0.0, %v513
        %515 = vmatprep.mubr.f32.mxu0 0.0
        %516 = vmatmul.mubr.f32.gmra.mxu0 %v281
        %v517 = vpop.f32.mrf.mxu0
        %v518 = vadd.f32 0.0, %v517
        %v519 = vpop.f32.mrf.mxu0
        %v520 = vadd.f32 0.0, %v519
        %521 = vmatprep.mubr.f32.mxu0 0.0
        %522 = vmatmul.mubr.f32.gmra.mxu0 %v284
        %v523 = vpop.f32.mrf.mxu0
        %v524 = vadd.f32 0.0, %v523
        %v525 = vpop.f32.mrf.mxu0
        %v526 = vadd.f32 0.0, %v525
        %527 = vmatprep.mubr.f32.mxu0 0.0
        %528 = vmatmul.mubr.f32.gmra.mxu0 %v287
        %v529 = vpop.f32.mrf.mxu0
        %v530 = vadd.f32 0.0, %v529
        %v531 = vpop.f32.mrf.mxu0
        %v532 = vadd.f32 0.0, %v531
        %533 = vmatprep.mubr.f32.mxu0 0.0
        %534 = vmatmul.mubr.f32.gmra.mxu0 %v290
        %v535 = vpop.f32.mrf.mxu0
        %v536 = vadd.f32 0.0, %v535
        %v537 = vpop.f32.mrf.mxu0
        %v538 = vadd.f32 0.0, %v537
        %539 = vmatprep.mubr.f32.mxu0 0.0
        %540 = vmatmul.mubr.f32.gmra.mxu0 %v293
        %v541 = vpop.f32.mrf.mxu0
        %v542 = vadd.f32 0.0, %v541
        %v543 = vpop.f32.mrf.mxu0
        %v544 = vadd.f32 0.0, %v543
        %545 = vmatprep.mubr.f32.mxu0 0.0
        %546 = vmatmul.mubr.f32.gmra.mxu0 %v296
        %v547 = vpop.f32.mrf.mxu0
        %v548 = vadd.f32 0.0, %v547
        %v549 = vpop.f32.mrf.mxu0
        %v550 = vadd.f32 0.0, %v549
        %551 = vmatprep.mubr.f32.mxu0 0.0
        %552 = vmatmul.mubr.f32.gmra.mxu0 %v299
        %v553 = vpop.f32.mrf.mxu0
        %v554 = vadd.f32 0.0, %v553
        %v555 = vpop.f32.mrf.mxu0
        %v556 = vadd.f32 0.0, %v555
        %557 = vmatprep.mubr.f32.mxu0 0.0
        %558 = vmatmul.mubr.f32.gmra.mxu0 %v302
        %v559 = vpop.f32.mrf.mxu0
        %v560 = vadd.f32 0.0, %v559
        %v561 = vpop.f32.mrf.mxu0
        %v562 = vadd.f32 0.0, %v561
        %563 = vmatprep.mubr.f32.mxu0 0.0
        %564 = vmatmul.mubr.f32.gmra.mxu0 %v305
        %v565 = vpop.f32.mrf.mxu0
        %v566 = vadd.f32 0.0, %v565
        %v567 = vpop.f32.mrf.mxu0
        %v568 = vadd.f32 0.0, %v567
        %569 = vmatprep.mubr.f32.mxu0 0.0
        %570 = vmatmul.mubr.f32.gmra.mxu0 %v308
        %v571 = vpop.f32.mrf.mxu0
        %v572 = vadd.f32 0.0, %v571
        %v573 = vpop.f32.mrf.mxu0
        %v574 = vadd.f32 0.0, %v573
        %575 = vmatprep.mubr.f32.mxu0 0.0
        %576 = vmatmul.mubr.f32.gmra.mxu0 %v311
        %v577 = vpop.f32.mrf.mxu0
        %v578 = vadd.f32 0.0, %v577
        %v579 = vpop.f32.mrf.mxu0
        %v580 = vadd.f32 0.0, %v579
        %581 = vmatprep.mubr.f32.mxu0 0.0
        %582 = vmatmul.mubr.f32.gmra.mxu0 %v314
        %v583 = vpop.f32.mrf.mxu0
        %v584 = vadd.f32 0.0, %v583
        %v585 = vpop.f32.mrf.mxu0
        %v586 = vadd.f32 0.0, %v585
        %587 = vmatprep.mubr.f32.mxu0 0.0
        %588 = vmatmul.mubr.f32.gmra.mxu0 %v317
        %v589 = vpop.f32.mrf.mxu0
        %v590 = vadd.f32 0.0, %v589
        %v591 = vpop.f32.mrf.mxu0
        %v592 = vadd.f32 0.0, %v591
        %593 = vmatprep.mubr.f32.mxu0 0.0
        %594 = vmatmul.mubr.f32.gmra.mxu0 %v320
        %v595 = vpop.f32.mrf.mxu0
        %v596 = vadd.f32 0.0, %v595
        %v597 = vpop.f32.mrf.mxu0
        %v598 = vadd.f32 0.0, %v597
        %599 = vmatprep.mubr.f32.mxu0 0.0
        %600 = vmatmul.mubr.f32.gmra.mxu0 %v323
        %v601 = vpop.f32.mrf.mxu0
        %v602 = vadd.f32 0.0, %v601
        %v603 = vpop.f32.mrf.mxu0
        %v604 = vadd.f32 0.0, %v603
        %605 = vmatprep.mubr.f32.mxu0 0.0
        %606 = vmatmul.mubr.f32.gmra.mxu0 %v326
        %v607 = vpop.f32.mrf.mxu0
        %v608 = vadd.f32 0.0, %v607
        %v609 = vpop.f32.mrf.mxu0
        %v610 = vadd.f32 0.0, %v609
        %611 = vmatprep.mubr.f32.mxu0 0.0
        %612 = vmatmul.mubr.f32.gmra.mxu0 %v329
        %v613 = vpop.f32.mrf.mxu0
        %v614 = vadd.f32 0.0, %v613
        %v615 = vpop.f32.mrf.mxu0
        %v616 = vadd.f32 0.0, %v615
        %617 = vmatprep.mubr.f32.mxu0 0.0
        %618 = vmatmul.mubr.f32.gmra.mxu0 %v332
        %v619 = vpop.f32.mrf.mxu0
        %v620 = vadd.f32 0.0, %v619
        %v621 = vpop.f32.mrf.mxu0
        %v622 = vadd.f32 0.0, %v621
        %623 = vmatprep.mubr.f32.mxu0 0.0
        %624 = vmatmul.mubr.f32.gmra.mxu0 %v335
        %v625 = vpop.f32.mrf.mxu0
        %v626 = vadd.f32 0.0, %v625
        %v627 = vpop.f32.mrf.mxu0
        %v628 = vadd.f32 0.0, %v627
        %629 = vmatprep.mubr.f32.mxu0 0.0
        %630 = vmatmul.mubr.f32.gmra.mxu0 %v338
        %v631 = vpop.f32.mrf.mxu0
        %v632 = vadd.f32 0.0, %v631
        %v633 = vpop.f32.mrf.mxu0
        %v634 = vadd.f32 0.0, %v633
        %635 = vmatprep.mubr.f32.mxu0 0.0
        %636 = vmatmul.mubr.f32.gmra.mxu0 %v341
        %v637 = vpop.f32.mrf.mxu0
        %v638 = vadd.f32 0.0, %v637
        %v639 = vpop.f32.mrf.mxu0
        %v640 = vadd.f32 0.0, %v639
        %641 = vmatprep.mubr.f32.mxu0 0.0
        %642 = vmatmul.mubr.f32.gmra.mxu0 %v344
        %v643 = vpop.f32.mrf.mxu0
        %v644 = vadd.f32 0.0, %v643
        %v645 = vpop.f32.mrf.mxu0
        %v646 = vadd.f32 0.0, %v645
        %647 = vmatprep.mubr.f32.mxu0 0.0
        %648 = vmatmul.mubr.f32.gmra.mxu0 %v347
        %v649 = vpop.f32.mrf.mxu0
        %v650 = vadd.f32 0.0, %v649
        %v651 = vpop.f32.mrf.mxu0
        %v652 = vadd.f32 0.0, %v651
        %653 = vmatprep.mubr.f32.mxu0 0.0
        %654 = vmatmul.mubr.f32.gmra.mxu0 %v350
        %v655 = vpop.f32.mrf.mxu0
        %v656 = vadd.f32 0.0, %v655
        %v657 = vpop.f32.mrf.mxu0
        %v658 = vadd.f32 0.0, %v657
        %659 = vmatprep.mubr.f32.mxu0 0.0
        %660 = vmatmul.mubr.f32.gmra.mxu0 %v353
        %v661 = vpop.f32.mrf.mxu0
        %v662 = vadd.f32 0.0, %v661
        %v663 = vpop.f32.mrf.mxu0
        %v664 = vadd.f32 0.0, %v663
        %665 = vmatprep.mubr.f32.mxu0 0.0
        %666 = vmatmul.mubr.f32.gmra.mxu0 %v356
        %v667 = vpop.f32.mrf.mxu0
        %v668 = vadd.f32 0.0, %v667
        %v669 = vpop.f32.mrf.mxu0
        %v670 = vadd.f32 0.0, %v669
        %671 = vmatprep.mubr.f32.mxu0 0.0
        %672 = vmatmul.mubr.f32.gmra.mxu0 %v359
        %v673 = vpop.f32.mrf.mxu0
        %v674 = vadd.f32 0.0, %v673
        %v675 = vpop.f32.mrf.mxu0
        %v676 = vadd.f32 0.0, %v675
        %677 = vmatprep.mubr.f32.mxu0 0.0
        %678 = vmatmul.mubr.f32.gmra.mxu0 %v362
        %v679 = vpop.f32.mrf.mxu0
        %v680 = vadd.f32 0.0, %v679
        %v681 = vpop.f32.mrf.mxu0
        %v682 = vadd.f32 0.0, %v681
        %683 = vmatprep.mubr.f32.mxu0 0.0
        %684 = vmatmul.mubr.f32.gmra.mxu0 %v365
        %v685 = vpop.f32.mrf.mxu0
        %v686 = vadd.f32 0.0, %v685
        %v687 = vpop.f32.mrf.mxu0
        %v688 = vadd.f32 0.0, %v687
        %689 = vmatprep.mubr.f32.mxu0 0.0
        %690 = vmatmul.mubr.f32.gmra.mxu0 %v368
        %v691 = vpop.f32.mrf.mxu0
        %v692 = vadd.f32 0.0, %v691
        %v693 = vpop.f32.mrf.mxu0
        %v694 = vadd.f32 0.0, %v693
        %695 = vmatprep.mubr.f32.mxu0 0.0
        %696 = vmatmul.mubr.f32.gmra.mxu0 %v371
        %v697 = vpop.f32.mrf.mxu0
        %v698 = vadd.f32 0.0, %v697
        %v699 = vpop.f32.mrf.mxu0
        %v700 = vadd.f32 0.0, %v699
        %701 = vmatprep.mubr.f32.mxu0 0.0
        %702 = vmatmul.mubr.f32.gmra.mxu0 %v374
        %v703 = vpop.f32.mrf.mxu0
        %v704 = vadd.f32 0.0, %v703
        %v705 = vpop.f32.mrf.mxu0
        %v706 = vadd.f32 0.0, %v705
        %707 = vmatprep.mubr.f32.mxu0 0.0
        %708 = vmatmul.mubr.f32.gmra.mxu0 %v377
        %v709 = vpop.f32.mrf.mxu0
        %v710 = vadd.f32 0.0, %v709
        %v711 = vpop.f32.mrf.mxu0
        %v712 = vadd.f32 0.0, %v711
        %713 = vmatprep.mubr.f32.mxu0 0.0
        %714 = vmatmul.mubr.f32.gmra.mxu0 %v380
        %v715 = vpop.f32.mrf.mxu0
        %v716 = vadd.f32 0.0, %v715
        %v717 = vpop.f32.mrf.mxu0
        %v718 = vadd.f32 0.0, %v717
        %719 = vmatprep.mubr.f32.mxu0 0.0
        %720 = vmatmul.mubr.f32.gmra.mxu0 %v383
        %v721 = vpop.f32.mrf.mxu0
        %v722 = vadd.f32 0.0, %v721
        %v723 = vpop.f32.mrf.mxu0
        %v724 = vadd.f32 0.0, %v723
        %725 = vmatprep.mubr.f32.mxu0 0.0
        %726 = vmatmul.mubr.f32.gmra.mxu0 %v386
        %v727 = vpop.f32.mrf.mxu0
        %v728 = vadd.f32 0.0, %v727
        %v729 = vpop.f32.mrf.mxu0
        %v730 = vadd.f32 0.0, %v729
        %731 = vmatprep.mubr.f32.mxu0 0.0
        %732 = vmatmul.mubr.f32.gmra.mxu0 %v389
        %v733 = vpop.f32.mrf.mxu0
        %v734 = vadd.f32 0.0, %v733
        %v735 = vpop.f32.mrf.mxu0
        %v736 = vadd.f32 0.0, %v735
        %737 = vmatprep.mubr.f32.mxu0 0.0
        %738 = vmatmul.mubr.f32.gmra.mxu0 %v392
        %v739 = vpop.f32.mrf.mxu0
        %v740 = vadd.f32 0.0, %v739
        %v741 = vpop.f32.mrf.mxu0
        %v742 = vadd.f32 0.0, %v741
        %743 = vmatprep.mubr.f32.mxu0 0.0
        %744 = vmatmul.mubr.f32.gmra.mxu0 %v395
        %v745 = vpop.f32.mrf.mxu0
        %v746 = vadd.f32 0.0, %v745
        %v747 = vpop.f32.mrf.mxu0
        %v748 = vadd.f32 0.0, %v747
        %749 = vdwg.mxu0
        %750 = vxpose.xlu0.b32.start [1/16] %v464, 128
        %751 = vxpose.xlu0.b32.cont [2/16] %v470, 128
        %752 = vxpose.xlu0.b32.cont [3/16] %v476, 128
        %753 = vxpose.xlu0.b32.cont [4/16] %v482, 128
        %754 = vxpose.xlu0.b32.cont [5/16] 0.0, 128
        %755 = vxpose.xlu0.b32.cont [6/16] 0.0, 128
        %756 = vxpose.xlu0.b32.cont [7/16] 0.0, 128
        %757 = vxpose.xlu0.b32.cont [8/16] 0.0, 128
        %758 = vxpose.xlu0.b32.cont [9/16] 0.0, 128
        %759 = vxpose.xlu0.b32.cont [10/16] 0.0, 128
        %760 = vxpose.xlu0.b32.cont [11/16] 0.0, 128
        %761 = vxpose.xlu0.b32.cont [12/16] 0.0, 128
        %762 = vxpose.xlu0.b32.cont [13/16] 0.0, 128
        %763 = vxpose.xlu0.b32.cont [14/16] 0.0, 128
        %764 = vxpose.xlu0.b32.cont [15/16] 0.0, 128
        %765 = vxpose.xlu0.b32.end [16/16] 0.0, 128
        %v766 = vpop.trf.xlu0
        %v767 = vpop.trf.xlu0
        %v768 = vpop.trf.xlu0
        %v769 = vpop.trf.xlu0
        %v770 = vpop.trf.xlu0
        %v771 = vpop.trf.xlu0
        %v772 = vpop.trf.xlu0
        %v773 = vpop.trf.xlu0
        %v774 = vpop.trf.xlu0
        %v775 = vpop.trf.xlu0
        %v776 = vpop.trf.xlu0
        %v777 = vpop.trf.xlu0
        %v778 = vpop.trf.xlu0
        %v779 = vpop.trf.xlu0
        %v780 = vpop.trf.xlu0
        %v781 = vpop.trf.xlu0
        %782 = vxpose.xlu0.b32.start [1/16] %v466, 128
        %783 = vxpose.xlu0.b32.cont [2/16] %v472, 128
        %784 = vxpose.xlu0.b32.cont [3/16] %v478, 128
        %785 = vxpose.xlu0.b32.cont [4/16] %v484, 128
        %786 = vxpose.xlu0.b32.cont [5/16] 0.0, 128
        %787 = vxpose.xlu0.b32.cont [6/16] 0.0, 128
        %788 = vxpose.xlu0.b32.cont [7/16] 0.0, 128
        %789 = vxpose.xlu0.b32.cont [8/16] 0.0, 128
        %790 = vxpose.xlu0.b32.cont [9/16] 0.0, 128
        %791 = vxpose.xlu0.b32.cont [10/16] 0.0, 128
        %792 = vxpose.xlu0.b32.cont [11/16] 0.0, 128
        %793 = vxpose.xlu0.b32.cont [12/16] 0.0, 128
        %794 = vxpose.xlu0.b32.cont [13/16] 0.0, 128
        %795 = vxpose.xlu0.b32.cont [14/16] 0.0, 128
        %796 = vxpose.xlu0.b32.cont [15/16] 0.0, 128
        %797 = vxpose.xlu0.b32.end [16/16] 0.0, 128
        %v798 = vpop.trf.xlu0
        %v799 = vpop.trf.xlu0
        %v800 = vpop.trf.xlu0
        %v801 = vpop.trf.xlu0
        %v802 = vpop.trf.xlu0
        %v803 = vpop.trf.xlu0
        %v804 = vpop.trf.xlu0
        %v805 = vpop.trf.xlu0
        %v806 = vpop.trf.xlu0
        %v807 = vpop.trf.xlu0
        %v808 = vpop.trf.xlu0
        %v809 = vpop.trf.xlu0
        %v810 = vpop.trf.xlu0
        %v811 = vpop.trf.xlu0
        %v812 = vpop.trf.xlu0
        %v813 = vpop.trf.xlu0
        %v814 = vmul.f32 %v766, 0.17677669
        %v815 = vmul.f32 %v767, 0.17677669
        %v816 = vmul.f32 %v768, 0.17677669
        %v817 = vmul.f32 %v769, 0.17677669
        %v818 = vmul.f32 %v770, 0.17677669
        %v819 = vmul.f32 %v771, 0.17677669
        %v820 = vmul.f32 %v772, 0.17677669
        %v821 = vmul.f32 %v773, 0.17677669
        %v822 = vmul.f32 %v774, 0.17677669
        %v823 = vmul.f32 %v775, 0.17677669
        %v824 = vmul.f32 %v776, 0.17677669
        %v825 = vmul.f32 %v777, 0.17677669
        %v826 = vmul.f32 %v778, 0.17677669
        %v827 = vmul.f32 %v779, 0.17677669
        %v828 = vmul.f32 %v780, 0.17677669
        %v829 = vmul.f32 %v781, 0.17677669
        %v830 = vmul.f32 %v798, 0.17677669
        %v831 = vmul.f32 %v799, 0.17677669
        %v832 = vmul.f32 %v800, 0.17677669
        %v833 = vmul.f32 %v801, 0.17677669
        %v834 = vmul.f32 %v802, 0.17677669
        %v835 = vmul.f32 %v803, 0.17677669
        %v836 = vmul.f32 %v804, 0.17677669
        %v837 = vmul.f32 %v805, 0.17677669
        %v838 = vmul.f32 %v806, 0.17677669
        %v839 = vmul.f32 %v807, 0.17677669
        %v840 = vmul.f32 %v808, 0.17677669
        %v841 = vmul.f32 %v809, 0.17677669
        %v842 = vmul.f32 %v810, 0.17677669
        %v843 = vmul.f32 %v811, 0.17677669
        %v844 = vmul.f32 %v812, 0.17677669
        %v845 = vmul.f32 %v813, 0.17677669
        %v847 = vsel %vm252, %v814, 0
        %v850 = vsel %vm252, %v815, 0
        %v853 = vsel %vm252, %v816, 0
        %v856 = vsel %vm252, %v817, 0
        %v859 = vsel %vm252, %v818, 0
        %v862 = vsel %vm252, %v819, 0
        %v865 = vsel %vm252, %v820, 0
        %v868 = vsel %vm252, %v821, 0
        %v871 = vsel %vm252, %v822, 0
        %v874 = vsel %vm252, %v823, 0
        %v877 = vsel %vm252, %v824, 0
        %v880 = vsel %vm252, %v825, 0
        %v883 = vsel %vm252, %v826, 0
        %v886 = vsel %vm252, %v827, 0
        %v889 = vsel %vm252, %v828, 0
        %v892 = vsel %vm252, %v829, 0
        %v895 = vsel %vm252, %v830, 0
        %v898 = vsel %vm252, %v831, 0
        %v901 = vsel %vm252, %v832, 0
        %v904 = vsel %vm252, %v833, 0
        %v907 = vsel %vm252, %v834, 0
        %v910 = vsel %vm252, %v835, 0
        %v913 = vsel %vm252, %v836, 0
        %v916 = vsel %vm252, %v837, 0
        %v919 = vsel %vm252, %v838, 0
        %v922 = vsel %vm252, %v839, 0
        %v925 = vsel %vm252, %v840, 0
        %v928 = vsel %vm252, %v841, 0
        %v931 = vsel %vm252, %v842, 0
        %v934 = vsel %vm252, %v843, 0
        %v937 = vsel %vm252, %v844, 0
        %v940 = vsel %vm252, %v845, 0
        %942 = vmatprep.subr.mxu0 0.0
        %943 = vmatpush1.msra.mxu0 0.0
        %944 = vmatprep.subr.mxu0 0.0
        %945 = vmatpush1.msra.mxu0 0.0
        %946 = vmatprep.subr.mxu0 0.0
        %947 = vmatpush1.msra.mxu0 0.0
        %948 = vmatprep.subr.mxu0 0.0
        %949 = vmatpush1.msra.mxu0 0.0
        %950 = vmatprep.subr.mxu0 0.0
        %951 = vmatpush1.msra.mxu0 0.0
        %952 = vmatprep.subr.mxu0 0.0
        %953 = vmatpush1.msra.mxu0 0.0
        %954 = vmatprep.subr.mxu0 0.0
        %955 = vmatpush1.msra.mxu0 0.0
        %956 = vmatprep.subr.mxu0 0.0
        %957 = vmatpush1.msra.mxu0 0.0
        %958 = vmatprep.subr.mxu0 0.0
        %959 = vmatpush1.msra.mxu0 0.0
        %960 = vmatprep.subr.mxu0 0.0
        %961 = vmatpush1.msra.mxu0 0.0
        %962 = vmatprep.subr.mxu0 0.0
        %963 = vmatpush1.msra.mxu0 0.0
        %964 = vmatprep.subr.mxu0 0.0
        %965 = vmatpush1.msra.mxu0 0.0
        %966 = vmatprep.subr.mxu0 %v580
        %967 = vmatpush1.msra.mxu0 %v578
        %968 = vmatprep.subr.mxu0 %v574
        %969 = vmatpush1.msra.mxu0 %v572
        %970 = vmatprep.subr.mxu0 %v568
        %971 = vmatpush1.msra.mxu0 %v566
        %972 = vmatprep.subr.mxu0 %v562
        %973 = vmatpush1.msra.mxu0 %v560
        %974 = vmatprep.subr.mxu0 0.0
        %975 = vmatpush2.msra.mxu0 0.0
        %976 = vmatprep.subr.mxu0 0.0
        %977 = vmatpush2.msra.mxu0 0.0
        %978 = vmatprep.subr.mxu0 0.0
        %979 = vmatpush2.msra.mxu0 0.0
        %980 = vmatprep.subr.mxu0 0.0
        %981 = vmatpush2.msra.mxu0 0.0
        %982 = vmatprep.subr.mxu0 0.0
        %983 = vmatpush2.msra.mxu0 0.0
        %984 = vmatprep.subr.mxu0 0.0
        %985 = vmatpush2.msra.mxu0 0.0
        %986 = vmatprep.subr.mxu0 0.0
        %987 = vmatpush2.msra.mxu0 0.0
        %988 = vmatprep.subr.mxu0 0.0
        %989 = vmatpush2.msra.mxu0 0.0
        %990 = vmatprep.subr.mxu0 0.0
        %991 = vmatpush2.msra.mxu0 0.0
        %992 = vmatprep.subr.mxu0 0.0
        %993 = vmatpush2.msra.mxu0 0.0
        %994 = vmatprep.subr.mxu0 0.0
        %995 = vmatpush2.msra.mxu0 0.0
        %996 = vmatprep.subr.mxu0 0.0
        %997 = vmatpush2.msra.mxu0 0.0
        %998 = vmatprep.subr.mxu0 0.0
        %999 = vmatpush2.msra.mxu0 0.0
        %1000 = vmatprep.subr.mxu0 0.0
        %1001 = vmatpush2.msra.mxu0 0.0
        %1002 = vmatprep.subr.mxu0 0.0
        %1003 = vmatpush2.msra.mxu0 0.0
        %1004 = vmatprep.subr.mxu0 0.0
        %1005 = vmatpush2.msra.mxu0 0.0
        %1006 = vmatprep.mubr.f32.mxu0 0.0
        %1007 = vmatmul.mubr.f32.gmra.mxu0 %v847
        %v1008 = vpop.f32.mrf.mxu0
        %v1009 = vadd.f32 0.0, %v1008
        %v1010 = vpop.f32.mrf.mxu0
        %v1011 = vadd.f32 0.0, %v1010
        %1012 = vmatprep.mubr.f32.mxu0 0.0
        %1013 = vmatmul.mubr.f32.gmra.mxu0 %v850
        %v1014 = vpop.f32.mrf.mxu0
        %v1015 = vadd.f32 0.0, %v1014
        %v1016 = vpop.f32.mrf.mxu0
        %v1017 = vadd.f32 0.0, %v1016
        %1018 = vmatprep.mubr.f32.mxu0 0.0
        %1019 = vmatmul.mubr.f32.gmra.mxu0 %v853
        %v1020 = vpop.f32.mrf.mxu0
        %v1021 = vadd.f32 0.0, %v1020
        %v1022 = vpop.f32.mrf.mxu0
        %v1023 = vadd.f32 0.0, %v1022
        %1024 = vmatprep.mubr.f32.mxu0 0.0
        %1025 = vmatmul.mubr.f32.gmra.mxu0 %v856
        %v1026 = vpop.f32.mrf.mxu0
        %v1027 = vadd.f32 0.0, %v1026
        %v1028 = vpop.f32.mrf.mxu0
        %v1029 = vadd.f32 0.0, %v1028
        %1030 = vmatprep.mubr.f32.mxu0 0.0
        %1031 = vmatmul.mubr.f32.gmra.mxu0 %v859
        %v1032 = vpop.f32.mrf.mxu0
        %v1033 = vadd.f32 0.0, %v1032
        %v1034 = vpop.f32.mrf.mxu0
        %v1035 = vadd.f32 0.0, %v1034
        %1036 = vmatprep.mubr.f32.mxu0 0.0
        %1037 = vmatmul.mubr.f32.gmra.mxu0 %v862
        %v1038 = vpop.f32.mrf.mxu0
        %v1039 = vadd.f32 0.0, %v1038
        %v1040 = vpop.f32.mrf.mxu0
        %v1041 = vadd.f32 0.0, %v1040
        %1042 = vmatprep.mubr.f32.mxu0 0.0
        %1043 = vmatmul.mubr.f32.gmra.mxu0 %v865
        %v1044 = vpop.f32.mrf.mxu0
        %v1045 = vadd.f32 0.0, %v1044
        %v1046 = vpop.f32.mrf.mxu0
        %v1047 = vadd.f32 0.0, %v1046
        %1048 = vmatprep.mubr.f32.mxu0 0.0
        %1049 = vmatmul.mubr.f32.gmra.mxu0 %v868
        %v1050 = vpop.f32.mrf.mxu0
        %v1051 = vadd.f32 0.0, %v1050
        %v1052 = vpop.f32.mrf.mxu0
        %v1053 = vadd.f32 0.0, %v1052
        %1054 = vmatprep.mubr.f32.mxu0 0.0
        %1055 = vmatmul.mubr.f32.gmra.mxu0 %v871
        %v1056 = vpop.f32.mrf.mxu0
        %v1057 = vadd.f32 0.0, %v1056
        %v1058 = vpop.f32.mrf.mxu0
        %v1059 = vadd.f32 0.0, %v1058
        %1060 = vmatprep.mubr.f32.mxu0 0.0
        %1061 = vmatmul.mubr.f32.gmra.mxu0 %v874
        %v1062 = vpop.f32.mrf.mxu0
        %v1063 = vadd.f32 0.0, %v1062
        %v1064 = vpop.f32.mrf.mxu0
        %v1065 = vadd.f32 0.0, %v1064
        %1066 = vmatprep.mubr.f32.mxu0 0.0
        %1067 = vmatmul.mubr.f32.gmra.mxu0 %v877
        %v1068 = vpop.f32.mrf.mxu0
        %v1069 = vadd.f32 0.0, %v1068
        %v1070 = vpop.f32.mrf.mxu0
        %v1071 = vadd.f32 0.0, %v1070
        %1072 = vmatprep.mubr.f32.mxu0 0.0
        %1073 = vmatmul.mubr.f32.gmra.mxu0 %v880
        %v1074 = vpop.f32.mrf.mxu0
        %v1075 = vadd.f32 0.0, %v1074
        %v1076 = vpop.f32.mrf.mxu0
        %v1077 = vadd.f32 0.0, %v1076
        %1078 = vmatprep.mubr.f32.mxu0 0.0
        %1079 = vmatmul.mubr.f32.gmra.mxu0 %v883
        %v1080 = vpop.f32.mrf.mxu0
        %v1081 = vadd.f32 0.0, %v1080
        %v1082 = vpop.f32.mrf.mxu0
        %v1083 = vadd.f32 0.0, %v1082
        %1084 = vmatprep.mubr.f32.mxu0 0.0
        %1085 = vmatmul.mubr.f32.gmra.mxu0 %v886
        %v1086 = vpop.f32.mrf.mxu0
        %v1087 = vadd.f32 0.0, %v1086
        %v1088 = vpop.f32.mrf.mxu0
        %v1089 = vadd.f32 0.0, %v1088
        %1090 = vmatprep.mubr.f32.mxu0 0.0
        %1091 = vmatmul.mubr.f32.gmra.mxu0 %v889
        %v1092 = vpop.f32.mrf.mxu0
        %v1093 = vadd.f32 0.0, %v1092
        %v1094 = vpop.f32.mrf.mxu0
        %v1095 = vadd.f32 0.0, %v1094
        %1096 = vmatprep.mubr.f32.mxu0 0.0
        %1097 = vmatmul.mubr.f32.gmra.mxu0 %v892
        %v1098 = vpop.f32.mrf.mxu0
        %v1099 = vadd.f32 0.0, %v1098
        %v1100 = vpop.f32.mrf.mxu0
        %v1101 = vadd.f32 0.0, %v1100
        %1102 = vmatprep.mubr.f32.mxu0 0.0
        %1103 = vmatmul.mubr.f32.gmra.mxu0 %v895
        %v1104 = vpop.f32.mrf.mxu0
        %v1105 = vadd.f32 0.0, %v1104
        %v1106 = vpop.f32.mrf.mxu0
        %v1107 = vadd.f32 0.0, %v1106
        %1108 = vmatprep.mubr.f32.mxu0 0.0
        %1109 = vmatmul.mubr.f32.gmra.mxu0 %v898
        %v1110 = vpop.f32.mrf.mxu0
        %v1111 = vadd.f32 0.0, %v1110
        %v1112 = vpop.f32.mrf.mxu0
        %v1113 = vadd.f32 0.0, %v1112
        %1114 = vmatprep.mubr.f32.mxu0 0.0
        %1115 = vmatmul.mubr.f32.gmra.mxu0 %v901
        %v1116 = vpop.f32.mrf.mxu0
        %v1117 = vadd.f32 0.0, %v1116
        %v1118 = vpop.f32.mrf.mxu0
        %v1119 = vadd.f32 0.0, %v1118
        %1120 = vmatprep.mubr.f32.mxu0 0.0
        %1121 = vmatmul.mubr.f32.gmra.mxu0 %v904
        %v1122 = vpop.f32.mrf.mxu0
        %v1123 = vadd.f32 0.0, %v1122
        %v1124 = vpop.f32.mrf.mxu0
        %v1125 = vadd.f32 0.0, %v1124
        %1126 = vmatprep.mubr.f32.mxu0 0.0
        %1127 = vmatmul.mubr.f32.gmra.mxu0 %v907
        %v1128 = vpop.f32.mrf.mxu0
        %v1129 = vadd.f32 0.0, %v1128
        %v1130 = vpop.f32.mrf.mxu0
        %v1131 = vadd.f32 0.0, %v1130
        %1132 = vmatprep.mubr.f32.mxu0 0.0
        %1133 = vmatmul.mubr.f32.gmra.mxu0 %v910
        %v1134 = vpop.f32.mrf.mxu0
        %v1135 = vadd.f32 0.0, %v1134
        %v1136 = vpop.f32.mrf.mxu0
        %v1137 = vadd.f32 0.0, %v1136
        %1138 = vmatprep.mubr.f32.mxu0 0.0
        %1139 = vmatmul.mubr.f32.gmra.mxu0 %v913
        %v1140 = vpop.f32.mrf.mxu0
        %v1141 = vadd.f32 0.0, %v1140
        %v1142 = vpop.f32.mrf.mxu0
        %v1143 = vadd.f32 0.0, %v1142
        %1144 = vmatprep.mubr.f32.mxu0 0.0
        %1145 = vmatmul.mubr.f32.gmra.mxu0 %v916
        %v1146 = vpop.f32.mrf.mxu0
        %v1147 = vadd.f32 0.0, %v1146
        %v1148 = vpop.f32.mrf.mxu0
        %v1149 = vadd.f32 0.0, %v1148
        %1150 = vmatprep.mubr.f32.mxu0 0.0
        %1151 = vmatmul.mubr.f32.gmra.mxu0 %v919
        %v1152 = vpop.f32.mrf.mxu0
        %v1153 = vadd.f32 0.0, %v1152
        %v1154 = vpop.f32.mrf.mxu0
        %v1155 = vadd.f32 0.0, %v1154
        %1156 = vmatprep.mubr.f32.mxu0 0.0
        %1157 = vmatmul.mubr.f32.gmra.mxu0 %v922
        %v1158 = vpop.f32.mrf.mxu0
        %v1159 = vadd.f32 0.0, %v1158
        %v1160 = vpop.f32.mrf.mxu0
        %v1161 = vadd.f32 0.0, %v1160
        %1162 = vmatprep.mubr.f32.mxu0 0.0
        %1163 = vmatmul.mubr.f32.gmra.mxu0 %v925
        %v1164 = vpop.f32.mrf.mxu0
        %v1165 = vadd.f32 0.0, %v1164
        %v1166 = vpop.f32.mrf.mxu0
        %v1167 = vadd.f32 0.0, %v1166
        %1168 = vmatprep.mubr.f32.mxu0 0.0
        %1169 = vmatmul.mubr.f32.gmra.mxu0 %v928
        %v1170 = vpop.f32.mrf.mxu0
        %v1171 = vadd.f32 0.0, %v1170
        %v1172 = vpop.f32.mrf.mxu0
        %v1173 = vadd.f32 0.0, %v1172
        %1174 = vmatprep.mubr.f32.mxu0 0.0
        %1175 = vmatmul.mubr.f32.gmra.mxu0 %v931
        %v1176 = vpop.f32.mrf.mxu0
        %v1177 = vadd.f32 0.0, %v1176
        %v1178 = vpop.f32.mrf.mxu0
        %v1179 = vadd.f32 0.0, %v1178
        %1180 = vmatprep.mubr.f32.mxu0 0.0
        %1181 = vmatmul.mubr.f32.gmra.mxu0 %v934
        %v1182 = vpop.f32.mrf.mxu0
        %v1183 = vadd.f32 0.0, %v1182
        %v1184 = vpop.f32.mrf.mxu0
        %v1185 = vadd.f32 0.0, %v1184
        %1186 = vmatprep.mubr.f32.mxu0 0.0
        %1187 = vmatmul.mubr.f32.gmra.mxu0 %v937
        %v1188 = vpop.f32.mrf.mxu0
        %v1189 = vadd.f32 0.0, %v1188
        %v1190 = vpop.f32.mrf.mxu0
        %v1191 = vadd.f32 0.0, %v1190
        %1192 = vmatprep.mubr.f32.mxu0 0.0
        %1193 = vmatmul.mubr.f32.gmra.mxu0 %v940
        %v1194 = vpop.f32.mrf.mxu0
        %v1195 = vadd.f32 0.0, %v1194
        %v1196 = vpop.f32.mrf.mxu0
        %v1197 = vadd.f32 0.0, %v1196
        %1198 = vdwg.mxu0
        %v1199 = vmax.f32 %v1009, %v1011
        %1200 = vmax.xlane.f32.xlu0 %v1199
        %v1201 = vpop.xlane.xlu0 %1200
        %v1202 = vmax.f32 %v1015, %v1017
        %1203 = vmax.xlane.f32.xlu0 %v1202
        %v1204 = vpop.xlane.xlu0 %1203
        %v1205 = vmax.f32 %v1021, %v1023
        %1206 = vmax.xlane.f32.xlu0 %v1205
        %v1207 = vpop.xlane.xlu0 %1206
        %v1208 = vmax.f32 %v1027, %v1029
        %1209 = vmax.xlane.f32.xlu0 %v1208
        %v1210 = vpop.xlane.xlu0 %1209
        %v1211 = vmax.f32 %v1033, %v1035
        %1212 = vmax.xlane.f32.xlu0 %v1211
        %v1213 = vpop.xlane.xlu0 %1212
        %v1214 = vmax.f32 %v1039, %v1041
        %1215 = vmax.xlane.f32.xlu0 %v1214
        %v1216 = vpop.xlane.xlu0 %1215
        %v1217 = vmax.f32 %v1045, %v1047
        %1218 = vmax.xlane.f32.xlu0 %v1217
        %v1219 = vpop.xlane.xlu0 %1218
        %v1220 = vmax.f32 %v1051, %v1053
        %1221 = vmax.xlane.f32.xlu0 %v1220
        %v1222 = vpop.xlane.xlu0 %1221
        %v1223 = vmax.f32 %v1057, %v1059
        %1224 = vmax.xlane.f32.xlu0 %v1223
        %v1225 = vpop.xlane.xlu0 %1224
        %v1226 = vmax.f32 %v1063, %v1065
        %1227 = vmax.xlane.f32.xlu0 %v1226
        %v1228 = vpop.xlane.xlu0 %1227
        %v1229 = vmax.f32 %v1069, %v1071
        %1230 = vmax.xlane.f32.xlu0 %v1229
        %v1231 = vpop.xlane.xlu0 %1230
        %v1232 = vmax.f32 %v1075, %v1077
        %1233 = vmax.xlane.f32.xlu0 %v1232
        %v1234 = vpop.xlane.xlu0 %1233
        %v1235 = vmax.f32 %v1081, %v1083
        %1236 = vmax.xlane.f32.xlu0 %v1235
        %v1237 = vpop.xlane.xlu0 %1236
        %v1238 = vmax.f32 %v1087, %v1089
        %1239 = vmax.xlane.f32.xlu0 %v1238
        %v1240 = vpop.xlane.xlu0 %1239
        %v1241 = vmax.f32 %v1093, %v1095
        %1242 = vmax.xlane.f32.xlu0 %v1241
        %v1243 = vpop.xlane.xlu0 %1242
        %v1244 = vmax.f32 %v1099, %v1101
        %1245 = vmax.xlane.f32.xlu0 %v1244
        %v1246 = vpop.xlane.xlu0 %1245
        %v1247 = vmax.f32 %v1105, %v1107
        %1248 = vmax.xlane.f32.xlu0 %v1247
        %v1249 = vpop.xlane.xlu0 %1248
        %v1250 = vmax.f32 %v1111, %v1113
        %1251 = vmax.xlane.f32.xlu0 %v1250
        %v1252 = vpop.xlane.xlu0 %1251
        %v1253 = vmax.f32 %v1117, %v1119
        %1254 = vmax.xlane.f32.xlu0 %v1253
        %v1255 = vpop.xlane.xlu0 %1254
        %v1256 = vmax.f32 %v1123, %v1125
        %1257 = vmax.xlane.f32.xlu0 %v1256
        %v1258 = vpop.xlane.xlu0 %1257
        %v1259 = vmax.f32 %v1129, %v1131
        %1260 = vmax.xlane.f32.xlu0 %v1259
        %v1261 = vpop.xlane.xlu0 %1260
        %v1262 = vmax.f32 %v1135, %v1137
        %1263 = vmax.xlane.f32.xlu0 %v1262
        %v1264 = vpop.xlane.xlu0 %1263
        %v1265 = vmax.f32 %v1141, %v1143
        %1266 = vmax.xlane.f32.xlu0 %v1265
        %v1267 = vpop.xlane.xlu0 %1266
        %v1268 = vmax.f32 %v1147, %v1149
        %1269 = vmax.xlane.f32.xlu0 %v1268
        %v1270 = vpop.xlane.xlu0 %1269
        %v1271 = vmax.f32 %v1153, %v1155
        %1272 = vmax.xlane.f32.xlu0 %v1271
        %v1273 = vpop.xlane.xlu0 %1272
        %v1274 = vmax.f32 %v1159, %v1161
        %1275 = vmax.xlane.f32.xlu0 %v1274
        %v1276 = vpop.xlane.xlu0 %1275
        %v1277 = vmax.f32 %v1165, %v1167
        %1278 = vmax.xlane.f32.xlu0 %v1277
        %v1279 = vpop.xlane.xlu0 %1278
        %v1280 = vmax.f32 %v1171, %v1173
        %1281 = vmax.xlane.f32.xlu0 %v1280
        %v1282 = vpop.xlane.xlu0 %1281
        %v1283 = vmax.f32 %v1177, %v1179
        %1284 = vmax.xlane.f32.xlu0 %v1283
        %v1285 = vpop.xlane.xlu0 %1284
        %v1286 = vmax.f32 %v1183, %v1185
        %1287 = vmax.xlane.f32.xlu0 %v1286
        %v1288 = vpop.xlane.xlu0 %1287
        %v1289 = vmax.f32 %v1189, %v1191
        %1290 = vmax.xlane.f32.xlu0 %v1289
        %v1291 = vpop.xlane.xlu0 %1290
        %v1292 = vmax.f32 %v1195, %v1197
        %1293 = vmax.xlane.f32.xlu0 %v1292
        %v1294 = vpop.xlane.xlu0 %1293
        %v1295 = vsub.f32 %v1009, %v1201
        %v1296 = vsub.f32 %v1011, %v1201
        %v1297 = vsub.f32 %v1015, %v1204
        %v1298 = vsub.f32 %v1017, %v1204
        %v1299 = vsub.f32 %v1021, %v1207
        %v1300 = vsub.f32 %v1023, %v1207
        %v1301 = vsub.f32 %v1027, %v1210
        %v1302 = vsub.f32 %v1029, %v1210
        %v1303 = vsub.f32 %v1033, %v1213
        %v1304 = vsub.f32 %v1035, %v1213
        %v1305 = vsub.f32 %v1039, %v1216
        %v1306 = vsub.f32 %v1041, %v1216
        %v1307 = vsub.f32 %v1045, %v1219
        %v1308 = vsub.f32 %v1047, %v1219
        %v1309 = vsub.f32 %v1051, %v1222
        %v1310 = vsub.f32 %v1053, %v1222
        %v1311 = vsub.f32 %v1057, %v1225
        %v1312 = vsub.f32 %v1059, %v1225
        %v1313 = vsub.f32 %v1063, %v1228
        %v1314 = vsub.f32 %v1065, %v1228
        %v1315 = vsub.f32 %v1069, %v1231
        %v1316 = vsub.f32 %v1071, %v1231
        %v1317 = vsub.f32 %v1075, %v1234
        %v1318 = vsub.f32 %v1077, %v1234
        %v1319 = vsub.f32 %v1081, %v1237
        %v1320 = vsub.f32 %v1083, %v1237
        %v1321 = vsub.f32 %v1087, %v1240
        %v1322 = vsub.f32 %v1089, %v1240
        %v1323 = vsub.f32 %v1093, %v1243
        %v1324 = vsub.f32 %v1095, %v1243
        %v1325 = vsub.f32 %v1099, %v1246
        %v1326 = vsub.f32 %v1101, %v1246
        %v1327 = vsub.f32 %v1105, %v1249
        %v1328 = vsub.f32 %v1107, %v1249
        %v1329 = vsub.f32 %v1111, %v1252
        %v1330 = vsub.f32 %v1113, %v1252
        %v1331 = vsub.f32 %v1117, %v1255
        %v1332 = vsub.f32 %v1119, %v1255
        %v1333 = vsub.f32 %v1123, %v1258
        %v1334 = vsub.f32 %v1125, %v1258
        %v1335 = vsub.f32 %v1129, %v1261
        %v1336 = vsub.f32 %v1131, %v1261
        %v1337 = vsub.f32 %v1135, %v1264
        %v1338 = vsub.f32 %v1137, %v1264
        %v1339 = vsub.f32 %v1141, %v1267
        %v1340 = vsub.f32 %v1143, %v1267
        %v1341 = vsub.f32 %v1147, %v1270
        %v1342 = vsub.f32 %v1149, %v1270
        %v1343 = vsub.f32 %v1153, %v1273
        %v1344 = vsub.f32 %v1155, %v1273
        %v1345 = vsub.f32 %v1159, %v1276
        %v1346 = vsub.f32 %v1161, %v1276
        %v1347 = vsub.f32 %v1165, %v1279
        %v1348 = vsub.f32 %v1167, %v1279
        %v1349 = vsub.f32 %v1171, %v1282
        %v1350 = vsub.f32 %v1173, %v1282
        %v1351 = vsub.f32 %v1177, %v1285
        %v1352 = vsub.f32 %v1179, %v1285
        %v1353 = vsub.f32 %v1183, %v1288
        %v1354 = vsub.f32 %v1185, %v1288
        %v1355 = vsub.f32 %v1189, %v1291
        %v1356 = vsub.f32 %v1191, %v1291
        %v1357 = vsub.f32 %v1195, %v1294
        %v1358 = vsub.f32 %v1197, %v1294
        %v1359 = vmul.f32 %v1295, 1.442695
        %v1360 = vpow.pop %v1359
        %v1361 = vmul.f32 %v1296, 1.442695
        %v1362 = vpow.pop %v1361
        %v1363 = vmul.f32 %v1297, 1.442695
        %v1364 = vpow.pop %v1363
        %v1365 = vmul.f32 %v1298, 1.442695
        %v1366 = vpow.pop %v1365
        %v1367 = vmul.f32 %v1299, 1.442695
        %v1368 = vpow.pop %v1367
        %v1369 = vmul.f32 %v1300, 1.442695
        %v1370 = vpow.pop %v1369
        %v1371 = vmul.f32 %v1301, 1.442695
        %v1372 = vpow.pop %v1371
        %v1373 = vmul.f32 %v1302, 1.442695
        %v1374 = vpow.pop %v1373
        %v1375 = vmul.f32 %v1303, 1.442695
        %v1376 = vpow.pop %v1375
        %v1377 = vmul.f32 %v1304, 1.442695
        %v1378 = vpow.pop %v1377
        %v1379 = vmul.f32 %v1305, 1.442695
        %v1380 = vpow.pop %v1379
        %v1381 = vmul.f32 %v1306, 1.442695
        %v1382 = vpow.pop %v1381
        %v1383 = vmul.f32 %v1307, 1.442695
        %v1384 = vpow.pop %v1383
        %v1385 = vmul.f32 %v1308, 1.442695
        %v1386 = vpow.pop %v1385
        %v1387 = vmul.f32 %v1309, 1.442695
        %v1388 = vpow.pop %v1387
        %v1389 = vmul.f32 %v1310, 1.442695
        %v1390 = vpow.pop %v1389
        %v1391 = vmul.f32 %v1311, 1.442695
        %v1392 = vpow.pop %v1391
        %v1393 = vmul.f32 %v1312, 1.442695
        %v1394 = vpow.pop %v1393
        %v1395 = vmul.f32 %v1313, 1.442695
        %v1396 = vpow.pop %v1395
        %v1397 = vmul.f32 %v1314, 1.442695
        %v1398 = vpow.pop %v1397
        %v1399 = vmul.f32 %v1315, 1.442695
        %v1400 = vpow.pop %v1399
        %v1401 = vmul.f32 %v1316, 1.442695
        %v1402 = vpow.pop %v1401
        %v1403 = vmul.f32 %v1317, 1.442695
        %v1404 = vpow.pop %v1403
        %v1405 = vmul.f32 %v1318, 1.442695
        %v1406 = vpow.pop %v1405
        %v1407 = vmul.f32 %v1319, 1.442695
        %v1408 = vpow.pop %v1407
        %v1409 = vmul.f32 %v1320, 1.442695
        %v1410 = vpow.pop %v1409
        %v1411 = vmul.f32 %v1321, 1.442695
        %v1412 = vpow.pop %v1411
        %v1413 = vmul.f32 %v1322, 1.442695
        %v1414 = vpow.pop %v1413
        %v1415 = vmul.f32 %v1323, 1.442695
        %v1416 = vpow.pop %v1415
        %v1417 = vmul.f32 %v1324, 1.442695
        %v1418 = vpow.pop %v1417
        %v1419 = vmul.f32 %v1325, 1.442695
        %v1420 = vpow.pop %v1419
        %v1421 = vmul.f32 %v1326, 1.442695
        %v1422 = vpow.pop %v1421
        %v1423 = vmul.f32 %v1327, 1.442695
        %v1424 = vpow.pop %v1423
        %v1425 = vmul.f32 %v1328, 1.442695
        %v1426 = vpow.pop %v1425
        %v1427 = vmul.f32 %v1329, 1.442695
        %v1428 = vpow.pop %v1427
        %v1429 = vmul.f32 %v1330, 1.442695
        %v1430 = vpow.pop %v1429
        %v1431 = vmul.f32 %v1331, 1.442695
        %v1432 = vpow.pop %v1431
        %v1433 = vmul.f32 %v1332, 1.442695
        %v1434 = vpow.pop %v1433
        %v1435 = vmul.f32 %v1333, 1.442695
        %v1436 = vpow.pop %v1435
        %v1437 = vmul.f32 %v1334, 1.442695
        %v1438 = vpow.pop %v1437
        %v1439 = vmul.f32 %v1335, 1.442695
        %v1440 = vpow.pop %v1439
        %v1441 = vmul.f32 %v1336, 1.442695
        %v1442 = vpow.pop %v1441
        %v1443 = vmul.f32 %v1337, 1.442695
        %v1444 = vpow.pop %v1443
        %v1445 = vmul.f32 %v1338, 1.442695
        %v1446 = vpow.pop %v1445
        %v1447 = vmul.f32 %v1339, 1.442695
        %v1448 = vpow.pop %v1447
        %v1449 = vmul.f32 %v1340, 1.442695
        %v1450 = vpow.pop %v1449
        %v1451 = vmul.f32 %v1341, 1.442695
        %v1452 = vpow.pop %v1451
        %v1453 = vmul.f32 %v1342, 1.442695
        %v1454 = vpow.pop %v1453
        %v1455 = vmul.f32 %v1343, 1.442695
        %v1456 = vpow.pop %v1455
        %v1457 = vmul.f32 %v1344, 1.442695
        %v1458 = vpow.pop %v1457
        %v1459 = vmul.f32 %v1345, 1.442695
        %v1460 = vpow.pop %v1459
        %v1461 = vmul.f32 %v1346, 1.442695
        %v1462 = vpow.pop %v1461
        %v1463 = vmul.f32 %v1347, 1.442695
        %v1464 = vpow.pop %v1463
        %v1465 = vmul.f32 %v1348, 1.442695
        %v1466 = vpow.pop %v1465
        %v1467 = vmul.f32 %v1349, 1.442695
        %v1468 = vpow.pop %v1467
        %v1469 = vmul.f32 %v1350, 1.442695
        %v1470 = vpow.pop %v1469
        %v1471 = vmul.f32 %v1351, 1.442695
        %v1472 = vpow.pop %v1471
        %v1473 = vmul.f32 %v1352, 1.442695
        %v1474 = vpow.pop %v1473
        %v1475 = vmul.f32 %v1353, 1.442695
        %v1476 = vpow.pop %v1475
        %v1477 = vmul.f32 %v1354, 1.442695
        %v1478 = vpow.pop %v1477
        %v1479 = vmul.f32 %v1355, 1.442695
        %v1480 = vpow.pop %v1479
        %v1481 = vmul.f32 %v1356, 1.442695
        %v1482 = vpow.pop %v1481
        %v1483 = vmul.f32 %v1357, 1.442695
        %v1484 = vpow.pop %v1483
        %v1485 = vmul.f32 %v1358, 1.442695
        %v1486 = vpow.pop %v1485
        %v1487 = vadd.f32 %v1360, %v1362
        %1488 = vadd.xlane.f32.xlu0 %v1487
        %v1489 = vpop.xlane.xlu0 %1488
        %v1490 = vadd.f32 %v1364, %v1366
        %1491 = vadd.xlane.f32.xlu0 %v1490
        %v1492 = vpop.xlane.xlu0 %1491
        %v1493 = vadd.f32 %v1368, %v1370
        %1494 = vadd.xlane.f32.xlu0 %v1493
        %v1495 = vpop.xlane.xlu0 %1494
        %v1496 = vadd.f32 %v1372, %v1374
        %1497 = vadd.xlane.f32.xlu0 %v1496
        %v1498 = vpop.xlane.xlu0 %1497
        %v1499 = vadd.f32 %v1376, %v1378
        %1500 = vadd.xlane.f32.xlu0 %v1499
        %v1501 = vpop.xlane.xlu0 %1500
        %v1502 = vadd.f32 %v1380, %v1382
        %1503 = vadd.xlane.f32.xlu0 %v1502
        %v1504 = vpop.xlane.xlu0 %1503
        %v1505 = vadd.f32 %v1384, %v1386
        %1506 = vadd.xlane.f32.xlu0 %v1505
        %v1507 = vpop.xlane.xlu0 %1506
        %v1508 = vadd.f32 %v1388, %v1390
        %1509 = vadd.xlane.f32.xlu0 %v1508
        %v1510 = vpop.xlane.xlu0 %1509
        %v1511 = vadd.f32 %v1392, %v1394
        %1512 = vadd.xlane.f32.xlu0 %v1511
        %v1513 = vpop.xlane.xlu0 %1512
        %v1514 = vadd.f32 %v1396, %v1398
        %1515 = vadd.xlane.f32.xlu0 %v1514
        %v1516 = vpop.xlane.xlu0 %1515
        %v1517 = vadd.f32 %v1400, %v1402
        %1518 = vadd.xlane.f32.xlu0 %v1517
        %v1519 = vpop.xlane.xlu0 %1518
        %v1520 = vadd.f32 %v1404, %v1406
        %1521 = vadd.xlane.f32.xlu0 %v1520
        %v1522 = vpop.xlane.xlu0 %1521
        %v1523 = vadd.f32 %v1408, %v1410
        %1524 = vadd.xlane.f32.xlu0 %v1523
        %v1525 = vpop.xlane.xlu0 %1524
        %v1526 = vadd.f32 %v1412, %v1414
        %1527 = vadd.xlane.f32.xlu0 %v1526
        %v1528 = vpop.xlane.xlu0 %1527
        %v1529 = vadd.f32 %v1416, %v1418
        %1530 = vadd.xlane.f32.xlu0 %v1529
        %v1531 = vpop.xlane.xlu0 %1530
        %v1532 = vadd.f32 %v1420, %v1422
        %1533 = vadd.xlane.f32.xlu0 %v1532
        %v1534 = vpop.xlane.xlu0 %1533
        %v1535 = vadd.f32 %v1424, %v1426
        %1536 = vadd.xlane.f32.xlu0 %v1535
        %v1537 = vpop.xlane.xlu0 %1536
        %v1538 = vadd.f32 %v1428, %v1430
        %1539 = vadd.xlane.f32.xlu0 %v1538
        %v1540 = vpop.xlane.xlu0 %1539
        %v1541 = vadd.f32 %v1432, %v1434
        %1542 = vadd.xlane.f32.xlu0 %v1541
        %v1543 = vpop.xlane.xlu0 %1542
        %v1544 = vadd.f32 %v1436, %v1438
        %1545 = vadd.xlane.f32.xlu0 %v1544
        %v1546 = vpop.xlane.xlu0 %1545
        %v1547 = vadd.f32 %v1440, %v1442
        %1548 = vadd.xlane.f32.xlu0 %v1547
        %v1549 = vpop.xlane.xlu0 %1548
        %v1550 = vadd.f32 %v1444, %v1446
        %1551 = vadd.xlane.f32.xlu0 %v1550
        %v1552 = vpop.xlane.xlu0 %1551
        %v1553 = vadd.f32 %v1448, %v1450
        %1554 = vadd.xlane.f32.xlu0 %v1553
        %v1555 = vpop.xlane.xlu0 %1554
        %v1556 = vadd.f32 %v1452, %v1454
        %1557 = vadd.xlane.f32.xlu0 %v1556
        %v1558 = vpop.xlane.xlu0 %1557
        %v1559 = vadd.f32 %v1456, %v1458
        %1560 = vadd.xlane.f32.xlu0 %v1559
        %v1561 = vpop.xlane.xlu0 %1560
        %v1562 = vadd.f32 %v1460, %v1462
        %1563 = vadd.xlane.f32.xlu0 %v1562
        %v1564 = vpop.xlane.xlu0 %1563
        %v1565 = vadd.f32 %v1464, %v1466
        %1566 = vadd.xlane.f32.xlu0 %v1565
        %v1567 = vpop.xlane.xlu0 %1566
        %v1568 = vadd.f32 %v1468, %v1470
        %1569 = vadd.xlane.f32.xlu0 %v1568
        %v1570 = vpop.xlane.xlu0 %1569
        %v1571 = vadd.f32 %v1472, %v1474
        %1572 = vadd.xlane.f32.xlu0 %v1571
        %v1573 = vpop.xlane.xlu0 %1572
        %v1574 = vadd.f32 %v1476, %v1478
        %1575 = vadd.xlane.f32.xlu0 %v1574
        %v1576 = vpop.xlane.xlu0 %1575
        %v1577 = vadd.f32 %v1480, %v1482
        %1578 = vadd.xlane.f32.xlu0 %v1577
        %v1579 = vpop.xlane.xlu0 %1578
        %v1580 = vadd.f32 %v1484, %v1486
        %1581 = vadd.xlane.f32.xlu0 %v1580
        %v1582 = vpop.xlane.xlu0 %1581
        %v1583 = vrcp.pop %v1489
        %v1584 = vmul.f32 %v1360, %v1583
        %v1585 = vmul.f32 %v1362, %v1583
        %v1586 = vrcp.pop %v1492
        %v1587 = vmul.f32 %v1364, %v1586
        %v1588 = vmul.f32 %v1366, %v1586
        %v1589 = vrcp.pop %v1495
        %v1590 = vmul.f32 %v1368, %v1589
        %v1591 = vmul.f32 %v1370, %v1589
        %v1592 = vrcp.pop %v1498
        %v1593 = vmul.f32 %v1372, %v1592
        %v1594 = vmul.f32 %v1374, %v1592
        %v1595 = vrcp.pop %v1501
        %v1596 = vmul.f32 %v1376, %v1595
        %v1597 = vmul.f32 %v1378, %v1595
        %v1598 = vrcp.pop %v1504
        %v1599 = vmul.f32 %v1380, %v1598
        %v1600 = vmul.f32 %v1382, %v1598
        %v1601 = vrcp.pop %v1507
        %v1602 = vmul.f32 %v1384, %v1601
        %v1603 = vmul.f32 %v1386, %v1601
        %v1604 = vrcp.pop %v1510
        %v1605 = vmul.f32 %v1388, %v1604
        %v1606 = vmul.f32 %v1390, %v1604
        %v1607 = vrcp.pop %v1513
        %v1608 = vmul.f32 %v1392, %v1607
        %v1609 = vmul.f32 %v1394, %v1607
        %v1610 = vrcp.pop %v1516
        %v1611 = vmul.f32 %v1396, %v1610
        %v1612 = vmul.f32 %v1398, %v1610
        %v1613 = vrcp.pop %v1519
        %v1614 = vmul.f32 %v1400, %v1613
        %v1615 = vmul.f32 %v1402, %v1613
        %v1616 = vrcp.pop %v1522
        %v1617 = vmul.f32 %v1404, %v1616
        %v1618 = vmul.f32 %v1406, %v1616
        %v1619 = vrcp.pop %v1525
        %v1620 = vmul.f32 %v1408, %v1619
        %v1621 = vmul.f32 %v1410, %v1619
        %v1622 = vrcp.pop %v1528
        %v1623 = vmul.f32 %v1412, %v1622
        %v1624 = vmul.f32 %v1414, %v1622
        %v1625 = vrcp.pop %v1531
        %v1626 = vmul.f32 %v1416, %v1625
        %v1627 = vmul.f32 %v1418, %v1625
        %v1628 = vrcp.pop %v1534
        %v1629 = vmul.f32 %v1420, %v1628
        %v1630 = vmul.f32 %v1422, %v1628
        %v1631 = vrcp.pop %v1537
        %v1632 = vmul.f32 %v1424, %v1631
        %v1633 = vmul.f32 %v1426, %v1631
        %v1634 = vrcp.pop %v1540
        %v1635 = vmul.f32 %v1428, %v1634
        %v1636 = vmul.f32 %v1430, %v1634
        %v1637 = vrcp.pop %v1543
        %v1638 = vmul.f32 %v1432, %v1637
        %v1639 = vmul.f32 %v1434, %v1637
        %v1640 = vrcp.pop %v1546
        %v1641 = vmul.f32 %v1436, %v1640
        %v1642 = vmul.f32 %v1438, %v1640
        %v1643 = vrcp.pop %v1549
        %v1644 = vmul.f32 %v1440, %v1643
        %v1645 = vmul.f32 %v1442, %v1643
        %v1646 = vrcp.pop %v1552
        %v1647 = vmul.f32 %v1444, %v1646
        %v1648 = vmul.f32 %v1446, %v1646
        %v1649 = vrcp.pop %v1555
        %v1650 = vmul.f32 %v1448, %v1649
        %v1651 = vmul.f32 %v1450, %v1649
        %v1652 = vrcp.pop %v1558
        %v1653 = vmul.f32 %v1452, %v1652
        %v1654 = vmul.f32 %v1454, %v1652
        %v1655 = vrcp.pop %v1561
        %v1656 = vmul.f32 %v1456, %v1655
        %v1657 = vmul.f32 %v1458, %v1655
        %v1658 = vrcp.pop %v1564
        %v1659 = vmul.f32 %v1460, %v1658
        %v1660 = vmul.f32 %v1462, %v1658
        %v1661 = vrcp.pop %v1567
        %v1662 = vmul.f32 %v1464, %v1661
        %v1663 = vmul.f32 %v1466, %v1661
        %v1664 = vrcp.pop %v1570
        %v1665 = vmul.f32 %v1468, %v1664
        %v1666 = vmul.f32 %v1470, %v1664
        %v1667 = vrcp.pop %v1573
        %v1668 = vmul.f32 %v1472, %v1667
        %v1669 = vmul.f32 %v1474, %v1667
        %v1670 = vrcp.pop %v1576
        %v1671 = vmul.f32 %v1476, %v1670
        %v1672 = vmul.f32 %v1478, %v1670
        %v1673 = vrcp.pop %v1579
        %v1674 = vmul.f32 %v1480, %v1673
        %v1675 = vmul.f32 %v1482, %v1673
        %v1676 = vrcp.pop %v1582
        %v1677 = vmul.f32 %v1484, %v1676
        %v1678 = vmul.f32 %v1486, %v1676
        %1679 = vmatprep.subr.mxu0 %v1630
        %1680 = vmatpush1.xpose.msra.mxu0 %v1629
        %1681 = vmatprep.subr.mxu0 %v1627
        %1682 = vmatpush1.xpose.msra.mxu0 %v1626
        %1683 = vmatprep.subr.mxu0 %v1624
        %1684 = vmatpush1.xpose.msra.mxu0 %v1623
        %1685 = vmatprep.subr.mxu0 %v1621
        %1686 = vmatpush1.xpose.msra.mxu0 %v1620
        %1687 = vmatprep.subr.mxu0 %v1618
        %1688 = vmatpush1.xpose.msra.mxu0 %v1617
        %1689 = vmatprep.subr.mxu0 %v1615
        %1690 = vmatpush1.xpose.msra.mxu0 %v1614
        %1691 = vmatprep.subr.mxu0 %v1612
        %1692 = vmatpush1.xpose.msra.mxu0 %v1611
        %1693 = vmatprep.subr.mxu0 %v1609
        %1694 = vmatpush1.xpose.msra.mxu0 %v1608
        %1695 = vmatprep.subr.mxu0 %v1606
        %1696 = vmatpush1.xpose.msra.mxu0 %v1605
        %1697 = vmatprep.subr.mxu0 %v1603
        %1698 = vmatpush1.xpose.msra.mxu0 %v1602
        %1699 = vmatprep.subr.mxu0 %v1600
        %1700 = vmatpush1.xpose.msra.mxu0 %v1599
        %1701 = vmatprep.subr.mxu0 %v1597
        %1702 = vmatpush1.xpose.msra.mxu0 %v1596
        %1703 = vmatprep.subr.mxu0 %v1594
        %1704 = vmatpush1.xpose.msra.mxu0 %v1593
        %1705 = vmatprep.subr.mxu0 %v1591
        %1706 = vmatpush1.xpose.msra.mxu0 %v1590
        %1707 = vmatprep.subr.mxu0 %v1588
        %1708 = vmatpush1.xpose.msra.mxu0 %v1587
        %1709 = vmatprep.subr.mxu0 %v1585
        %1710 = vmatpush1.xpose.msra.mxu0 %v1584
        %1711 = vmatprep.subr.mxu0 %v1678
        %1712 = vmatpush2.xpose.msra.mxu0 %v1677
        %1713 = vmatprep.subr.mxu0 %v1675
        %1714 = vmatpush2.xpose.msra.mxu0 %v1674
        %1715 = vmatprep.subr.mxu0 %v1672
        %1716 = vmatpush2.xpose.msra.mxu0 %v1671
        %1717 = vmatprep.subr.mxu0 %v1669
        %1718 = vmatpush2.xpose.msra.mxu0 %v1668
        %1719 = vmatprep.subr.mxu0 %v1666
        %1720 = vmatpush2.xpose.msra.mxu0 %v1665
        %1721 = vmatprep.subr.mxu0 %v1663
        %1722 = vmatpush2.xpose.msra.mxu0 %v1662
        %1723 = vmatprep.subr.mxu0 %v1660
        %1724 = vmatpush2.xpose.msra.mxu0 %v1659
        %1725 = vmatprep.subr.mxu0 %v1657
        %1726 = vmatpush2.xpose.msra.mxu0 %v1656
        %1727 = vmatprep.subr.mxu0 %v1654
        %1728 = vmatpush2.xpose.msra.mxu0 %v1653
        %1729 = vmatprep.subr.mxu0 %v1651
        %1730 = vmatpush2.xpose.msra.mxu0 %v1650
        %1731 = vmatprep.subr.mxu0 %v1648
        %1732 = vmatpush2.xpose.msra.mxu0 %v1647
        %1733 = vmatprep.subr.mxu0 %v1645
        %1734 = vmatpush2.xpose.msra.mxu0 %v1644
        %1735 = vmatprep.subr.mxu0 %v1642
        %1736 = vmatpush2.xpose.msra.mxu0 %v1641
        %1737 = vmatprep.subr.mxu0 %v1639
        %1738 = vmatpush2.xpose.msra.mxu0 %v1638
        %1739 = vmatprep.subr.mxu0 %v1636
        %1740 = vmatpush2.xpose.msra.mxu0 %v1635
        %1741 = vmatprep.subr.mxu0 %v1633
        %1742 = vmatpush2.xpose.msra.mxu0 %v1632
        %1743 = vmatprep.mubr.f32.mxu0 %v658
        %1744 = vmatmul.mubr.f32.gmra.mxu0 %v656
        %v1745 = vpop.f32.mrf.mxu0
        %v1746 = vadd.f32 0.0, %v1745
        %v1747 = vpop.f32.mrf.mxu0
        %v1748 = vadd.f32 0.0, %v1747
        %1749 = vmatprep.mubr.f32.mxu0 %v664
        %1750 = vmatmul.mubr.f32.gmra.mxu0 %v662
        %v1751 = vpop.f32.mrf.mxu0
        %v1752 = vadd.f32 0.0, %v1751
        %v1753 = vpop.f32.mrf.mxu0
        %v1754 = vadd.f32 0.0, %v1753
        %1755 = vmatprep.mubr.f32.mxu0 %v670
        %1756 = vmatmul.mubr.f32.gmra.mxu0 %v668
        %v1757 = vpop.f32.mrf.mxu0
        %v1758 = vadd.f32 0.0, %v1757
        %v1759 = vpop.f32.mrf.mxu0
        %v1760 = vadd.f32 0.0, %v1759
        %1761 = vmatprep.mubr.f32.mxu0 %v676
        %1762 = vmatmul.mubr.f32.gmra.mxu0 %v674
        %v1763 = vpop.f32.mrf.mxu0
        %v1764 = vadd.f32 0.0, %v1763
        %v1765 = vpop.f32.mrf.mxu0
        %v1766 = vadd.f32 0.0, %v1765
        %1767 = vdwg.mxu0
        %1768 = vxpose.xlu0.b32.start [1/16] %v488, 128
        %1769 = vxpose.xlu0.b32.cont [2/16] %v494, 128
        %1770 = vxpose.xlu0.b32.cont [3/16] %v500, 128
        %1771 = vxpose.xlu0.b32.cont [4/16] %v506, 128
        %1772 = vxpose.xlu0.b32.cont [5/16] 0.0, 128
        %1773 = vxpose.xlu0.b32.cont [6/16] 0.0, 128
        %1774 = vxpose.xlu0.b32.cont [7/16] 0.0, 128
        %1775 = vxpose.xlu0.b32.cont [8/16] 0.0, 128
        %1776 = vxpose.xlu0.b32.cont [9/16] 0.0, 128
        %1777 = vxpose.xlu0.b32.cont [10/16] 0.0, 128
        %1778 = vxpose.xlu0.b32.cont [11/16] 0.0, 128
        %1779 = vxpose.xlu0.b32.cont [12/16] 0.0, 128
        %1780 = vxpose.xlu0.b32.cont [13/16] 0.0, 128
        %1781 = vxpose.xlu0.b32.cont [14/16] 0.0, 128
        %1782 = vxpose.xlu0.b32.cont [15/16] 0.0, 128
        %1783 = vxpose.xlu0.b32.end [16/16] 0.0, 128
        %v1784 = vpop.trf.xlu0
        %v1785 = vpop.trf.xlu0
        %v1786 = vpop.trf.xlu0
        %v1787 = vpop.trf.xlu0
        %v1788 = vpop.trf.xlu0
        %v1789 = vpop.trf.xlu0
        %v1790 = vpop.trf.xlu0
        %v1791 = vpop.trf.xlu0
        %v1792 = vpop.trf.xlu0
        %v1793 = vpop.trf.xlu0
        %v1794 = vpop.trf.xlu0
        %v1795 = vpop.trf.xlu0
        %v1796 = vpop.trf.xlu0
        %v1797 = vpop.trf.xlu0
        %v1798 = vpop.trf.xlu0
        %v1799 = vpop.trf.xlu0
        %1800 = vxpose.xlu0.b32.start [1/16] %v490, 128
        %1801 = vxpose.xlu0.b32.cont [2/16] %v496, 128
        %1802 = vxpose.xlu0.b32.cont [3/16] %v502, 128
        %1803 = vxpose.xlu0.b32.cont [4/16] %v508, 128
        %1804 = vxpose.xlu0.b32.cont [5/16] 0.0, 128
        %1805 = vxpose.xlu0.b32.cont [6/16] 0.0, 128
        %1806 = vxpose.xlu0.b32.cont [7/16] 0.0, 128
        %1807 = vxpose.xlu0.b32.cont [8/16] 0.0, 128
        %1808 = vxpose.xlu0.b32.cont [9/16] 0.0, 128
        %1809 = vxpose.xlu0.b32.cont [10/16] 0.0, 128
        %1810 = vxpose.xlu0.b32.cont [11/16] 0.0, 128
        %1811 = vxpose.xlu0.b32.cont [12/16] 0.0, 128
        %1812 = vxpose.xlu0.b32.cont [13/16] 0.0, 128
        %1813 = vxpose.xlu0.b32.cont [14/16] 0.0, 128
        %1814 = vxpose.xlu0.b32.cont [15/16] 0.0, 128
        %1815 = vxpose.xlu0.b32.end [16/16] 0.0, 128
        %v1816 = vpop.trf.xlu0
        %v1817 = vpop.trf.xlu0
        %v1818 = vpop.trf.xlu0
        %v1819 = vpop.trf.xlu0
        %v1820 = vpop.trf.xlu0
        %v1821 = vpop.trf.xlu0
        %v1822 = vpop.trf.xlu0
        %v1823 = vpop.trf.xlu0
        %v1824 = vpop.trf.xlu0
        %v1825 = vpop.trf.xlu0
        %v1826 = vpop.trf.xlu0
        %v1827 = vpop.trf.xlu0
        %v1828 = vpop.trf.xlu0
        %v1829 = vpop.trf.xlu0
        %v1830 = vpop.trf.xlu0
        %v1831 = vpop.trf.xlu0
        %v1832 = vmul.f32 %v1784, 0.17677669
        %v1833 = vmul.f32 %v1785, 0.17677669
        %v1834 = vmul.f32 %v1786, 0.17677669
        %v1835 = vmul.f32 %v1787, 0.17677669
        %v1836 = vmul.f32 %v1788, 0.17677669
        %v1837 = vmul.f32 %v1789, 0.17677669
        %v1838 = vmul.f32 %v1790, 0.17677669
        %v1839 = vmul.f32 %v1791, 0.17677669
        %v1840 = vmul.f32 %v1792, 0.17677669
        %v1841 = vmul.f32 %v1793, 0.17677669
        %v1842 = vmul.f32 %v1794, 0.17677669
        %v1843 = vmul.f32 %v1795, 0.17677669
        %v1844 = vmul.f32 %v1796, 0.17677669
        %v1845 = vmul.f32 %v1797, 0.17677669
        %v1846 = vmul.f32 %v1798, 0.17677669
        %v1847 = vmul.f32 %v1799, 0.17677669
        %v1848 = vmul.f32 %v1816, 0.17677669
        %v1849 = vmul.f32 %v1817, 0.17677669
        %v1850 = vmul.f32 %v1818, 0.17677669
        %v1851 = vmul.f32 %v1819, 0.17677669
        %v1852 = vmul.f32 %v1820, 0.17677669
        %v1853 = vmul.f32 %v1821, 0.17677669
        %v1854 = vmul.f32 %v1822, 0.17677669
        %v1855 = vmul.f32 %v1823, 0.17677669
        %v1856 = vmul.f32 %v1824, 0.17677669
        %v1857 = vmul.f32 %v1825, 0.17677669
        %v1858 = vmul.f32 %v1826, 0.17677669
        %v1859 = vmul.f32 %v1827, 0.17677669
        %v1860 = vmul.f32 %v1828, 0.17677669
        %v1861 = vmul.f32 %v1829, 0.17677669
        %v1862 = vmul.f32 %v1830, 0.17677669
        %v1863 = vmul.f32 %v1831, 0.17677669
        %v1865 = vsel %vm252, %v1832, 0
        %v1868 = vsel %vm252, %v1833, 0
        %v1871 = vsel %vm252, %v1834, 0
        %v1874 = vsel %vm252, %v1835, 0
        %v1877 = vsel %vm252, %v1836, 0
        %v1880 = vsel %vm252, %v1837, 0
        %v1883 = vsel %vm252, %v1838, 0
        %v1886 = vsel %vm252, %v1839, 0
        %v1889 = vsel %vm252, %v1840, 0
        %v1892 = vsel %vm252, %v1841, 0
        %v1895 = vsel %vm252, %v1842, 0
        %v1898 = vsel %vm252, %v1843, 0
        %v1901 = vsel %vm252, %v1844, 0
        %v1904 = vsel %vm252, %v1845, 0
        %v1907 = vsel %vm252, %v1846, 0
        %v1910 = vsel %vm252, %v1847, 0
        %v1913 = vsel %vm252, %v1848, 0
        %v1916 = vsel %vm252, %v1849, 0
        %v1919 = vsel %vm252, %v1850, 0
        %v1922 = vsel %vm252, %v1851, 0
        %v1925 = vsel %vm252, %v1852, 0
        %v1928 = vsel %vm252, %v1853, 0
        %v1931 = vsel %vm252, %v1854, 0
        %v1934 = vsel %vm252, %v1855, 0
        %v1937 = vsel %vm252, %v1856, 0
        %v1940 = vsel %vm252, %v1857, 0
        %v1943 = vsel %vm252, %v1858, 0
        %v1946 = vsel %vm252, %v1859, 0
        %v1949 = vsel %vm252, %v1860, 0
        %v1952 = vsel %vm252, %v1861, 0
        %v1955 = vsel %vm252, %v1862, 0
        %v1958 = vsel %vm252, %v1863, 0
        %1960 = vmatprep.subr.mxu0 0.0
        %1961 = vmatpush1.msra.mxu0 0.0
        %1962 = vmatprep.subr.mxu0 0.0
        %1963 = vmatpush1.msra.mxu0 0.0
        %1964 = vmatprep.subr.mxu0 0.0
        %1965 = vmatpush1.msra.mxu0 0.0
        %1966 = vmatprep.subr.mxu0 0.0
        %1967 = vmatpush1.msra.mxu0 0.0
        %1968 = vmatprep.subr.mxu0 0.0
        %1969 = vmatpush1.msra.mxu0 0.0
        %1970 = vmatprep.subr.mxu0 0.0
        %1971 = vmatpush1.msra.mxu0 0.0
        %1972 = vmatprep.subr.mxu0 0.0
        %1973 = vmatpush1.msra.mxu0 0.0
        %1974 = vmatprep.subr.mxu0 0.0
        %1975 = vmatpush1.msra.mxu0 0.0
        %1976 = vmatprep.subr.mxu0 0.0
        %1977 = vmatpush1.msra.mxu0 0.0
        %1978 = vmatprep.subr.mxu0 0.0
        %1979 = vmatpush1.msra.mxu0 0.0
        %1980 = vmatprep.subr.mxu0 0.0
        %1981 = vmatpush1.msra.mxu0 0.0
        %1982 = vmatprep.subr.mxu0 0.0
        %1983 = vmatpush1.msra.mxu0 0.0
        %1984 = vmatprep.subr.mxu0 %v604
        %1985 = vmatpush1.msra.mxu0 %v602
        %1986 = vmatprep.subr.mxu0 %v598
        %1987 = vmatpush1.msra.mxu0 %v596
        %1988 = vmatprep.subr.mxu0 %v592
        %1989 = vmatpush1.msra.mxu0 %v590
        %1990 = vmatprep.subr.mxu0 %v586
        %1991 = vmatpush1.msra.mxu0 %v584
        %1992 = vmatprep.subr.mxu0 0.0
        %1993 = vmatpush2.msra.mxu0 0.0
        %1994 = vmatprep.subr.mxu0 0.0
        %1995 = vmatpush2.msra.mxu0 0.0
        %1996 = vmatprep.subr.mxu0 0.0
        %1997 = vmatpush2.msra.mxu0 0.0
        %1998 = vmatprep.subr.mxu0 0.0
        %1999 = vmatpush2.msra.mxu0 0.0
        %2000 = vmatprep.subr.mxu0 0.0
        %2001 = vmatpush2.msra.mxu0 0.0
        %2002 = vmatprep.subr.mxu0 0.0
        %2003 = vmatpush2.msra.mxu0 0.0
        %2004 = vmatprep.subr.mxu0 0.0
        %2005 = vmatpush2.msra.mxu0 0.0
        %2006 = vmatprep.subr.mxu0 0.0
        %2007 = vmatpush2.msra.mxu0 0.0
        %2008 = vmatprep.subr.mxu0 0.0
        %2009 = vmatpush2.msra.mxu0 0.0
        %2010 = vmatprep.subr.mxu0 0.0
        %2011 = vmatpush2.msra.mxu0 0.0
        %2012 = vmatprep.subr.mxu0 0.0
        %2013 = vmatpush2.msra.mxu0 0.0
        %2014 = vmatprep.subr.mxu0 0.0
        %2015 = vmatpush2.msra.mxu0 0.0
        %2016 = vmatprep.subr.mxu0 0.0
        %2017 = vmatpush2.msra.mxu0 0.0
        %2018 = vmatprep.subr.mxu0 0.0
        %2019 = vmatpush2.msra.mxu0 0.0
        %2020 = vmatprep.subr.mxu0 0.0
        %2021 = vmatpush2.msra.mxu0 0.0
        %2022 = vmatprep.subr.mxu0 0.0
        %2023 = vmatpush2.msra.mxu0 0.0
        %2024 = vmatprep.mubr.f32.mxu0 0.0
        %2025 = vmatmul.mubr.f32.gmra.mxu0 %v1865
        %v2026 = vpop.f32.mrf.mxu0
        %v2027 = vadd.f32 0.0, %v2026
        %v2028 = vpop.f32.mrf.mxu0
        %v2029 = vadd.f32 0.0, %v2028
        %2030 = vmatprep.mubr.f32.mxu0 0.0
        %2031 = vmatmul.mubr.f32.gmra.mxu0 %v1868
        %v2032 = vpop.f32.mrf.mxu0
        %v2033 = vadd.f32 0.0, %v2032
        %v2034 = vpop.f32.mrf.mxu0
        %v2035 = vadd.f32 0.0, %v2034
        %2036 = vmatprep.mubr.f32.mxu0 0.0
        %2037 = vmatmul.mubr.f32.gmra.mxu0 %v1871
        %v2038 = vpop.f32.mrf.mxu0
        %v2039 = vadd.f32 0.0, %v2038
        %v2040 = vpop.f32.mrf.mxu0
        %v2041 = vadd.f32 0.0, %v2040
        %2042 = vmatprep.mubr.f32.mxu0 0.0
        %2043 = vmatmul.mubr.f32.gmra.mxu0 %v1874
        %v2044 = vpop.f32.mrf.mxu0
        %v2045 = vadd.f32 0.0, %v2044
        %v2046 = vpop.f32.mrf.mxu0
        %v2047 = vadd.f32 0.0, %v2046
        %2048 = vmatprep.mubr.f32.mxu0 0.0
        %2049 = vmatmul.mubr.f32.gmra.mxu0 %v1877
        %v2050 = vpop.f32.mrf.mxu0
        %v2051 = vadd.f32 0.0, %v2050
        %v2052 = vpop.f32.mrf.mxu0
        %v2053 = vadd.f32 0.0, %v2052
        %2054 = vmatprep.mubr.f32.mxu0 0.0
        %2055 = vmatmul.mubr.f32.gmra.mxu0 %v1880
        %v2056 = vpop.f32.mrf.mxu0
        %v2057 = vadd.f32 0.0, %v2056
        %v2058 = vpop.f32.mrf.mxu0
        %v2059 = vadd.f32 0.0, %v2058
        %2060 = vmatprep.mubr.f32.mxu0 0.0
        %2061 = vmatmul.mubr.f32.gmra.mxu0 %v1883
        %v2062 = vpop.f32.mrf.mxu0
        %v2063 = vadd.f32 0.0, %v2062
        %v2064 = vpop.f32.mrf.mxu0
        %v2065 = vadd.f32 0.0, %v2064
        %2066 = vmatprep.mubr.f32.mxu0 0.0
        %2067 = vmatmul.mubr.f32.gmra.mxu0 %v1886
        %v2068 = vpop.f32.mrf.mxu0
        %v2069 = vadd.f32 0.0, %v2068
        %v2070 = vpop.f32.mrf.mxu0
        %v2071 = vadd.f32 0.0, %v2070
        %2072 = vmatprep.mubr.f32.mxu0 0.0
        %2073 = vmatmul.mubr.f32.gmra.mxu0 %v1889
        %v2074 = vpop.f32.mrf.mxu0
        %v2075 = vadd.f32 0.0, %v2074
        %v2076 = vpop.f32.mrf.mxu0
        %v2077 = vadd.f32 0.0, %v2076
        %2078 = vmatprep.mubr.f32.mxu0 0.0
        %2079 = vmatmul.mubr.f32.gmra.mxu0 %v1892
        %v2080 = vpop.f32.mrf.mxu0
        %v2081 = vadd.f32 0.0, %v2080
        %v2082 = vpop.f32.mrf.mxu0
        %v2083 = vadd.f32 0.0, %v2082
        %2084 = vmatprep.mubr.f32.mxu0 0.0
        %2085 = vmatmul.mubr.f32.gmra.mxu0 %v1895
        %v2086 = vpop.f32.mrf.mxu0
        %v2087 = vadd.f32 0.0, %v2086
        %v2088 = vpop.f32.mrf.mxu0
        %v2089 = vadd.f32 0.0, %v2088
        %2090 = vmatprep.mubr.f32.mxu0 0.0
        %2091 = vmatmul.mubr.f32.gmra.mxu0 %v1898
        %v2092 = vpop.f32.mrf.mxu0
        %v2093 = vadd.f32 0.0, %v2092
        %v2094 = vpop.f32.mrf.mxu0
        %v2095 = vadd.f32 0.0, %v2094
        %2096 = vmatprep.mubr.f32.mxu0 0.0
        %2097 = vmatmul.mubr.f32.gmra.mxu0 %v1901
        %v2098 = vpop.f32.mrf.mxu0
        %v2099 = vadd.f32 0.0, %v2098
        %v2100 = vpop.f32.mrf.mxu0
        %v2101 = vadd.f32 0.0, %v2100
        %2102 = vmatprep.mubr.f32.mxu0 0.0
        %2103 = vmatmul.mubr.f32.gmra.mxu0 %v1904
        %v2104 = vpop.f32.mrf.mxu0
        %v2105 = vadd.f32 0.0, %v2104
        %v2106 = vpop.f32.mrf.mxu0
        %v2107 = vadd.f32 0.0, %v2106
        %2108 = vmatprep.mubr.f32.mxu0 0.0
        %2109 = vmatmul.mubr.f32.gmra.mxu0 %v1907
        %v2110 = vpop.f32.mrf.mxu0
        %v2111 = vadd.f32 0.0, %v2110
        %v2112 = vpop.f32.mrf.mxu0
        %v2113 = vadd.f32 0.0, %v2112
        %2114 = vmatprep.mubr.f32.mxu0 0.0
        %2115 = vmatmul.mubr.f32.gmra.mxu0 %v1910
        %v2116 = vpop.f32.mrf.mxu0
        %v2117 = vadd.f32 0.0, %v2116
        %v2118 = vpop.f32.mrf.mxu0
        %v2119 = vadd.f32 0.0, %v2118
        %2120 = vmatprep.mubr.f32.mxu0 0.0
        %2121 = vmatmul.mubr.f32.gmra.mxu0 %v1913
        %v2122 = vpop.f32.mrf.mxu0
        %v2123 = vadd.f32 0.0, %v2122
        %v2124 = vpop.f32.mrf.mxu0
        %v2125 = vadd.f32 0.0, %v2124
        %2126 = vmatprep.mubr.f32.mxu0 0.0
        %2127 = vmatmul.mubr.f32.gmra.mxu0 %v1916
        %v2128 = vpop.f32.mrf.mxu0
        %v2129 = vadd.f32 0.0, %v2128
        %v2130 = vpop.f32.mrf.mxu0
        %v2131 = vadd.f32 0.0, %v2130
        %2132 = vmatprep.mubr.f32.mxu0 0.0
        %2133 = vmatmul.mubr.f32.gmra.mxu0 %v1919
        %v2134 = vpop.f32.mrf.mxu0
        %v2135 = vadd.f32 0.0, %v2134
        %v2136 = vpop.f32.mrf.mxu0
        %v2137 = vadd.f32 0.0, %v2136
        %2138 = vmatprep.mubr.f32.mxu0 0.0
        %2139 = vmatmul.mubr.f32.gmra.mxu0 %v1922
        %v2140 = vpop.f32.mrf.mxu0
        %v2141 = vadd.f32 0.0, %v2140
        %v2142 = vpop.f32.mrf.mxu0
        %v2143 = vadd.f32 0.0, %v2142
        %2144 = vmatprep.mubr.f32.mxu0 0.0
        %2145 = vmatmul.mubr.f32.gmra.mxu0 %v1925
        %v2146 = vpop.f32.mrf.mxu0
        %v2147 = vadd.f32 0.0, %v2146
        %v2148 = vpop.f32.mrf.mxu0
        %v2149 = vadd.f32 0.0, %v2148
        %2150 = vmatprep.mubr.f32.mxu0 0.0
        %2151 = vmatmul.mubr.f32.gmra.mxu0 %v1928
        %v2152 = vpop.f32.mrf.mxu0
        %v2153 = vadd.f32 0.0, %v2152
        %v2154 = vpop.f32.mrf.mxu0
        %v2155 = vadd.f32 0.0, %v2154
        %2156 = vmatprep.mubr.f32.mxu0 0.0
        %2157 = vmatmul.mubr.f32.gmra.mxu0 %v1931
        %v2158 = vpop.f32.mrf.mxu0
        %v2159 = vadd.f32 0.0, %v2158
        %v2160 = vpop.f32.mrf.mxu0
        %v2161 = vadd.f32 0.0, %v2160
        %2162 = vmatprep.mubr.f32.mxu0 0.0
        %2163 = vmatmul.mubr.f32.gmra.mxu0 %v1934
        %v2164 = vpop.f32.mrf.mxu0
        %v2165 = vadd.f32 0.0, %v2164
        %v2166 = vpop.f32.mrf.mxu0
        %v2167 = vadd.f32 0.0, %v2166
        %2168 = vmatprep.mubr.f32.mxu0 0.0
        %2169 = vmatmul.mubr.f32.gmra.mxu0 %v1937
        %v2170 = vpop.f32.mrf.mxu0
        %v2171 = vadd.f32 0.0, %v2170
        %v2172 = vpop.f32.mrf.mxu0
        %v2173 = vadd.f32 0.0, %v2172
        %2174 = vmatprep.mubr.f32.mxu0 0.0
        %2175 = vmatmul.mubr.f32.gmra.mxu0 %v1940
        %v2176 = vpop.f32.mrf.mxu0
        %v2177 = vadd.f32 0.0, %v2176
        %v2178 = vpop.f32.mrf.mxu0
        %v2179 = vadd.f32 0.0, %v2178
        %2180 = vmatprep.mubr.f32.mxu0 0.0
        %2181 = vmatmul.mubr.f32.gmra.mxu0 %v1943
        %v2182 = vpop.f32.mrf.mxu0
        %v2183 = vadd.f32 0.0, %v2182
        %v2184 = vpop.f32.mrf.mxu0
        %v2185 = vadd.f32 0.0, %v2184
        %2186 = vmatprep.mubr.f32.mxu0 0.0
        %2187 = vmatmul.mubr.f32.gmra.mxu0 %v1946
        %v2188 = vpop.f32.mrf.mxu0
        %v2189 = vadd.f32 0.0, %v2188
        %v2190 = vpop.f32.mrf.mxu0
        %v2191 = vadd.f32 0.0, %v2190
        %2192 = vmatprep.mubr.f32.mxu0 0.0
        %2193 = vmatmul.mubr.f32.gmra.mxu0 %v1949
        %v2194 = vpop.f32.mrf.mxu0
        %v2195 = vadd.f32 0.0, %v2194
        %v2196 = vpop.f32.mrf.mxu0
        %v2197 = vadd.f32 0.0, %v2196
        %2198 = vmatprep.mubr.f32.mxu0 0.0
        %2199 = vmatmul.mubr.f32.gmra.mxu0 %v1952
        %v2200 = vpop.f32.mrf.mxu0
        %v2201 = vadd.f32 0.0, %v2200
        %v2202 = vpop.f32.mrf.mxu0
        %v2203 = vadd.f32 0.0, %v2202
        %2204 = vmatprep.mubr.f32.mxu0 0.0
        %2205 = vmatmul.mubr.f32.gmra.mxu0 %v1955
        %v2206 = vpop.f32.mrf.mxu0
        %v2207 = vadd.f32 0.0, %v2206
        %v2208 = vpop.f32.mrf.mxu0
        %v2209 = vadd.f32 0.0, %v2208
        %2210 = vmatprep.mubr.f32.mxu0 0.0
        %2211 = vmatmul.mubr.f32.gmra.mxu0 %v1958
        %v2212 = vpop.f32.mrf.mxu0
        %v2213 = vadd.f32 0.0, %v2212
        %v2214 = vpop.f32.mrf.mxu0
        %v2215 = vadd.f32 0.0, %v2214
        %2216 = vdwg.mxu0
        %v2217 = vmax.f32 %v2027, %v2029
        %2218 = vmax.xlane.f32.xlu0 %v2217
        %v2219 = vpop.xlane.xlu0 %2218
        %v2220 = vmax.f32 %v2033, %v2035
        %2221 = vmax.xlane.f32.xlu0 %v2220
        %v2222 = vpop.xlane.xlu0 %2221
        %v2223 = vmax.f32 %v2039, %v2041
        %2224 = vmax.xlane.f32.xlu0 %v2223
        %v2225 = vpop.xlane.xlu0 %2224
        %v2226 = vmax.f32 %v2045, %v2047
        %2227 = vmax.xlane.f32.xlu0 %v2226
        %v2228 = vpop.xlane.xlu0 %2227
        %v2229 = vmax.f32 %v2051, %v2053
        %2230 = vmax.xlane.f32.xlu0 %v2229
        %v2231 = vpop.xlane.xlu0 %2230
        %v2232 = vmax.f32 %v2057, %v2059
        %2233 = vmax.xlane.f32.xlu0 %v2232
        %v2234 = vpop.xlane.xlu0 %2233
        %v2235 = vmax.f32 %v2063, %v2065
        %2236 = vmax.xlane.f32.xlu0 %v2235
        %v2237 = vpop.xlane.xlu0 %2236
        %v2238 = vmax.f32 %v2069, %v2071
        %2239 = vmax.xlane.f32.xlu0 %v2238
        %v2240 = vpop.xlane.xlu0 %2239
        %v2241 = vmax.f32 %v2075, %v2077
        %2242 = vmax.xlane.f32.xlu0 %v2241
        %v2243 = vpop.xlane.xlu0 %2242
        %v2244 = vmax.f32 %v2081, %v2083
        %2245 = vmax.xlane.f32.xlu0 %v2244
        %v2246 = vpop.xlane.xlu0 %2245
        %v2247 = vmax.f32 %v2087, %v2089
        %2248 = vmax.xlane.f32.xlu0 %v2247
        %v2249 = vpop.xlane.xlu0 %2248
        %v2250 = vmax.f32 %v2093, %v2095
        %2251 = vmax.xlane.f32.xlu0 %v2250
        %v2252 = vpop.xlane.xlu0 %2251
        %v2253 = vmax.f32 %v2099, %v2101
        %2254 = vmax.xlane.f32.xlu0 %v2253
        %v2255 = vpop.xlane.xlu0 %2254
        %v2256 = vmax.f32 %v2105, %v2107
        %2257 = vmax.xlane.f32.xlu0 %v2256
        %v2258 = vpop.xlane.xlu0 %2257
        %v2259 = vmax.f32 %v2111, %v2113
        %2260 = vmax.xlane.f32.xlu0 %v2259
        %v2261 = vpop.xlane.xlu0 %2260
        %v2262 = vmax.f32 %v2117, %v2119
        %2263 = vmax.xlane.f32.xlu0 %v2262
        %v2264 = vpop.xlane.xlu0 %2263
        %v2265 = vmax.f32 %v2123, %v2125
        %2266 = vmax.xlane.f32.xlu0 %v2265
        %v2267 = vpop.xlane.xlu0 %2266
        %v2268 = vmax.f32 %v2129, %v2131
        %2269 = vmax.xlane.f32.xlu0 %v2268
        %v2270 = vpop.xlane.xlu0 %2269
        %v2271 = vmax.f32 %v2135, %v2137
        %2272 = vmax.xlane.f32.xlu0 %v2271
        %v2273 = vpop.xlane.xlu0 %2272
        %v2274 = vmax.f32 %v2141, %v2143
        %2275 = vmax.xlane.f32.xlu0 %v2274
        %v2276 = vpop.xlane.xlu0 %2275
        %v2277 = vmax.f32 %v2147, %v2149
        %2278 = vmax.xlane.f32.xlu0 %v2277
        %v2279 = vpop.xlane.xlu0 %2278
        %v2280 = vmax.f32 %v2153, %v2155
        %2281 = vmax.xlane.f32.xlu0 %v2280
        %v2282 = vpop.xlane.xlu0 %2281
        %v2283 = vmax.f32 %v2159, %v2161
        %2284 = vmax.xlane.f32.xlu0 %v2283
        %v2285 = vpop.xlane.xlu0 %2284
        %v2286 = vmax.f32 %v2165, %v2167
        %2287 = vmax.xlane.f32.xlu0 %v2286
        %v2288 = vpop.xlane.xlu0 %2287
        %v2289 = vmax.f32 %v2171, %v2173
        %2290 = vmax.xlane.f32.xlu0 %v2289
        %v2291 = vpop.xlane.xlu0 %2290
        %v2292 = vmax.f32 %v2177, %v2179
        %2293 = vmax.xlane.f32.xlu0 %v2292
        %v2294 = vpop.xlane.xlu0 %2293
        %v2295 = vmax.f32 %v2183, %v2185
        %2296 = vmax.xlane.f32.xlu0 %v2295
        %v2297 = vpop.xlane.xlu0 %2296
        %v2298 = vmax.f32 %v2189, %v2191
        %2299 = vmax.xlane.f32.xlu0 %v2298
        %v2300 = vpop.xlane.xlu0 %2299
        %v2301 = vmax.f32 %v2195, %v2197
        %2302 = vmax.xlane.f32.xlu0 %v2301
        %v2303 = vpop.xlane.xlu0 %2302
        %v2304 = vmax.f32 %v2201, %v2203
        %2305 = vmax.xlane.f32.xlu0 %v2304
        %v2306 = vpop.xlane.xlu0 %2305
        %v2307 = vmax.f32 %v2207, %v2209
        %2308 = vmax.xlane.f32.xlu0 %v2307
        %v2309 = vpop.xlane.xlu0 %2308
        %v2310 = vmax.f32 %v2213, %v2215
        %2311 = vmax.xlane.f32.xlu0 %v2310
        %v2312 = vpop.xlane.xlu0 %2311
        %v2313 = vsub.f32 %v2027, %v2219
        %v2314 = vsub.f32 %v2029, %v2219
        %v2315 = vsub.f32 %v2033, %v2222
        %v2316 = vsub.f32 %v2035, %v2222
        %v2317 = vsub.f32 %v2039, %v2225
        %v2318 = vsub.f32 %v2041, %v2225
        %v2319 = vsub.f32 %v2045, %v2228
        %v2320 = vsub.f32 %v2047, %v2228
        %v2321 = vsub.f32 %v2051, %v2231
        %v2322 = vsub.f32 %v2053, %v2231
        %v2323 = vsub.f32 %v2057, %v2234
        %v2324 = vsub.f32 %v2059, %v2234
        %v2325 = vsub.f32 %v2063, %v2237
        %v2326 = vsub.f32 %v2065, %v2237
        %v2327 = vsub.f32 %v2069, %v2240
        %v2328 = vsub.f32 %v2071, %v2240
        %v2329 = vsub.f32 %v2075, %v2243
        %v2330 = vsub.f32 %v2077, %v2243
        %v2331 = vsub.f32 %v2081, %v2246
        %v2332 = vsub.f32 %v2083, %v2246
        %v2333 = vsub.f32 %v2087, %v2249
        %v2334 = vsub.f32 %v2089, %v2249
        %v2335 = vsub.f32 %v2093, %v2252
        %v2336 = vsub.f32 %v2095, %v2252
        %v2337 = vsub.f32 %v2099, %v2255
        %v2338 = vsub.f32 %v2101, %v2255
        %v2339 = vsub.f32 %v2105, %v2258
        %v2340 = vsub.f32 %v2107, %v2258
        %v2341 = vsub.f32 %v2111, %v2261
        %v2342 = vsub.f32 %v2113, %v2261
        %v2343 = vsub.f32 %v2117, %v2264
        %v2344 = vsub.f32 %v2119, %v2264
        %v2345 = vsub.f32 %v2123, %v2267
        %v2346 = vsub.f32 %v2125, %v2267
        %v2347 = vsub.f32 %v2129, %v2270
        %v2348 = vsub.f32 %v2131, %v2270
        %v2349 = vsub.f32 %v2135, %v2273
        %v2350 = vsub.f32 %v2137, %v2273
        %v2351 = vsub.f32 %v2141, %v2276
        %v2352 = vsub.f32 %v2143, %v2276
        %v2353 = vsub.f32 %v2147, %v2279
        %v2354 = vsub.f32 %v2149, %v2279
        %v2355 = vsub.f32 %v2153, %v2282
        %v2356 = vsub.f32 %v2155, %v2282
        %v2357 = vsub.f32 %v2159, %v2285
        %v2358 = vsub.f32 %v2161, %v2285
        %v2359 = vsub.f32 %v2165, %v2288
        %v2360 = vsub.f32 %v2167, %v2288
        %v2361 = vsub.f32 %v2171, %v2291
        %v2362 = vsub.f32 %v2173, %v2291
        %v2363 = vsub.f32 %v2177, %v2294
        %v2364 = vsub.f32 %v2179, %v2294
        %v2365 = vsub.f32 %v2183, %v2297
        %v2366 = vsub.f32 %v2185, %v2297
        %v2367 = vsub.f32 %v2189, %v2300
        %v2368 = vsub.f32 %v2191, %v2300
        %v2369 = vsub.f32 %v2195, %v2303
        %v2370 = vsub.f32 %v2197, %v2303
        %v2371 = vsub.f32 %v2201, %v2306
        %v2372 = vsub.f32 %v2203, %v2306
        %v2373 = vsub.f32 %v2207, %v2309
        %v2374 = vsub.f32 %v2209, %v2309
        %v2375 = vsub.f32 %v2213, %v2312
        %v2376 = vsub.f32 %v2215, %v2312
        %v2377 = vmul.f32 %v2313, 1.442695
        %v2378 = vpow.pop %v2377
        %v2379 = vmul.f32 %v2314, 1.442695
        %v2380 = vpow.pop %v2379
        %v2381 = vmul.f32 %v2315, 1.442695
        %v2382 = vpow.pop %v2381
        %v2383 = vmul.f32 %v2316, 1.442695
        %v2384 = vpow.pop %v2383
        %v2385 = vmul.f32 %v2317, 1.442695
        %v2386 = vpow.pop %v2385
        %v2387 = vmul.f32 %v2318, 1.442695
        %v2388 = vpow.pop %v2387
        %v2389 = vmul.f32 %v2319, 1.442695
        %v2390 = vpow.pop %v2389
        %v2391 = vmul.f32 %v2320, 1.442695
        %v2392 = vpow.pop %v2391
        %v2393 = vmul.f32 %v2321, 1.442695
        %v2394 = vpow.pop %v2393
        %v2395 = vmul.f32 %v2322, 1.442695
        %v2396 = vpow.pop %v2395
        %v2397 = vmul.f32 %v2323, 1.442695
        %v2398 = vpow.pop %v2397
        %v2399 = vmul.f32 %v2324, 1.442695
        %v2400 = vpow.pop %v2399
        %v2401 = vmul.f32 %v2325, 1.442695
        %v2402 = vpow.pop %v2401
        %v2403 = vmul.f32 %v2326, 1.442695
        %v2404 = vpow.pop %v2403
        %v2405 = vmul.f32 %v2327, 1.442695
        %v2406 = vpow.pop %v2405
        %v2407 = vmul.f32 %v2328, 1.442695
        %v2408 = vpow.pop %v2407
        %v2409 = vmul.f32 %v2329, 1.442695
        %v2410 = vpow.pop %v2409
        %v2411 = vmul.f32 %v2330, 1.442695
        %v2412 = vpow.pop %v2411
        %v2413 = vmul.f32 %v2331, 1.442695
        %v2414 = vpow.pop %v2413
        %v2415 = vmul.f32 %v2332, 1.442695
        %v2416 = vpow.pop %v2415
        %v2417 = vmul.f32 %v2333, 1.442695
        %v2418 = vpow.pop %v2417
        %v2419 = vmul.f32 %v2334, 1.442695
        %v2420 = vpow.pop %v2419
        %v2421 = vmul.f32 %v2335, 1.442695
        %v2422 = vpow.pop %v2421
        %v2423 = vmul.f32 %v2336, 1.442695
        %v2424 = vpow.pop %v2423
        %v2425 = vmul.f32 %v2337, 1.442695
        %v2426 = vpow.pop %v2425
        %v2427 = vmul.f32 %v2338, 1.442695
        %v2428 = vpow.pop %v2427
        %v2429 = vmul.f32 %v2339, 1.442695
        %v2430 = vpow.pop %v2429
        %v2431 = vmul.f32 %v2340, 1.442695
        %v2432 = vpow.pop %v2431
        %v2433 = vmul.f32 %v2341, 1.442695
        %v2434 = vpow.pop %v2433
        %v2435 = vmul.f32 %v2342, 1.442695
        %v2436 = vpow.pop %v2435
        %v2437 = vmul.f32 %v2343, 1.442695
        %v2438 = vpow.pop %v2437
        %v2439 = vmul.f32 %v2344, 1.442695
        %v2440 = vpow.pop %v2439
        %v2441 = vmul.f32 %v2345, 1.442695
        %v2442 = vpow.pop %v2441
        %v2443 = vmul.f32 %v2346, 1.442695
        %v2444 = vpow.pop %v2443
        %v2445 = vmul.f32 %v2347, 1.442695
        %v2446 = vpow.pop %v2445
        %v2447 = vmul.f32 %v2348, 1.442695
        %v2448 = vpow.pop %v2447
        %v2449 = vmul.f32 %v2349, 1.442695
        %v2450 = vpow.pop %v2449
        %v2451 = vmul.f32 %v2350, 1.442695
        %v2452 = vpow.pop %v2451
        %v2453 = vmul.f32 %v2351, 1.442695
        %v2454 = vpow.pop %v2453
        %v2455 = vmul.f32 %v2352, 1.442695
        %v2456 = vpow.pop %v2455
        %v2457 = vmul.f32 %v2353, 1.442695
        %v2458 = vpow.pop %v2457
        %v2459 = vmul.f32 %v2354, 1.442695
        %v2460 = vpow.pop %v2459
        %v2461 = vmul.f32 %v2355, 1.442695
        %v2462 = vpow.pop %v2461
        %v2463 = vmul.f32 %v2356, 1.442695
        %v2464 = vpow.pop %v2463
        %v2465 = vmul.f32 %v2357, 1.442695
        %v2466 = vpow.pop %v2465
        %v2467 = vmul.f32 %v2358, 1.442695
        %v2468 = vpow.pop %v2467
        %v2469 = vmul.f32 %v2359, 1.442695
        %v2470 = vpow.pop %v2469
        %v2471 = vmul.f32 %v2360, 1.442695
        %v2472 = vpow.pop %v2471
        %v2473 = vmul.f32 %v2361, 1.442695
        %v2474 = vpow.pop %v2473
        %v2475 = vmul.f32 %v2362, 1.442695
        %v2476 = vpow.pop %v2475
        %v2477 = vmul.f32 %v2363, 1.442695
        %v2478 = vpow.pop %v2477
        %v2479 = vmul.f32 %v2364, 1.442695
        %v2480 = vpow.pop %v2479
        %v2481 = vmul.f32 %v2365, 1.442695
        %v2482 = vpow.pop %v2481
        %v2483 = vmul.f32 %v2366, 1.442695
        %v2484 = vpow.pop %v2483
        %v2485 = vmul.f32 %v2367, 1.442695
        %v2486 = vpow.pop %v2485
        %v2487 = vmul.f32 %v2368, 1.442695
        %v2488 = vpow.pop %v2487
        %v2489 = vmul.f32 %v2369, 1.442695
        %v2490 = vpow.pop %v2489
        %v2491 = vmul.f32 %v2370, 1.442695
        %v2492 = vpow.pop %v2491
        %v2493 = vmul.f32 %v2371, 1.442695
        %v2494 = vpow.pop %v2493
        %v2495 = vmul.f32 %v2372, 1.442695
        %v2496 = vpow.pop %v2495
        %v2497 = vmul.f32 %v2373, 1.442695
        %v2498 = vpow.pop %v2497
        %v2499 = vmul.f32 %v2374, 1.442695
        %v2500 = vpow.pop %v2499
        %v2501 = vmul.f32 %v2375, 1.442695
        %v2502 = vpow.pop %v2501
        %v2503 = vmul.f32 %v2376, 1.442695
        %v2504 = vpow.pop %v2503
        %v2505 = vadd.f32 %v2378, %v2380
        %2506 = vadd.xlane.f32.xlu0 %v2505
        %v2507 = vpop.xlane.xlu0 %2506
        %v2508 = vadd.f32 %v2382, %v2384
        %2509 = vadd.xlane.f32.xlu0 %v2508
        %v2510 = vpop.xlane.xlu0 %2509
        %v2511 = vadd.f32 %v2386, %v2388
        %2512 = vadd.xlane.f32.xlu0 %v2511
        %v2513 = vpop.xlane.xlu0 %2512
        %v2514 = vadd.f32 %v2390, %v2392
        %2515 = vadd.xlane.f32.xlu0 %v2514
        %v2516 = vpop.xlane.xlu0 %2515
        %v2517 = vadd.f32 %v2394, %v2396
        %2518 = vadd.xlane.f32.xlu0 %v2517
        %v2519 = vpop.xlane.xlu0 %2518
        %v2520 = vadd.f32 %v2398, %v2400
        %2521 = vadd.xlane.f32.xlu0 %v2520
        %v2522 = vpop.xlane.xlu0 %2521
        %v2523 = vadd.f32 %v2402, %v2404
        %2524 = vadd.xlane.f32.xlu0 %v2523
        %v2525 = vpop.xlane.xlu0 %2524
        %v2526 = vadd.f32 %v2406, %v2408
        %2527 = vadd.xlane.f32.xlu0 %v2526
        %v2528 = vpop.xlane.xlu0 %2527
        %v2529 = vadd.f32 %v2410, %v2412
        %2530 = vadd.xlane.f32.xlu0 %v2529
        %v2531 = vpop.xlane.xlu0 %2530
        %v2532 = vadd.f32 %v2414, %v2416
        %2533 = vadd.xlane.f32.xlu0 %v2532
        %v2534 = vpop.xlane.xlu0 %2533
        %v2535 = vadd.f32 %v2418, %v2420
        %2536 = vadd.xlane.f32.xlu0 %v2535
        %v2537 = vpop.xlane.xlu0 %2536
        %v2538 = vadd.f32 %v2422, %v2424
        %2539 = vadd.xlane.f32.xlu0 %v2538
        %v2540 = vpop.xlane.xlu0 %2539
        %v2541 = vadd.f32 %v2426, %v2428
        %2542 = vadd.xlane.f32.xlu0 %v2541
        %v2543 = vpop.xlane.xlu0 %2542
        %v2544 = vadd.f32 %v2430, %v2432
        %2545 = vadd.xlane.f32.xlu0 %v2544
        %v2546 = vpop.xlane.xlu0 %2545
        %v2547 = vadd.f32 %v2434, %v2436
        %2548 = vadd.xlane.f32.xlu0 %v2547
        %v2549 = vpop.xlane.xlu0 %2548
        %v2550 = vadd.f32 %v2438, %v2440
        %2551 = vadd.xlane.f32.xlu0 %v2550
        %v2552 = vpop.xlane.xlu0 %2551
        %v2553 = vadd.f32 %v2442, %v2444
        %2554 = vadd.xlane.f32.xlu0 %v2553
        %v2555 = vpop.xlane.xlu0 %2554
        %v2556 = vadd.f32 %v2446, %v2448
        %2557 = vadd.xlane.f32.xlu0 %v2556
        %v2558 = vpop.xlane.xlu0 %2557
        %v2559 = vadd.f32 %v2450, %v2452
        %2560 = vadd.xlane.f32.xlu0 %v2559
        %v2561 = vpop.xlane.xlu0 %2560
        %v2562 = vadd.f32 %v2454, %v2456
        %2563 = vadd.xlane.f32.xlu0 %v2562
        %v2564 = vpop.xlane.xlu0 %2563
        %v2565 = vadd.f32 %v2458, %v2460
        %2566 = vadd.xlane.f32.xlu0 %v2565
        %v2567 = vpop.xlane.xlu0 %2566
        %v2568 = vadd.f32 %v2462, %v2464
        %2569 = vadd.xlane.f32.xlu0 %v2568
        %v2570 = vpop.xlane.xlu0 %2569
        %v2571 = vadd.f32 %v2466, %v2468
        %2572 = vadd.xlane.f32.xlu0 %v2571
        %v2573 = vpop.xlane.xlu0 %2572
        %v2574 = vadd.f32 %v2470, %v2472
        %2575 = vadd.xlane.f32.xlu0 %v2574
        %v2576 = vpop.xlane.xlu0 %2575
        %v2577 = vadd.f32 %v2474, %v2476
        %2578 = vadd.xlane.f32.xlu0 %v2577
        %v2579 = vpop.xlane.xlu0 %2578
        %v2580 = vadd.f32 %v2478, %v2480
        %2581 = vadd.xlane.f32.xlu0 %v2580
        %v2582 = vpop.xlane.xlu0 %2581
        %v2583 = vadd.f32 %v2482, %v2484
        %2584 = vadd.xlane.f32.xlu0 %v2583
        %v2585 = vpop.xlane.xlu0 %2584
        %v2586 = vadd.f32 %v2486, %v2488
        %2587 = vadd.xlane.f32.xlu0 %v2586
        %v2588 = vpop.xlane.xlu0 %2587
        %v2589 = vadd.f32 %v2490, %v2492
        %2590 = vadd.xlane.f32.xlu0 %v2589
        %v2591 = vpop.xlane.xlu0 %2590
        %v2592 = vadd.f32 %v2494, %v2496
        %2593 = vadd.xlane.f32.xlu0 %v2592
        %v2594 = vpop.xlane.xlu0 %2593
        %v2595 = vadd.f32 %v2498, %v2500
        %2596 = vadd.xlane.f32.xlu0 %v2595
        %v2597 = vpop.xlane.xlu0 %2596
        %v2598 = vadd.f32 %v2502, %v2504
        %2599 = vadd.xlane.f32.xlu0 %v2598
        %v2600 = vpop.xlane.xlu0 %2599
        %v2601 = vrcp.pop %v2507
        %v2602 = vmul.f32 %v2378, %v2601
        %v2603 = vmul.f32 %v2380, %v2601
        %v2604 = vrcp.pop %v2510
        %v2605 = vmul.f32 %v2382, %v2604
        %v2606 = vmul.f32 %v2384, %v2604
        %v2607 = vrcp.pop %v2513
        %v2608 = vmul.f32 %v2386, %v2607
        %v2609 = vmul.f32 %v2388, %v2607
        %v2610 = vrcp.pop %v2516
        %v2611 = vmul.f32 %v2390, %v2610
        %v2612 = vmul.f32 %v2392, %v2610
        %v2613 = vrcp.pop %v2519
        %v2614 = vmul.f32 %v2394, %v2613
        %v2615 = vmul.f32 %v2396, %v2613
        %v2616 = vrcp.pop %v2522
        %v2617 = vmul.f32 %v2398, %v2616
        %v2618 = vmul.f32 %v2400, %v2616
        %v2619 = vrcp.pop %v2525
        %v2620 = vmul.f32 %v2402, %v2619
        %v2621 = vmul.f32 %v2404, %v2619
        %v2622 = vrcp.pop %v2528
        %v2623 = vmul.f32 %v2406, %v2622
        %v2624 = vmul.f32 %v2408, %v2622
        %v2625 = vrcp.pop %v2531
        %v2626 = vmul.f32 %v2410, %v2625
        %v2627 = vmul.f32 %v2412, %v2625
        %v2628 = vrcp.pop %v2534
        %v2629 = vmul.f32 %v2414, %v2628
        %v2630 = vmul.f32 %v2416, %v2628
        %v2631 = vrcp.pop %v2537
        %v2632 = vmul.f32 %v2418, %v2631
        %v2633 = vmul.f32 %v2420, %v2631
        %v2634 = vrcp.pop %v2540
        %v2635 = vmul.f32 %v2422, %v2634
        %v2636 = vmul.f32 %v2424, %v2634
        %v2637 = vrcp.pop %v2543
        %v2638 = vmul.f32 %v2426, %v2637
        %v2639 = vmul.f32 %v2428, %v2637
        %v2640 = vrcp.pop %v2546
        %v2641 = vmul.f32 %v2430, %v2640
        %v2642 = vmul.f32 %v2432, %v2640
        %v2643 = vrcp.pop %v2549
        %v2644 = vmul.f32 %v2434, %v2643
        %v2645 = vmul.f32 %v2436, %v2643
        %v2646 = vrcp.pop %v2552
        %v2647 = vmul.f32 %v2438, %v2646
        %v2648 = vmul.f32 %v2440, %v2646
        %v2649 = vrcp.pop %v2555
        %v2650 = vmul.f32 %v2442, %v2649
        %v2651 = vmul.f32 %v2444, %v2649
        %v2652 = vrcp.pop %v2558
        %v2653 = vmul.f32 %v2446, %v2652
        %v2654 = vmul.f32 %v2448, %v2652
        %v2655 = vrcp.pop %v2561
        %v2656 = vmul.f32 %v2450, %v2655
        %v2657 = vmul.f32 %v2452, %v2655
        %v2658 = vrcp.pop %v2564
        %v2659 = vmul.f32 %v2454, %v2658
        %v2660 = vmul.f32 %v2456, %v2658
        %v2661 = vrcp.pop %v2567
        %v2662 = vmul.f32 %v2458, %v2661
        %v2663 = vmul.f32 %v2460, %v2661
        %v2664 = vrcp.pop %v2570
        %v2665 = vmul.f32 %v2462, %v2664
        %v2666 = vmul.f32 %v2464, %v2664
        %v2667 = vrcp.pop %v2573
        %v2668 = vmul.f32 %v2466, %v2667
        %v2669 = vmul.f32 %v2468, %v2667
        %v2670 = vrcp.pop %v2576
        %v2671 = vmul.f32 %v2470, %v2670
        %v2672 = vmul.f32 %v2472, %v2670
        %v2673 = vrcp.pop %v2579
        %v2674 = vmul.f32 %v2474, %v2673
        %v2675 = vmul.f32 %v2476, %v2673
        %v2676 = vrcp.pop %v2582
        %v2677 = vmul.f32 %v2478, %v2676
        %v2678 = vmul.f32 %v2480, %v2676
        %v2679 = vrcp.pop %v2585
        %v2680 = vmul.f32 %v2482, %v2679
        %v2681 = vmul.f32 %v2484, %v2679
        %v2682 = vrcp.pop %v2588
        %v2683 = vmul.f32 %v2486, %v2682
        %v2684 = vmul.f32 %v2488, %v2682
        %v2685 = vrcp.pop %v2591
        %v2686 = vmul.f32 %v2490, %v2685
        %v2687 = vmul.f32 %v2492, %v2685
        %v2688 = vrcp.pop %v2594
        %v2689 = vmul.f32 %v2494, %v2688
        %v2690 = vmul.f32 %v2496, %v2688
        %v2691 = vrcp.pop %v2597
        %v2692 = vmul.f32 %v2498, %v2691
        %v2693 = vmul.f32 %v2500, %v2691
        %v2694 = vrcp.pop %v2600
        %v2695 = vmul.f32 %v2502, %v2694
        %v2696 = vmul.f32 %v2504, %v2694
        %2697 = vmatprep.subr.mxu0 %v2648
        %2698 = vmatpush1.xpose.msra.mxu0 %v2647
        %2699 = vmatprep.subr.mxu0 %v2645
        %2700 = vmatpush1.xpose.msra.mxu0 %v2644
        %2701 = vmatprep.subr.mxu0 %v2642
        %2702 = vmatpush1.xpose.msra.mxu0 %v2641
        %2703 = vmatprep.subr.mxu0 %v2639
        %2704 = vmatpush1.xpose.msra.mxu0 %v2638
        %2705 = vmatprep.subr.mxu0 %v2636
        %2706 = vmatpush1.xpose.msra.mxu0 %v2635
        %2707 = vmatprep.subr.mxu0 %v2633
        %2708 = vmatpush1.xpose.msra.mxu0 %v2632
        %2709 = vmatprep.subr.mxu0 %v2630
        %2710 = vmatpush1.xpose.msra.mxu0 %v2629
        %2711 = vmatprep.subr.mxu0 %v2627
        %2712 = vmatpush1.xpose.msra.mxu0 %v2626
        %2713 = vmatprep.subr.mxu0 %v2624
        %2714 = vmatpush1.xpose.msra.mxu0 %v2623
        %2715 = vmatprep.subr.mxu0 %v2621
        %2716 = vmatpush1.xpose.msra.mxu0 %v2620
        %2717 = vmatprep.subr.mxu0 %v2618
        %2718 = vmatpush1.xpose.msra.mxu0 %v2617
        %2719 = vmatprep.subr.mxu0 %v2615
        %2720 = vmatpush1.xpose.msra.mxu0 %v2614
        %2721 = vmatprep.subr.mxu0 %v2612
        %2722 = vmatpush1.xpose.msra.mxu0 %v2611
        %2723 = vmatprep.subr.mxu0 %v2609
        %2724 = vmatpush1.xpose.msra.mxu0 %v2608
        %2725 = vmatprep.subr.mxu0 %v2606
        %2726 = vmatpush1.xpose.msra.mxu0 %v2605
        %2727 = vmatprep.subr.mxu0 %v2603
        %2728 = vmatpush1.xpose.msra.mxu0 %v2602
        %2729 = vmatprep.subr.mxu0 %v2696
        %2730 = vmatpush2.xpose.msra.mxu0 %v2695
        %2731 = vmatprep.subr.mxu0 %v2693
        %2732 = vmatpush2.xpose.msra.mxu0 %v2692
        %2733 = vmatprep.subr.mxu0 %v2690
        %2734 = vmatpush2.xpose.msra.mxu0 %v2689
        %2735 = vmatprep.subr.mxu0 %v2687
        %2736 = vmatpush2.xpose.msra.mxu0 %v2686
        %2737 = vmatprep.subr.mxu0 %v2684
        %2738 = vmatpush2.xpose.msra.mxu0 %v2683
        %2739 = vmatprep.subr.mxu0 %v2681
        %2740 = vmatpush2.xpose.msra.mxu0 %v2680
        %2741 = vmatprep.subr.mxu0 %v2678
        %2742 = vmatpush2.xpose.msra.mxu0 %v2677
        %2743 = vmatprep.subr.mxu0 %v2675
        %2744 = vmatpush2.xpose.msra.mxu0 %v2674
        %2745 = vmatprep.subr.mxu0 %v2672
        %2746 = vmatpush2.xpose.msra.mxu0 %v2671
        %2747 = vmatprep.subr.mxu0 %v2669
        %2748 = vmatpush2.xpose.msra.mxu0 %v2668
        %2749 = vmatprep.subr.mxu0 %v2666
        %2750 = vmatpush2.xpose.msra.mxu0 %v2665
        %2751 = vmatprep.subr.mxu0 %v2663
        %2752 = vmatpush2.xpose.msra.mxu0 %v2662
        %2753 = vmatprep.subr.mxu0 %v2660
        %2754 = vmatpush2.xpose.msra.mxu0 %v2659
        %2755 = vmatprep.subr.mxu0 %v2657
        %2756 = vmatpush2.xpose.msra.mxu0 %v2656
        %2757 = vmatprep.subr.mxu0 %v2654
        %2758 = vmatpush2.xpose.msra.mxu0 %v2653
        %2759 = vmatprep.subr.mxu0 %v2651
        %2760 = vmatpush2.xpose.msra.mxu0 %v2650
        %2761 = vmatprep.mubr.f32.mxu0 %v682
        %2762 = vmatmul.mubr.f32.gmra.mxu0 %v680
        %v2763 = vpop.f32.mrf.mxu0
        %v2764 = vadd.f32 0.0, %v2763
        %v2765 = vpop.f32.mrf.mxu0
        %v2766 = vadd.f32 0.0, %v2765
        %2767 = vmatprep.mubr.f32.mxu0 %v688
        %2768 = vmatmul.mubr.f32.gmra.mxu0 %v686
        %v2769 = vpop.f32.mrf.mxu0
        %v2770 = vadd.f32 0.0, %v2769
        %v2771 = vpop.f32.mrf.mxu0
        %v2772 = vadd.f32 0.0, %v2771
        %2773 = vmatprep.mubr.f32.mxu0 %v694
        %2774 = vmatmul.mubr.f32.gmra.mxu0 %v692
        %v2775 = vpop.f32.mrf.mxu0
        %v2776 = vadd.f32 0.0, %v2775
        %v2777 = vpop.f32.mrf.mxu0
        %v2778 = vadd.f32 0.0, %v2777
        %2779 = vmatprep.mubr.f32.mxu0 %v700
        %2780 = vmatmul.mubr.f32.gmra.mxu0 %v698
        %v2781 = vpop.f32.mrf.mxu0
        %v2782 = vadd.f32 0.0, %v2781
        %v2783 = vpop.f32.mrf.mxu0
        %v2784 = vadd.f32 0.0, %v2783
        %2785 = vdwg.mxu0
        %2786 = vxpose.xlu0.b32.start [1/16] %v512, 128
        %2787 = vxpose.xlu0.b32.cont [2/16] %v518, 128
        %2788 = vxpose.xlu0.b32.cont [3/16] %v524, 128
        %2789 = vxpose.xlu0.b32.cont [4/16] %v530, 128
        %2790 = vxpose.xlu0.b32.cont [5/16] 0.0, 128
        %2791 = vxpose.xlu0.b32.cont [6/16] 0.0, 128
        %2792 = vxpose.xlu0.b32.cont [7/16] 0.0, 128
        %2793 = vxpose.xlu0.b32.cont [8/16] 0.0, 128
        %2794 = vxpose.xlu0.b32.cont [9/16] 0.0, 128
        %2795 = vxpose.xlu0.b32.cont [10/16] 0.0, 128
        %2796 = vxpose.xlu0.b32.cont [11/16] 0.0, 128
        %2797 = vxpose.xlu0.b32.cont [12/16] 0.0, 128
        %2798 = vxpose.xlu0.b32.cont [13/16] 0.0, 128
        %2799 = vxpose.xlu0.b32.cont [14/16] 0.0, 128
        %2800 = vxpose.xlu0.b32.cont [15/16] 0.0, 128
        %2801 = vxpose.xlu0.b32.end [16/16] 0.0, 128
        %v2802 = vpop.trf.xlu0
        %v2803 = vpop.trf.xlu0
        %v2804 = vpop.trf.xlu0
        %v2805 = vpop.trf.xlu0
        %v2806 = vpop.trf.xlu0
        %v2807 = vpop.trf.xlu0
        %v2808 = vpop.trf.xlu0
        %v2809 = vpop.trf.xlu0
        %v2810 = vpop.trf.xlu0
        %v2811 = vpop.trf.xlu0
        %v2812 = vpop.trf.xlu0
        %v2813 = vpop.trf.xlu0
        %v2814 = vpop.trf.xlu0
        %v2815 = vpop.trf.xlu0
        %v2816 = vpop.trf.xlu0
        %v2817 = vpop.trf.xlu0
        %2818 = vxpose.xlu0.b32.start [1/16] %v514, 128
        %2819 = vxpose.xlu0.b32.cont [2/16] %v520, 128
        %2820 = vxpose.xlu0.b32.cont [3/16] %v526, 128
        %2821 = vxpose.xlu0.b32.cont [4/16] %v532, 128
        %2822 = vxpose.xlu0.b32.cont [5/16] 0.0, 128
        %2823 = vxpose.xlu0.b32.cont [6/16] 0.0, 128
        %2824 = vxpose.xlu0.b32.cont [7/16] 0.0, 128
        %2825 = vxpose.xlu0.b32.cont [8/16] 0.0, 128
        %2826 = vxpose.xlu0.b32.cont [9/16] 0.0, 128
        %2827 = vxpose.xlu0.b32.cont [10/16] 0.0, 128
        %2828 = vxpose.xlu0.b32.cont [11/16] 0.0, 128
        %2829 = vxpose.xlu0.b32.cont [12/16] 0.0, 128
        %2830 = vxpose.xlu0.b32.cont [13/16] 0.0, 128
        %2831 = vxpose.xlu0.b32.cont [14/16] 0.0, 128
        %2832 = vxpose.xlu0.b32.cont [15/16] 0.0, 128
        %2833 = vxpose.xlu0.b32.end [16/16] 0.0, 128
        %v2834 = vpop.trf.xlu0
        %v2835 = vpop.trf.xlu0
        %v2836 = vpop.trf.xlu0
        %v2837 = vpop.trf.xlu0
        %v2838 = vpop.trf.xlu0
        %v2839 = vpop.trf.xlu0
        %v2840 = vpop.trf.xlu0
        %v2841 = vpop.trf.xlu0
        %v2842 = vpop.trf.xlu0
        %v2843 = vpop.trf.xlu0
        %v2844 = vpop.trf.xlu0
        %v2845 = vpop.trf.xlu0
        %v2846 = vpop.trf.xlu0
        %v2847 = vpop.trf.xlu0
        %v2848 = vpop.trf.xlu0
        %v2849 = vpop.trf.xlu0
        %v2850 = vmul.f32 %v2802, 0.17677669
        %v2851 = vmul.f32 %v2803, 0.17677669
        %v2852 = vmul.f32 %v2804, 0.17677669
        %v2853 = vmul.f32 %v2805, 0.17677669
        %v2854 = vmul.f32 %v2806, 0.17677669
        %v2855 = vmul.f32 %v2807, 0.17677669
        %v2856 = vmul.f32 %v2808, 0.17677669
        %v2857 = vmul.f32 %v2809, 0.17677669
        %v2858 = vmul.f32 %v2810, 0.17677669
        %v2859 = vmul.f32 %v2811, 0.17677669
        %v2860 = vmul.f32 %v2812, 0.17677669
        %v2861 = vmul.f32 %v2813, 0.17677669
        %v2862 = vmul.f32 %v2814, 0.17677669
        %v2863 = vmul.f32 %v2815, 0.17677669
        %v2864 = vmul.f32 %v2816, 0.17677669
        %v2865 = vmul.f32 %v2817, 0.17677669
        %v2866 = vmul.f32 %v2834, 0.17677669
        %v2867 = vmul.f32 %v2835, 0.17677669
        %v2868 = vmul.f32 %v2836, 0.17677669
        %v2869 = vmul.f32 %v2837, 0.17677669
        %v2870 = vmul.f32 %v2838, 0.17677669
        %v2871 = vmul.f32 %v2839, 0.17677669
        %v2872 = vmul.f32 %v2840, 0.17677669
        %v2873 = vmul.f32 %v2841, 0.17677669
        %v2874 = vmul.f32 %v2842, 0.17677669
        %v2875 = vmul.f32 %v2843, 0.17677669
        %v2876 = vmul.f32 %v2844, 0.17677669
        %v2877 = vmul.f32 %v2845, 0.17677669
        %v2878 = vmul.f32 %v2846, 0.17677669
        %v2879 = vmul.f32 %v2847, 0.17677669
        %v2880 = vmul.f32 %v2848, 0.17677669
        %v2881 = vmul.f32 %v2849, 0.17677669
        %v2883 = vsel %vm252, %v2850, 0
        %v2886 = vsel %vm252, %v2851, 0
        %v2889 = vsel %vm252, %v2852, 0
        %v2892 = vsel %vm252, %v2853, 0
        %v2895 = vsel %vm252, %v2854, 0
        %v2898 = vsel %vm252, %v2855, 0
        %v2901 = vsel %vm252, %v2856, 0
        %v2904 = vsel %vm252, %v2857, 0
        %v2907 = vsel %vm252, %v2858, 0
        %v2910 = vsel %vm252, %v2859, 0
        %v2913 = vsel %vm252, %v2860, 0
        %v2916 = vsel %vm252, %v2861, 0
        %v2919 = vsel %vm252, %v2862, 0
        %v2922 = vsel %vm252, %v2863, 0
        %v2925 = vsel %vm252, %v2864, 0
        %v2928 = vsel %vm252, %v2865, 0
        %v2931 = vsel %vm252, %v2866, 0
        %v2934 = vsel %vm252, %v2867, 0
        %v2937 = vsel %vm252, %v2868, 0
        %v2940 = vsel %vm252, %v2869, 0
        %v2943 = vsel %vm252, %v2870, 0
        %v2946 = vsel %vm252, %v2871, 0
        %v2949 = vsel %vm252, %v2872, 0
        %v2952 = vsel %vm252, %v2873, 0
        %v2955 = vsel %vm252, %v2874, 0
        %v2958 = vsel %vm252, %v2875, 0
        %v2961 = vsel %vm252, %v2876, 0
        %v2964 = vsel %vm252, %v2877, 0
        %v2967 = vsel %vm252, %v2878, 0
        %v2970 = vsel %vm252, %v2879, 0
        %v2973 = vsel %vm252, %v2880, 0
        %v2976 = vsel %vm252, %v2881, 0
        %2978 = vmatprep.subr.mxu0 0.0
        %2979 = vmatpush1.msra.mxu0 0.0
        %2980 = vmatprep.subr.mxu0 0.0
        %2981 = vmatpush1.msra.mxu0 0.0
        %2982 = vmatprep.subr.mxu0 0.0
        %2983 = vmatpush1.msra.mxu0 0.0
        %2984 = vmatprep.subr.mxu0 0.0
        %2985 = vmatpush1.msra.mxu0 0.0
        %2986 = vmatprep.subr.mxu0 0.0
        %2987 = vmatpush1.msra.mxu0 0.0
        %2988 = vmatprep.subr.mxu0 0.0
        %2989 = vmatpush1.msra.mxu0 0.0
        %2990 = vmatprep.subr.mxu0 0.0
        %2991 = vmatpush1.msra.mxu0 0.0
        %2992 = vmatprep.subr.mxu0 0.0
        %2993 = vmatpush1.msra.mxu0 0.0
        %2994 = vmatprep.subr.mxu0 0.0
        %2995 = vmatpush1.msra.mxu0 0.0
        %2996 = vmatprep.subr.mxu0 0.0
        %2997 = vmatpush1.msra.mxu0 0.0
        %2998 = vmatprep.subr.mxu0 0.0
        %2999 = vmatpush1.msra.mxu0 0.0
        %3000 = vmatprep.subr.mxu0 0.0
        %3001 = vmatpush1.msra.mxu0 0.0
        %3002 = vmatprep.subr.mxu0 %v628
        %3003 = vmatpush1.msra.mxu0 %v626
        %3004 = vmatprep.subr.mxu0 %v622
        %3005 = vmatpush1.msra.mxu0 %v620
        %3006 = vmatprep.subr.mxu0 %v616
        %3007 = vmatpush1.msra.mxu0 %v614
        %3008 = vmatprep.subr.mxu0 %v610
        %3009 = vmatpush1.msra.mxu0 %v608
        %3010 = vmatprep.subr.mxu0 0.0
        %3011 = vmatpush2.msra.mxu0 0.0
        %3012 = vmatprep.subr.mxu0 0.0
        %3013 = vmatpush2.msra.mxu0 0.0
        %3014 = vmatprep.subr.mxu0 0.0
        %3015 = vmatpush2.msra.mxu0 0.0
        %3016 = vmatprep.subr.mxu0 0.0
        %3017 = vmatpush2.msra.mxu0 0.0
        %3018 = vmatprep.subr.mxu0 0.0
        %3019 = vmatpush2.msra.mxu0 0.0
        %3020 = vmatprep.subr.mxu0 0.0
        %3021 = vmatpush2.msra.mxu0 0.0
        %3022 = vmatprep.subr.mxu0 0.0
        %3023 = vmatpush2.msra.mxu0 0.0
        %3024 = vmatprep.subr.mxu0 0.0
        %3025 = vmatpush2.msra.mxu0 0.0
        %3026 = vmatprep.subr.mxu0 0.0
        %3027 = vmatpush2.msra.mxu0 0.0
        %3028 = vmatprep.subr.mxu0 0.0
        %3029 = vmatpush2.msra.mxu0 0.0
        %3030 = vmatprep.subr.mxu0 0.0
        %3031 = vmatpush2.msra.mxu0 0.0
        %3032 = vmatprep.subr.mxu0 0.0
        %3033 = vmatpush2.msra.mxu0 0.0
        %3034 = vmatprep.subr.mxu0 0.0
        %3035 = vmatpush2.msra.mxu0 0.0
        %3036 = vmatprep.subr.mxu0 0.0
        %3037 = vmatpush2.msra.mxu0 0.0
        %3038 = vmatprep.subr.mxu0 0.0
        %3039 = vmatpush2.msra.mxu0 0.0
        %3040 = vmatprep.subr.mxu0 0.0
        %3041 = vmatpush2.msra.mxu0 0.0
        %3042 = vmatprep.mubr.f32.mxu0 0.0
        %3043 = vmatmul.mubr.f32.gmra.mxu0 %v2883
        %v3044 = vpop.f32.mrf.mxu0
        %v3045 = vadd.f32 0.0, %v3044
        %v3046 = vpop.f32.mrf.mxu0
        %v3047 = vadd.f32 0.0, %v3046
        %3048 = vmatprep.mubr.f32.mxu0 0.0
        %3049 = vmatmul.mubr.f32.gmra.mxu0 %v2886
        %v3050 = vpop.f32.mrf.mxu0
        %v3051 = vadd.f32 0.0, %v3050
        %v3052 = vpop.f32.mrf.mxu0
        %v3053 = vadd.f32 0.0, %v3052
        %3054 = vmatprep.mubr.f32.mxu0 0.0
        %3055 = vmatmul.mubr.f32.gmra.mxu0 %v2889
        %v3056 = vpop.f32.mrf.mxu0
        %v3057 = vadd.f32 0.0, %v3056
        %v3058 = vpop.f32.mrf.mxu0
        %v3059 = vadd.f32 0.0, %v3058
        %3060 = vmatprep.mubr.f32.mxu0 0.0
        %3061 = vmatmul.mubr.f32.gmra.mxu0 %v2892
        %v3062 = vpop.f32.mrf.mxu0
        %v3063 = vadd.f32 0.0, %v3062
        %v3064 = vpop.f32.mrf.mxu0
        %v3065 = vadd.f32 0.0, %v3064
        %3066 = vmatprep.mubr.f32.mxu0 0.0
        %3067 = vmatmul.mubr.f32.gmra.mxu0 %v2895
        %v3068 = vpop.f32.mrf.mxu0
        %v3069 = vadd.f32 0.0, %v3068
        %v3070 = vpop.f32.mrf.mxu0
        %v3071 = vadd.f32 0.0, %v3070
        %3072 = vmatprep.mubr.f32.mxu0 0.0
        %3073 = vmatmul.mubr.f32.gmra.mxu0 %v2898
        %v3074 = vpop.f32.mrf.mxu0
        %v3075 = vadd.f32 0.0, %v3074
        %v3076 = vpop.f32.mrf.mxu0
        %v3077 = vadd.f32 0.0, %v3076
        %3078 = vmatprep.mubr.f32.mxu0 0.0
        %3079 = vmatmul.mubr.f32.gmra.mxu0 %v2901
        %v3080 = vpop.f32.mrf.mxu0
        %v3081 = vadd.f32 0.0, %v3080
        %v3082 = vpop.f32.mrf.mxu0
        %v3083 = vadd.f32 0.0, %v3082
        %3084 = vmatprep.mubr.f32.mxu0 0.0
        %3085 = vmatmul.mubr.f32.gmra.mxu0 %v2904
        %v3086 = vpop.f32.mrf.mxu0
        %v3087 = vadd.f32 0.0, %v3086
        %v3088 = vpop.f32.mrf.mxu0
        %v3089 = vadd.f32 0.0, %v3088
        %3090 = vmatprep.mubr.f32.mxu0 0.0
        %3091 = vmatmul.mubr.f32.gmra.mxu0 %v2907
        %v3092 = vpop.f32.mrf.mxu0
        %v3093 = vadd.f32 0.0, %v3092
        %v3094 = vpop.f32.mrf.mxu0
        %v3095 = vadd.f32 0.0, %v3094
        %3096 = vmatprep.mubr.f32.mxu0 0.0
        %3097 = vmatmul.mubr.f32.gmra.mxu0 %v2910
        %v3098 = vpop.f32.mrf.mxu0
        %v3099 = vadd.f32 0.0, %v3098
        %v3100 = vpop.f32.mrf.mxu0
        %v3101 = vadd.f32 0.0, %v3100
        %3102 = vmatprep.mubr.f32.mxu0 0.0
        %3103 = vmatmul.mubr.f32.gmra.mxu0 %v2913
        %v3104 = vpop.f32.mrf.mxu0
        %v3105 = vadd.f32 0.0, %v3104
        %v3106 = vpop.f32.mrf.mxu0
        %v3107 = vadd.f32 0.0, %v3106
        %3108 = vmatprep.mubr.f32.mxu0 0.0
        %3109 = vmatmul.mubr.f32.gmra.mxu0 %v2916
        %v3110 = vpop.f32.mrf.mxu0
        %v3111 = vadd.f32 0.0, %v3110
        %v3112 = vpop.f32.mrf.mxu0
        %v3113 = vadd.f32 0.0, %v3112
        %3114 = vmatprep.mubr.f32.mxu0 0.0
        %3115 = vmatmul.mubr.f32.gmra.mxu0 %v2919
        %v3116 = vpop.f32.mrf.mxu0
        %v3117 = vadd.f32 0.0, %v3116
        %v3118 = vpop.f32.mrf.mxu0
        %v3119 = vadd.f32 0.0, %v3118
        %3120 = vmatprep.mubr.f32.mxu0 0.0
        %3121 = vmatmul.mubr.f32.gmra.mxu0 %v2922
        %v3122 = vpop.f32.mrf.mxu0
        %v3123 = vadd.f32 0.0, %v3122
        %v3124 = vpop.f32.mrf.mxu0
        %v3125 = vadd.f32 0.0, %v3124
        %3126 = vmatprep.mubr.f32.mxu0 0.0
        %3127 = vmatmul.mubr.f32.gmra.mxu0 %v2925
        %v3128 = vpop.f32.mrf.mxu0
        %v3129 = vadd.f32 0.0, %v3128
        %v3130 = vpop.f32.mrf.mxu0
        %v3131 = vadd.f32 0.0, %v3130
        %3132 = vmatprep.mubr.f32.mxu0 0.0
        %3133 = vmatmul.mubr.f32.gmra.mxu0 %v2928
        %v3134 = vpop.f32.mrf.mxu0
        %v3135 = vadd.f32 0.0, %v3134
        %v3136 = vpop.f32.mrf.mxu0
        %v3137 = vadd.f32 0.0, %v3136
        %3138 = vmatprep.mubr.f32.mxu0 0.0
        %3139 = vmatmul.mubr.f32.gmra.mxu0 %v2931
        %v3140 = vpop.f32.mrf.mxu0
        %v3141 = vadd.f32 0.0, %v3140
        %v3142 = vpop.f32.mrf.mxu0
        %v3143 = vadd.f32 0.0, %v3142
        %3144 = vmatprep.mubr.f32.mxu0 0.0
        %3145 = vmatmul.mubr.f32.gmra.mxu0 %v2934
        %v3146 = vpop.f32.mrf.mxu0
        %v3147 = vadd.f32 0.0, %v3146
        %v3148 = vpop.f32.mrf.mxu0
        %v3149 = vadd.f32 0.0, %v3148
        %3150 = vmatprep.mubr.f32.mxu0 0.0
        %3151 = vmatmul.mubr.f32.gmra.mxu0 %v2937
        %v3152 = vpop.f32.mrf.mxu0
        %v3153 = vadd.f32 0.0, %v3152
        %v3154 = vpop.f32.mrf.mxu0
        %v3155 = vadd.f32 0.0, %v3154
        %3156 = vmatprep.mubr.f32.mxu0 0.0
        %3157 = vmatmul.mubr.f32.gmra.mxu0 %v2940
        %v3158 = vpop.f32.mrf.mxu0
        %v3159 = vadd.f32 0.0, %v3158
        %v3160 = vpop.f32.mrf.mxu0
        %v3161 = vadd.f32 0.0, %v3160
        %3162 = vmatprep.mubr.f32.mxu0 0.0
        %3163 = vmatmul.mubr.f32.gmra.mxu0 %v2943
        %v3164 = vpop.f32.mrf.mxu0
        %v3165 = vadd.f32 0.0, %v3164
        %v3166 = vpop.f32.mrf.mxu0
        %v3167 = vadd.f32 0.0, %v3166
        %3168 = vmatprep.mubr.f32.mxu0 0.0
        %3169 = vmatmul.mubr.f32.gmra.mxu0 %v2946
        %v3170 = vpop.f32.mrf.mxu0
        %v3171 = vadd.f32 0.0, %v3170
        %v3172 = vpop.f32.mrf.mxu0
        %v3173 = vadd.f32 0.0, %v3172
        %3174 = vmatprep.mubr.f32.mxu0 0.0
        %3175 = vmatmul.mubr.f32.gmra.mxu0 %v2949
        %v3176 = vpop.f32.mrf.mxu0
        %v3177 = vadd.f32 0.0, %v3176
        %v3178 = vpop.f32.mrf.mxu0
        %v3179 = vadd.f32 0.0, %v3178
        %3180 = vmatprep.mubr.f32.mxu0 0.0
        %3181 = vmatmul.mubr.f32.gmra.mxu0 %v2952
        %v3182 = vpop.f32.mrf.mxu0
        %v3183 = vadd.f32 0.0, %v3182
        %v3184 = vpop.f32.mrf.mxu0
        %v3185 = vadd.f32 0.0, %v3184
        %3186 = vmatprep.mubr.f32.mxu0 0.0
        %3187 = vmatmul.mubr.f32.gmra.mxu0 %v2955
        %v3188 = vpop.f32.mrf.mxu0
        %v3189 = vadd.f32 0.0, %v3188
        %v3190 = vpop.f32.mrf.mxu0
        %v3191 = vadd.f32 0.0, %v3190
        %3192 = vmatprep.mubr.f32.mxu0 0.0
        %3193 = vmatmul.mubr.f32.gmra.mxu0 %v2958
        %v3194 = vpop.f32.mrf.mxu0
        %v3195 = vadd.f32 0.0, %v3194
        %v3196 = vpop.f32.mrf.mxu0
        %v3197 = vadd.f32 0.0, %v3196
        %3198 = vmatprep.mubr.f32.mxu0 0.0
        %3199 = vmatmul.mubr.f32.gmra.mxu0 %v2961
        %v3200 = vpop.f32.mrf.mxu0
        %v3201 = vadd.f32 0.0, %v3200
        %v3202 = vpop.f32.mrf.mxu0
        %v3203 = vadd.f32 0.0, %v3202
        %3204 = vmatprep.mubr.f32.mxu0 0.0
        %3205 = vmatmul.mubr.f32.gmra.mxu0 %v2964
        %v3206 = vpop.f32.mrf.mxu0
        %v3207 = vadd.f32 0.0, %v3206
        %v3208 = vpop.f32.mrf.mxu0
        %v3209 = vadd.f32 0.0, %v3208
        %3210 = vmatprep.mubr.f32.mxu0 0.0
        %3211 = vmatmul.mubr.f32.gmra.mxu0 %v2967
        %v3212 = vpop.f32.mrf.mxu0
        %v3213 = vadd.f32 0.0, %v3212
        %v3214 = vpop.f32.mrf.mxu0
        %v3215 = vadd.f32 0.0, %v3214
        %3216 = vmatprep.mubr.f32.mxu0 0.0
        %3217 = vmatmul.mubr.f32.gmra.mxu0 %v2970
        %v3218 = vpop.f32.mrf.mxu0
        %v3219 = vadd.f32 0.0, %v3218
        %v3220 = vpop.f32.mrf.mxu0
        %v3221 = vadd.f32 0.0, %v3220
        %3222 = vmatprep.mubr.f32.mxu0 0.0
        %3223 = vmatmul.mubr.f32.gmra.mxu0 %v2973
        %v3224 = vpop.f32.mrf.mxu0
        %v3225 = vadd.f32 0.0, %v3224
        %v3226 = vpop.f32.mrf.mxu0
        %v3227 = vadd.f32 0.0, %v3226
        %3228 = vmatprep.mubr.f32.mxu0 0.0
        %3229 = vmatmul.mubr.f32.gmra.mxu0 %v2976
        %v3230 = vpop.f32.mrf.mxu0
        %v3231 = vadd.f32 0.0, %v3230
        %v3232 = vpop.f32.mrf.mxu0
        %v3233 = vadd.f32 0.0, %v3232
        %3234 = vdwg.mxu0
        %v3235 = vmax.f32 %v3045, %v3047
        %3236 = vmax.xlane.f32.xlu0 %v3235
        %v3237 = vpop.xlane.xlu0 %3236
        %v3238 = vmax.f32 %v3051, %v3053
        %3239 = vmax.xlane.f32.xlu0 %v3238
        %v3240 = vpop.xlane.xlu0 %3239
        %v3241 = vmax.f32 %v3057, %v3059
        %3242 = vmax.xlane.f32.xlu0 %v3241
        %v3243 = vpop.xlane.xlu0 %3242
        %v3244 = vmax.f32 %v3063, %v3065
        %3245 = vmax.xlane.f32.xlu0 %v3244
        %v3246 = vpop.xlane.xlu0 %3245
        %v3247 = vmax.f32 %v3069, %v3071
        %3248 = vmax.xlane.f32.xlu0 %v3247
        %v3249 = vpop.xlane.xlu0 %3248
        %v3250 = vmax.f32 %v3075, %v3077
        %3251 = vmax.xlane.f32.xlu0 %v3250
        %v3252 = vpop.xlane.xlu0 %3251
        %v3253 = vmax.f32 %v3081, %v3083
        %3254 = vmax.xlane.f32.xlu0 %v3253
        %v3255 = vpop.xlane.xlu0 %3254
        %v3256 = vmax.f32 %v3087, %v3089
        %3257 = vmax.xlane.f32.xlu0 %v3256
        %v3258 = vpop.xlane.xlu0 %3257
        %v3259 = vmax.f32 %v3093, %v3095
        %3260 = vmax.xlane.f32.xlu0 %v3259
        %v3261 = vpop.xlane.xlu0 %3260
        %v3262 = vmax.f32 %v3099, %v3101
        %3263 = vmax.xlane.f32.xlu0 %v3262
        %v3264 = vpop.xlane.xlu0 %3263
        %v3265 = vmax.f32 %v3105, %v3107
        %3266 = vmax.xlane.f32.xlu0 %v3265
        %v3267 = vpop.xlane.xlu0 %3266
        %v3268 = vmax.f32 %v3111, %v3113
        %3269 = vmax.xlane.f32.xlu0 %v3268
        %v3270 = vpop.xlane.xlu0 %3269
        %v3271 = vmax.f32 %v3117, %v3119
        %3272 = vmax.xlane.f32.xlu0 %v3271
        %v3273 = vpop.xlane.xlu0 %3272
        %v3274 = vmax.f32 %v3123, %v3125
        %3275 = vmax.xlane.f32.xlu0 %v3274
        %v3276 = vpop.xlane.xlu0 %3275
        %v3277 = vmax.f32 %v3129, %v3131
        %3278 = vmax.xlane.f32.xlu0 %v3277
        %v3279 = vpop.xlane.xlu0 %3278
        %v3280 = vmax.f32 %v3135, %v3137
        %3281 = vmax.xlane.f32.xlu0 %v3280
        %v3282 = vpop.xlane.xlu0 %3281
        %v3283 = vmax.f32 %v3141, %v3143
        %3284 = vmax.xlane.f32.xlu0 %v3283
        %v3285 = vpop.xlane.xlu0 %3284
        %v3286 = vmax.f32 %v3147, %v3149
        %3287 = vmax.xlane.f32.xlu0 %v3286
        %v3288 = vpop.xlane.xlu0 %3287
        %v3289 = vmax.f32 %v3153, %v3155
        %3290 = vmax.xlane.f32.xlu0 %v3289
        %v3291 = vpop.xlane.xlu0 %3290
        %v3292 = vmax.f32 %v3159, %v3161
        %3293 = vmax.xlane.f32.xlu0 %v3292
        %v3294 = vpop.xlane.xlu0 %3293
        %v3295 = vmax.f32 %v3165, %v3167
        %3296 = vmax.xlane.f32.xlu0 %v3295
        %v3297 = vpop.xlane.xlu0 %3296
        %v3298 = vmax.f32 %v3171, %v3173
        %3299 = vmax.xlane.f32.xlu0 %v3298
        %v3300 = vpop.xlane.xlu0 %3299
        %v3301 = vmax.f32 %v3177, %v3179
        %3302 = vmax.xlane.f32.xlu0 %v3301
        %v3303 = vpop.xlane.xlu0 %3302
        %v3304 = vmax.f32 %v3183, %v3185
        %3305 = vmax.xlane.f32.xlu0 %v3304
        %v3306 = vpop.xlane.xlu0 %3305
        %v3307 = vmax.f32 %v3189, %v3191
        %3308 = vmax.xlane.f32.xlu0 %v3307
        %v3309 = vpop.xlane.xlu0 %3308
        %v3310 = vmax.f32 %v3195, %v3197
        %3311 = vmax.xlane.f32.xlu0 %v3310
        %v3312 = vpop.xlane.xlu0 %3311
        %v3313 = vmax.f32 %v3201, %v3203
        %3314 = vmax.xlane.f32.xlu0 %v3313
        %v3315 = vpop.xlane.xlu0 %3314
        %v3316 = vmax.f32 %v3207, %v3209
        %3317 = vmax.xlane.f32.xlu0 %v3316
        %v3318 = vpop.xlane.xlu0 %3317
        %v3319 = vmax.f32 %v3213, %v3215
        %3320 = vmax.xlane.f32.xlu0 %v3319
        %v3321 = vpop.xlane.xlu0 %3320
        %v3322 = vmax.f32 %v3219, %v3221
        %3323 = vmax.xlane.f32.xlu0 %v3322
        %v3324 = vpop.xlane.xlu0 %3323
        %v3325 = vmax.f32 %v3225, %v3227
        %3326 = vmax.xlane.f32.xlu0 %v3325
        %v3327 = vpop.xlane.xlu0 %3326
        %v3328 = vmax.f32 %v3231, %v3233
        %3329 = vmax.xlane.f32.xlu0 %v3328
        %v3330 = vpop.xlane.xlu0 %3329
        %v3331 = vsub.f32 %v3045, %v3237
        %v3332 = vsub.f32 %v3047, %v3237
        %v3333 = vsub.f32 %v3051, %v3240
        %v3334 = vsub.f32 %v3053, %v3240
        %v3335 = vsub.f32 %v3057, %v3243
        %v3336 = vsub.f32 %v3059, %v3243
        %v3337 = vsub.f32 %v3063, %v3246
        %v3338 = vsub.f32 %v3065, %v3246
        %v3339 = vsub.f32 %v3069, %v3249
        %v3340 = vsub.f32 %v3071, %v3249
        %v3341 = vsub.f32 %v3075, %v3252
        %v3342 = vsub.f32 %v3077, %v3252
        %v3343 = vsub.f32 %v3081, %v3255
        %v3344 = vsub.f32 %v3083, %v3255
        %v3345 = vsub.f32 %v3087, %v3258
        %v3346 = vsub.f32 %v3089, %v3258
        %v3347 = vsub.f32 %v3093, %v3261
        %v3348 = vsub.f32 %v3095, %v3261
        %v3349 = vsub.f32 %v3099, %v3264
        %v3350 = vsub.f32 %v3101, %v3264
        %v3351 = vsub.f32 %v3105, %v3267
        %v3352 = vsub.f32 %v3107, %v3267
        %v3353 = vsub.f32 %v3111, %v3270
        %v3354 = vsub.f32 %v3113, %v3270
        %v3355 = vsub.f32 %v3117, %v3273
        %v3356 = vsub.f32 %v3119, %v3273
        %v3357 = vsub.f32 %v3123, %v3276
        %v3358 = vsub.f32 %v3125, %v3276
        %v3359 = vsub.f32 %v3129, %v3279
        %v3360 = vsub.f32 %v3131, %v3279
        %v3361 = vsub.f32 %v3135, %v3282
        %v3362 = vsub.f32 %v3137, %v3282
        %v3363 = vsub.f32 %v3141, %v3285
        %v3364 = vsub.f32 %v3143, %v3285
        %v3365 = vsub.f32 %v3147, %v3288
        %v3366 = vsub.f32 %v3149, %v3288
        %v3367 = vsub.f32 %v3153, %v3291
        %v3368 = vsub.f32 %v3155, %v3291
        %v3369 = vsub.f32 %v3159, %v3294
        %v3370 = vsub.f32 %v3161, %v3294
        %v3371 = vsub.f32 %v3165, %v3297
        %v3372 = vsub.f32 %v3167, %v3297
        %v3373 = vsub.f32 %v3171, %v3300
        %v3374 = vsub.f32 %v3173, %v3300
        %v3375 = vsub.f32 %v3177, %v3303
        %v3376 = vsub.f32 %v3179, %v3303
        %v3377 = vsub.f32 %v3183, %v3306
        %v3378 = vsub.f32 %v3185, %v3306
        %v3379 = vsub.f32 %v3189, %v3309
        %v3380 = vsub.f32 %v3191, %v3309
        %v3381 = vsub.f32 %v3195, %v3312
        %v3382 = vsub.f32 %v3197, %v3312
        %v3383 = vsub.f32 %v3201, %v3315
        %v3384 = vsub.f32 %v3203, %v3315
        %v3385 = vsub.f32 %v3207, %v3318
        %v3386 = vsub.f32 %v3209, %v3318
        %v3387 = vsub.f32 %v3213, %v3321
        %v3388 = vsub.f32 %v3215, %v3321
        %v3389 = vsub.f32 %v3219, %v3324
        %v3390 = vsub.f32 %v3221, %v3324
        %v3391 = vsub.f32 %v3225, %v3327
        %v3392 = vsub.f32 %v3227, %v3327
        %v3393 = vsub.f32 %v3231, %v3330
        %v3394 = vsub.f32 %v3233, %v3330
        %v3395 = vmul.f32 %v3331, 1.442695
        %v3396 = vpow.pop %v3395
        %v3397 = vmul.f32 %v3332, 1.442695
        %v3398 = vpow.pop %v3397
        %v3399 = vmul.f32 %v3333, 1.442695
        %v3400 = vpow.pop %v3399
        %v3401 = vmul.f32 %v3334, 1.442695
        %v3402 = vpow.pop %v3401
        %v3403 = vmul.f32 %v3335, 1.442695
        %v3404 = vpow.pop %v3403
        %v3405 = vmul.f32 %v3336, 1.442695
        %v3406 = vpow.pop %v3405
        %v3407 = vmul.f32 %v3337, 1.442695
        %v3408 = vpow.pop %v3407
        %v3409 = vmul.f32 %v3338, 1.442695
        %v3410 = vpow.pop %v3409
        %v3411 = vmul.f32 %v3339, 1.442695
        %v3412 = vpow.pop %v3411
        %v3413 = vmul.f32 %v3340, 1.442695
        %v3414 = vpow.pop %v3413
        %v3415 = vmul.f32 %v3341, 1.442695
        %v3416 = vpow.pop %v3415
        %v3417 = vmul.f32 %v3342, 1.442695
        %v3418 = vpow.pop %v3417
        %v3419 = vmul.f32 %v3343, 1.442695
        %v3420 = vpow.pop %v3419
        %v3421 = vmul.f32 %v3344, 1.442695
        %v3422 = vpow.pop %v3421
        %v3423 = vmul.f32 %v3345, 1.442695
        %v3424 = vpow.pop %v3423
        %v3425 = vmul.f32 %v3346, 1.442695
        %v3426 = vpow.pop %v3425
        %v3427 = vmul.f32 %v3347, 1.442695
        %v3428 = vpow.pop %v3427
        %v3429 = vmul.f32 %v3348, 1.442695
        %v3430 = vpow.pop %v3429
        %v3431 = vmul.f32 %v3349, 1.442695
        %v3432 = vpow.pop %v3431
        %v3433 = vmul.f32 %v3350, 1.442695
        %v3434 = vpow.pop %v3433
        %v3435 = vmul.f32 %v3351, 1.442695
        %v3436 = vpow.pop %v3435
        %v3437 = vmul.f32 %v3352, 1.442695
        %v3438 = vpow.pop %v3437
        %v3439 = vmul.f32 %v3353, 1.442695
        %v3440 = vpow.pop %v3439
        %v3441 = vmul.f32 %v3354, 1.442695
        %v3442 = vpow.pop %v3441
        %v3443 = vmul.f32 %v3355, 1.442695
        %v3444 = vpow.pop %v3443
        %v3445 = vmul.f32 %v3356, 1.442695
        %v3446 = vpow.pop %v3445
        %v3447 = vmul.f32 %v3357, 1.442695
        %v3448 = vpow.pop %v3447
        %v3449 = vmul.f32 %v3358, 1.442695
        %v3450 = vpow.pop %v3449
        %v3451 = vmul.f32 %v3359, 1.442695
        %v3452 = vpow.pop %v3451
        %v3453 = vmul.f32 %v3360, 1.442695
        %v3454 = vpow.pop %v3453
        %v3455 = vmul.f32 %v3361, 1.442695
        %v3456 = vpow.pop %v3455
        %v3457 = vmul.f32 %v3362, 1.442695
        %v3458 = vpow.pop %v3457
        %v3459 = vmul.f32 %v3363, 1.442695
        %v3460 = vpow.pop %v3459
        %v3461 = vmul.f32 %v3364, 1.442695
        %v3462 = vpow.pop %v3461
        %v3463 = vmul.f32 %v3365, 1.442695
        %v3464 = vpow.pop %v3463
        %v3465 = vmul.f32 %v3366, 1.442695
        %v3466 = vpow.pop %v3465
        %v3467 = vmul.f32 %v3367, 1.442695
        %v3468 = vpow.pop %v3467
        %v3469 = vmul.f32 %v3368, 1.442695
        %v3470 = vpow.pop %v3469
        %v3471 = vmul.f32 %v3369, 1.442695
        %v3472 = vpow.pop %v3471
        %v3473 = vmul.f32 %v3370, 1.442695
        %v3474 = vpow.pop %v3473
        %v3475 = vmul.f32 %v3371, 1.442695
        %v3476 = vpow.pop %v3475
        %v3477 = vmul.f32 %v3372, 1.442695
        %v3478 = vpow.pop %v3477
        %v3479 = vmul.f32 %v3373, 1.442695
        %v3480 = vpow.pop %v3479
        %v3481 = vmul.f32 %v3374, 1.442695
        %v3482 = vpow.pop %v3481
        %v3483 = vmul.f32 %v3375, 1.442695
        %v3484 = vpow.pop %v3483
        %v3485 = vmul.f32 %v3376, 1.442695
        %v3486 = vpow.pop %v3485
        %v3487 = vmul.f32 %v3377, 1.442695
        %v3488 = vpow.pop %v3487
        %v3489 = vmul.f32 %v3378, 1.442695
        %v3490 = vpow.pop %v3489
        %v3491 = vmul.f32 %v3379, 1.442695
        %v3492 = vpow.pop %v3491
        %v3493 = vmul.f32 %v3380, 1.442695
        %v3494 = vpow.pop %v3493
        %v3495 = vmul.f32 %v3381, 1.442695
        %v3496 = vpow.pop %v3495
        %v3497 = vmul.f32 %v3382, 1.442695
        %v3498 = vpow.pop %v3497
        %v3499 = vmul.f32 %v3383, 1.442695
        %v3500 = vpow.pop %v3499
        %v3501 = vmul.f32 %v3384, 1.442695
        %v3502 = vpow.pop %v3501
        %v3503 = vmul.f32 %v3385, 1.442695
        %v3504 = vpow.pop %v3503
        %v3505 = vmul.f32 %v3386, 1.442695
        %v3506 = vpow.pop %v3505
        %v3507 = vmul.f32 %v3387, 1.442695
        %v3508 = vpow.pop %v3507
        %v3509 = vmul.f32 %v3388, 1.442695
        %v3510 = vpow.pop %v3509
        %v3511 = vmul.f32 %v3389, 1.442695
        %v3512 = vpow.pop %v3511
        %v3513 = vmul.f32 %v3390, 1.442695
        %v3514 = vpow.pop %v3513
        %v3515 = vmul.f32 %v3391, 1.442695
        %v3516 = vpow.pop %v3515
        %v3517 = vmul.f32 %v3392, 1.442695
        %v3518 = vpow.pop %v3517
        %v3519 = vmul.f32 %v3393, 1.442695
        %v3520 = vpow.pop %v3519
        %v3521 = vmul.f32 %v3394, 1.442695
        %v3522 = vpow.pop %v3521
        %v3523 = vadd.f32 %v3396, %v3398
        %3524 = vadd.xlane.f32.xlu0 %v3523
        %v3525 = vpop.xlane.xlu0 %3524
        %v3526 = vadd.f32 %v3400, %v3402
        %3527 = vadd.xlane.f32.xlu0 %v3526
        %v3528 = vpop.xlane.xlu0 %3527
        %v3529 = vadd.f32 %v3404, %v3406
        %3530 = vadd.xlane.f32.xlu0 %v3529
        %v3531 = vpop.xlane.xlu0 %3530
        %v3532 = vadd.f32 %v3408, %v3410
        %3533 = vadd.xlane.f32.xlu0 %v3532
        %v3534 = vpop.xlane.xlu0 %3533
        %v3535 = vadd.f32 %v3412, %v3414
        %3536 = vadd.xlane.f32.xlu0 %v3535
        %v3537 = vpop.xlane.xlu0 %3536
        %v3538 = vadd.f32 %v3416, %v3418
        %3539 = vadd.xlane.f32.xlu0 %v3538
        %v3540 = vpop.xlane.xlu0 %3539
        %v3541 = vadd.f32 %v3420, %v3422
        %3542 = vadd.xlane.f32.xlu0 %v3541
        %v3543 = vpop.xlane.xlu0 %3542
        %v3544 = vadd.f32 %v3424, %v3426
        %3545 = vadd.xlane.f32.xlu0 %v3544
        %v3546 = vpop.xlane.xlu0 %3545
        %v3547 = vadd.f32 %v3428, %v3430
        %3548 = vadd.xlane.f32.xlu0 %v3547
        %v3549 = vpop.xlane.xlu0 %3548
        %v3550 = vadd.f32 %v3432, %v3434
        %3551 = vadd.xlane.f32.xlu0 %v3550
        %v3552 = vpop.xlane.xlu0 %3551
        %v3553 = vadd.f32 %v3436, %v3438
        %3554 = vadd.xlane.f32.xlu0 %v3553
        %v3555 = vpop.xlane.xlu0 %3554
        %v3556 = vadd.f32 %v3440, %v3442
        %3557 = vadd.xlane.f32.xlu0 %v3556
        %v3558 = vpop.xlane.xlu0 %3557
        %v3559 = vadd.f32 %v3444, %v3446
        %3560 = vadd.xlane.f32.xlu0 %v3559
        %v3561 = vpop.xlane.xlu0 %3560
        %v3562 = vadd.f32 %v3448, %v3450
        %3563 = vadd.xlane.f32.xlu0 %v3562
        %v3564 = vpop.xlane.xlu0 %3563
        %v3565 = vadd.f32 %v3452, %v3454
        %3566 = vadd.xlane.f32.xlu0 %v3565
        %v3567 = vpop.xlane.xlu0 %3566
        %v3568 = vadd.f32 %v3456, %v3458
        %3569 = vadd.xlane.f32.xlu0 %v3568
        %v3570 = vpop.xlane.xlu0 %3569
        %v3571 = vadd.f32 %v3460, %v3462
        %3572 = vadd.xlane.f32.xlu0 %v3571
        %v3573 = vpop.xlane.xlu0 %3572
        %v3574 = vadd.f32 %v3464, %v3466
        %3575 = vadd.xlane.f32.xlu0 %v3574
        %v3576 = vpop.xlane.xlu0 %3575
        %v3577 = vadd.f32 %v3468, %v3470
        %3578 = vadd.xlane.f32.xlu0 %v3577
        %v3579 = vpop.xlane.xlu0 %3578
        %v3580 = vadd.f32 %v3472, %v3474
        %3581 = vadd.xlane.f32.xlu0 %v3580
        %v3582 = vpop.xlane.xlu0 %3581
        %v3583 = vadd.f32 %v3476, %v3478
        %3584 = vadd.xlane.f32.xlu0 %v3583
        %v3585 = vpop.xlane.xlu0 %3584
        %v3586 = vadd.f32 %v3480, %v3482
        %3587 = vadd.xlane.f32.xlu0 %v3586
        %v3588 = vpop.xlane.xlu0 %3587
        %v3589 = vadd.f32 %v3484, %v3486
        %3590 = vadd.xlane.f32.xlu0 %v3589
        %v3591 = vpop.xlane.xlu0 %3590
        %v3592 = vadd.f32 %v3488, %v3490
        %3593 = vadd.xlane.f32.xlu0 %v3592
        %v3594 = vpop.xlane.xlu0 %3593
        %v3595 = vadd.f32 %v3492, %v3494
        %3596 = vadd.xlane.f32.xlu0 %v3595
        %v3597 = vpop.xlane.xlu0 %3596
        %v3598 = vadd.f32 %v3496, %v3498
        %3599 = vadd.xlane.f32.xlu0 %v3598
        %v3600 = vpop.xlane.xlu0 %3599
        %v3601 = vadd.f32 %v3500, %v3502
        %3602 = vadd.xlane.f32.xlu0 %v3601
        %v3603 = vpop.xlane.xlu0 %3602
        %v3604 = vadd.f32 %v3504, %v3506
        %3605 = vadd.xlane.f32.xlu0 %v3604
        %v3606 = vpop.xlane.xlu0 %3605
        %v3607 = vadd.f32 %v3508, %v3510
        %3608 = vadd.xlane.f32.xlu0 %v3607
        %v3609 = vpop.xlane.xlu0 %3608
        %v3610 = vadd.f32 %v3512, %v3514
        %3611 = vadd.xlane.f32.xlu0 %v3610
        %v3612 = vpop.xlane.xlu0 %3611
        %v3613 = vadd.f32 %v3516, %v3518
        %3614 = vadd.xlane.f32.xlu0 %v3613
        %v3615 = vpop.xlane.xlu0 %3614
        %v3616 = vadd.f32 %v3520, %v3522
        %3617 = vadd.xlane.f32.xlu0 %v3616
        %v3618 = vpop.xlane.xlu0 %3617
        %v3619 = vrcp.pop %v3525
        %v3620 = vmul.f32 %v3396, %v3619
        %v3621 = vmul.f32 %v3398, %v3619
        %v3622 = vrcp.pop %v3528
        %v3623 = vmul.f32 %v3400, %v3622
        %v3624 = vmul.f32 %v3402, %v3622
        %v3625 = vrcp.pop %v3531
        %v3626 = vmul.f32 %v3404, %v3625
        %v3627 = vmul.f32 %v3406, %v3625
        %v3628 = vrcp.pop %v3534
        %v3629 = vmul.f32 %v3408, %v3628
        %v3630 = vmul.f32 %v3410, %v3628
        %v3631 = vrcp.pop %v3537
        %v3632 = vmul.f32 %v3412, %v3631
        %v3633 = vmul.f32 %v3414, %v3631
        %v3634 = vrcp.pop %v3540
        %v3635 = vmul.f32 %v3416, %v3634
        %v3636 = vmul.f32 %v3418, %v3634
        %v3637 = vrcp.pop %v3543
        %v3638 = vmul.f32 %v3420, %v3637
        %v3639 = vmul.f32 %v3422, %v3637
        %v3640 = vrcp.pop %v3546
        %v3641 = vmul.f32 %v3424, %v3640
        %v3642 = vmul.f32 %v3426, %v3640
        %v3643 = vrcp.pop %v3549
        %v3644 = vmul.f32 %v3428, %v3643
        %v3645 = vmul.f32 %v3430, %v3643
        %v3646 = vrcp.pop %v3552
        %v3647 = vmul.f32 %v3432, %v3646
        %v3648 = vmul.f32 %v3434, %v3646
        %v3649 = vrcp.pop %v3555
        %v3650 = vmul.f32 %v3436, %v3649
        %v3651 = vmul.f32 %v3438, %v3649
        %v3652 = vrcp.pop %v3558
        %v3653 = vmul.f32 %v3440, %v3652
        %v3654 = vmul.f32 %v3442, %v3652
        %v3655 = vrcp.pop %v3561
        %v3656 = vmul.f32 %v3444, %v3655
        %v3657 = vmul.f32 %v3446, %v3655
        %v3658 = vrcp.pop %v3564
        %v3659 = vmul.f32 %v3448, %v3658
        %v3660 = vmul.f32 %v3450, %v3658
        %v3661 = vrcp.pop %v3567
        %v3662 = vmul.f32 %v3452, %v3661
        %v3663 = vmul.f32 %v3454, %v3661
        %v3664 = vrcp.pop %v3570
        %v3665 = vmul.f32 %v3456, %v3664
        %v3666 = vmul.f32 %v3458, %v3664
        %v3667 = vrcp.pop %v3573
        %v3668 = vmul.f32 %v3460, %v3667
        %v3669 = vmul.f32 %v3462, %v3667
        %v3670 = vrcp.pop %v3576
        %v3671 = vmul.f32 %v3464, %v3670
        %v3672 = vmul.f32 %v3466, %v3670
        %v3673 = vrcp.pop %v3579
        %v3674 = vmul.f32 %v3468, %v3673
        %v3675 = vmul.f32 %v3470, %v3673
        %v3676 = vrcp.pop %v3582
        %v3677 = vmul.f32 %v3472, %v3676
        %v3678 = vmul.f32 %v3474, %v3676
        %v3679 = vrcp.pop %v3585
        %v3680 = vmul.f32 %v3476, %v3679
        %v3681 = vmul.f32 %v3478, %v3679
        %v3682 = vrcp.pop %v3588
        %v3683 = vmul.f32 %v3480, %v3682
        %v3684 = vmul.f32 %v3482, %v3682
        %v3685 = vrcp.pop %v3591
        %v3686 = vmul.f32 %v3484, %v3685
        %v3687 = vmul.f32 %v3486, %v3685
        %v3688 = vrcp.pop %v3594
        %v3689 = vmul.f32 %v3488, %v3688
        %v3690 = vmul.f32 %v3490, %v3688
        %v3691 = vrcp.pop %v3597
        %v3692 = vmul.f32 %v3492, %v3691
        %v3693 = vmul.f32 %v3494, %v3691
        %v3694 = vrcp.pop %v3600
        %v3695 = vmul.f32 %v3496, %v3694
        %v3696 = vmul.f32 %v3498, %v3694
        %v3697 = vrcp.pop %v3603
        %v3698 = vmul.f32 %v3500, %v3697
        %v3699 = vmul.f32 %v3502, %v3697
        %v3700 = vrcp.pop %v3606
        %v3701 = vmul.f32 %v3504, %v3700
        %v3702 = vmul.f32 %v3506, %v3700
        %v3703 = vrcp.pop %v3609
        %v3704 = vmul.f32 %v3508, %v3703
        %v3705 = vmul.f32 %v3510, %v3703
        %v3706 = vrcp.pop %v3612
        %v3707 = vmul.f32 %v3512, %v3706
        %v3708 = vmul.f32 %v3514, %v3706
        %v3709 = vrcp.pop %v3615
        %v3710 = vmul.f32 %v3516, %v3709
        %v3711 = vmul.f32 %v3518, %v3709
        %v3712 = vrcp.pop %v3618
        %v3713 = vmul.f32 %v3520, %v3712
        %v3714 = vmul.f32 %v3522, %v3712
        %3715 = vmatprep.subr.mxu0 %v3666
        %3716 = vmatpush1.xpose.msra.mxu0 %v3665
        %3717 = vmatprep.subr.mxu0 %v3663
        %3718 = vmatpush1.xpose.msra.mxu0 %v3662
        %3719 = vmatprep.subr.mxu0 %v3660
        %3720 = vmatpush1.xpose.msra.mxu0 %v3659
        %3721 = vmatprep.subr.mxu0 %v3657
        %3722 = vmatpush1.xpose.msra.mxu0 %v3656
        %3723 = vmatprep.subr.mxu0 %v3654
        %3724 = vmatpush1.xpose.msra.mxu0 %v3653
        %3725 = vmatprep.subr.mxu0 %v3651
        %3726 = vmatpush1.xpose.msra.mxu0 %v3650
        %3727 = vmatprep.subr.mxu0 %v3648
        %3728 = vmatpush1.xpose.msra.mxu0 %v3647
        %3729 = vmatprep.subr.mxu0 %v3645
        %3730 = vmatpush1.xpose.msra.mxu0 %v3644
        %3731 = vmatprep.subr.mxu0 %v3642
        %3732 = vmatpush1.xpose.msra.mxu0 %v3641
        %3733 = vmatprep.subr.mxu0 %v3639
        %3734 = vmatpush1.xpose.msra.mxu0 %v3638
        %3735 = vmatprep.subr.mxu0 %v3636
        %3736 = vmatpush1.xpose.msra.mxu0 %v3635
        %3737 = vmatprep.subr.mxu0 %v3633
        %3738 = vmatpush1.xpose.msra.mxu0 %v3632
        %3739 = vmatprep.subr.mxu0 %v3630
        %3740 = vmatpush1.xpose.msra.mxu0 %v3629
        %3741 = vmatprep.subr.mxu0 %v3627
        %3742 = vmatpush1.xpose.msra.mxu0 %v3626
        %3743 = vmatprep.subr.mxu0 %v3624
        %3744 = vmatpush1.xpose.msra.mxu0 %v3623
        %3745 = vmatprep.subr.mxu0 %v3621
        %3746 = vmatpush1.xpose.msra.mxu0 %v3620
        %3747 = vmatprep.subr.mxu0 %v3714
        %3748 = vmatpush2.xpose.msra.mxu0 %v3713
        %3749 = vmatprep.subr.mxu0 %v3711
        %3750 = vmatpush2.xpose.msra.mxu0 %v3710
        %3751 = vmatprep.subr.mxu0 %v3708
        %3752 = vmatpush2.xpose.msra.mxu0 %v3707
        %3753 = vmatprep.subr.mxu0 %v3705
        %3754 = vmatpush2.xpose.msra.mxu0 %v3704
        %3755 = vmatprep.subr.mxu0 %v3702
        %3756 = vmatpush2.xpose.msra.mxu0 %v3701
        %3757 = vmatprep.subr.mxu0 %v3699
        %3758 = vmatpush2.xpose.msra.mxu0 %v3698
        %3759 = vmatprep.subr.mxu0 %v3696
        %3760 = vmatpush2.xpose.msra.mxu0 %v3695
        %3761 = vmatprep.subr.mxu0 %v3693
        %3762 = vmatpush2.xpose.msra.mxu0 %v3692
        %3763 = vmatprep.subr.mxu0 %v3690
        %3764 = vmatpush2.xpose.msra.mxu0 %v3689
        %3765 = vmatprep.subr.mxu0 %v3687
        %3766 = vmatpush2.xpose.msra.mxu0 %v3686
        %3767 = vmatprep.subr.mxu0 %v3684
        %3768 = vmatpush2.xpose.msra.mxu0 %v3683
        %3769 = vmatprep.subr.mxu0 %v3681
        %3770 = vmatpush2.xpose.msra.mxu0 %v3680
        %3771 = vmatprep.subr.mxu0 %v3678
        %3772 = vmatpush2.xpose.msra.mxu0 %v3677
        %3773 = vmatprep.subr.mxu0 %v3675
        %3774 = vmatpush2.xpose.msra.mxu0 %v3674
        %3775 = vmatprep.subr.mxu0 %v3672
        %3776 = vmatpush2.xpose.msra.mxu0 %v3671
        %3777 = vmatprep.subr.mxu0 %v3669
        %3778 = vmatpush2.xpose.msra.mxu0 %v3668
        %3779 = vmatprep.mubr.f32.mxu0 %v706
        %3780 = vmatmul.mubr.f32.gmra.mxu0 %v704
        %v3781 = vpop.f32.mrf.mxu0
        %v3782 = vadd.f32 0.0, %v3781
        %v3783 = vpop.f32.mrf.mxu0
        %v3784 = vadd.f32 0.0, %v3783
        %3785 = vmatprep.mubr.f32.mxu0 %v712
        %3786 = vmatmul.mubr.f32.gmra.mxu0 %v710
        %v3787 = vpop.f32.mrf.mxu0
        %v3788 = vadd.f32 0.0, %v3787
        %v3789 = vpop.f32.mrf.mxu0
        %v3790 = vadd.f32 0.0, %v3789
        %3791 = vmatprep.mubr.f32.mxu0 %v718
        %3792 = vmatmul.mubr.f32.gmra.mxu0 %v716
        %v3793 = vpop.f32.mrf.mxu0
        %v3794 = vadd.f32 0.0, %v3793
        %v3795 = vpop.f32.mrf.mxu0
        %v3796 = vadd.f32 0.0, %v3795
        %3797 = vmatprep.mubr.f32.mxu0 %v724
        %3798 = vmatmul.mubr.f32.gmra.mxu0 %v722
        %v3799 = vpop.f32.mrf.mxu0
        %v3800 = vadd.f32 0.0, %v3799
        %v3801 = vpop.f32.mrf.mxu0
        %v3802 = vadd.f32 0.0, %v3801
        %3803 = vdwg.mxu0
        %3804 = vxpose.xlu0.b32.start [1/16] %v536, 128
        %3805 = vxpose.xlu0.b32.cont [2/16] %v542, 128
        %3806 = vxpose.xlu0.b32.cont [3/16] %v548, 128
        %3807 = vxpose.xlu0.b32.cont [4/16] %v554, 128
        %3808 = vxpose.xlu0.b32.cont [5/16] 0.0, 128
        %3809 = vxpose.xlu0.b32.cont [6/16] 0.0, 128
        %3810 = vxpose.xlu0.b32.cont [7/16] 0.0, 128
        %3811 = vxpose.xlu0.b32.cont [8/16] 0.0, 128
        %3812 = vxpose.xlu0.b32.cont [9/16] 0.0, 128
        %3813 = vxpose.xlu0.b32.cont [10/16] 0.0, 128
        %3814 = vxpose.xlu0.b32.cont [11/16] 0.0, 128
        %3815 = vxpose.xlu0.b32.cont [12/16] 0.0, 128
        %3816 = vxpose.xlu0.b32.cont [13/16] 0.0, 128
        %3817 = vxpose.xlu0.b32.cont [14/16] 0.0, 128
        %3818 = vxpose.xlu0.b32.cont [15/16] 0.0, 128
        %3819 = vxpose.xlu0.b32.end [16/16] 0.0, 128
        %v3820 = vpop.trf.xlu0
        %v3821 = vpop.trf.xlu0
        %v3822 = vpop.trf.xlu0
        %v3823 = vpop.trf.xlu0
        %v3824 = vpop.trf.xlu0
        %v3825 = vpop.trf.xlu0
        %v3826 = vpop.trf.xlu0
        %v3827 = vpop.trf.xlu0
        %v3828 = vpop.trf.xlu0
        %v3829 = vpop.trf.xlu0
        %v3830 = vpop.trf.xlu0
        %v3831 = vpop.trf.xlu0
        %v3832 = vpop.trf.xlu0
        %v3833 = vpop.trf.xlu0
        %v3834 = vpop.trf.xlu0
        %v3835 = vpop.trf.xlu0
        %3836 = vxpose.xlu0.b32.start [1/16] %v538, 128
        %3837 = vxpose.xlu0.b32.cont [2/16] %v544, 128
        %3838 = vxpose.xlu0.b32.cont [3/16] %v550, 128
        %3839 = vxpose.xlu0.b32.cont [4/16] %v556, 128
        %3840 = vxpose.xlu0.b32.cont [5/16] 0.0, 128
        %3841 = vxpose.xlu0.b32.cont [6/16] 0.0, 128
        %3842 = vxpose.xlu0.b32.cont [7/16] 0.0, 128
        %3843 = vxpose.xlu0.b32.cont [8/16] 0.0, 128
        %3844 = vxpose.xlu0.b32.cont [9/16] 0.0, 128
        %3845 = vxpose.xlu0.b32.cont [10/16] 0.0, 128
        %3846 = vxpose.xlu0.b32.cont [11/16] 0.0, 128
        %3847 = vxpose.xlu0.b32.cont [12/16] 0.0, 128
        %3848 = vxpose.xlu0.b32.cont [13/16] 0.0, 128
        %3849 = vxpose.xlu0.b32.cont [14/16] 0.0, 128
        %3850 = vxpose.xlu0.b32.cont [15/16] 0.0, 128
        %3851 = vxpose.xlu0.b32.end [16/16] 0.0, 128
        %v3852 = vpop.trf.xlu0
        %v3853 = vpop.trf.xlu0
        %v3854 = vpop.trf.xlu0
        %v3855 = vpop.trf.xlu0
        %v3856 = vpop.trf.xlu0
        %v3857 = vpop.trf.xlu0
        %v3858 = vpop.trf.xlu0
        %v3859 = vpop.trf.xlu0
        %v3860 = vpop.trf.xlu0
        %v3861 = vpop.trf.xlu0
        %v3862 = vpop.trf.xlu0
        %v3863 = vpop.trf.xlu0
        %v3864 = vpop.trf.xlu0
        %v3865 = vpop.trf.xlu0
        %v3866 = vpop.trf.xlu0
        %v3867 = vpop.trf.xlu0
        %v3868 = vmul.f32 %v3820, 0.17677669
        %v3869 = vmul.f32 %v3821, 0.17677669
        %v3870 = vmul.f32 %v3822, 0.17677669
        %v3871 = vmul.f32 %v3823, 0.17677669
        %v3872 = vmul.f32 %v3824, 0.17677669
        %v3873 = vmul.f32 %v3825, 0.17677669
        %v3874 = vmul.f32 %v3826, 0.17677669
        %v3875 = vmul.f32 %v3827, 0.17677669
        %v3876 = vmul.f32 %v3828, 0.17677669
        %v3877 = vmul.f32 %v3829, 0.17677669
        %v3878 = vmul.f32 %v3830, 0.17677669
        %v3879 = vmul.f32 %v3831, 0.17677669
        %v3880 = vmul.f32 %v3832, 0.17677669
        %v3881 = vmul.f32 %v3833, 0.17677669
        %v3882 = vmul.f32 %v3834, 0.17677669
        %v3883 = vmul.f32 %v3835, 0.17677669
        %v3884 = vmul.f32 %v3852, 0.17677669
        %v3885 = vmul.f32 %v3853, 0.17677669
        %v3886 = vmul.f32 %v3854, 0.17677669
        %v3887 = vmul.f32 %v3855, 0.17677669
        %v3888 = vmul.f32 %v3856, 0.17677669
        %v3889 = vmul.f32 %v3857, 0.17677669
        %v3890 = vmul.f32 %v3858, 0.17677669
        %v3891 = vmul.f32 %v3859, 0.17677669
        %v3892 = vmul.f32 %v3860, 0.17677669
        %v3893 = vmul.f32 %v3861, 0.17677669
        %v3894 = vmul.f32 %v3862, 0.17677669
        %v3895 = vmul.f32 %v3863, 0.17677669
        %v3896 = vmul.f32 %v3864, 0.17677669
        %v3897 = vmul.f32 %v3865, 0.17677669
        %v3898 = vmul.f32 %v3866, 0.17677669
        %v3899 = vmul.f32 %v3867, 0.17677669
        %v3901 = vsel %vm252, %v3868, 0
        %v3904 = vsel %vm252, %v3869, 0
        %v3907 = vsel %vm252, %v3870, 0
        %v3910 = vsel %vm252, %v3871, 0
        %v3913 = vsel %vm252, %v3872, 0
        %v3916 = vsel %vm252, %v3873, 0
        %v3919 = vsel %vm252, %v3874, 0
        %v3922 = vsel %vm252, %v3875, 0
        %v3925 = vsel %vm252, %v3876, 0
        %v3928 = vsel %vm252, %v3877, 0
        %v3931 = vsel %vm252, %v3878, 0
        %v3934 = vsel %vm252, %v3879, 0
        %v3937 = vsel %vm252, %v3880, 0
        %v3940 = vsel %vm252, %v3881, 0
        %v3943 = vsel %vm252, %v3882, 0
        %v3946 = vsel %vm252, %v3883, 0
        %v3949 = vsel %vm252, %v3884, 0
        %v3952 = vsel %vm252, %v3885, 0
        %v3955 = vsel %vm252, %v3886, 0
        %v3958 = vsel %vm252, %v3887, 0
        %v3961 = vsel %vm252, %v3888, 0
        %v3964 = vsel %vm252, %v3889, 0
        %v3967 = vsel %vm252, %v3890, 0
        %v3970 = vsel %vm252, %v3891, 0
        %v3973 = vsel %vm252, %v3892, 0
        %v3976 = vsel %vm252, %v3893, 0
        %v3979 = vsel %vm252, %v3894, 0
        %v3982 = vsel %vm252, %v3895, 0
        %v3985 = vsel %vm252, %v3896, 0
        %v3988 = vsel %vm252, %v3897, 0
        %v3991 = vsel %vm252, %v3898, 0
        %v3994 = vsel %vm252, %v3899, 0
        %3996 = vmatprep.subr.mxu0 0.0
        %3997 = vmatpush1.msra.mxu0 0.0
        %3998 = vmatprep.subr.mxu0 0.0
        %3999 = vmatpush1.msra.mxu0 0.0
        %4000 = vmatprep.subr.mxu0 0.0
        %4001 = vmatpush1.msra.mxu0 0.0
        %4002 = vmatprep.subr.mxu0 0.0
        %4003 = vmatpush1.msra.mxu0 0.0
        %4004 = vmatprep.subr.mxu0 0.0
        %4005 = vmatpush1.msra.mxu0 0.0
        %4006 = vmatprep.subr.mxu0 0.0
        %4007 = vmatpush1.msra.mxu0 0.0
        %4008 = vmatprep.subr.mxu0 0.0
        %4009 = vmatpush1.msra.mxu0 0.0
        %4010 = vmatprep.subr.mxu0 0.0
        %4011 = vmatpush1.msra.mxu0 0.0
        %4012 = vmatprep.subr.mxu0 0.0
        %4013 = vmatpush1.msra.mxu0 0.0
        %4014 = vmatprep.subr.mxu0 0.0
        %4015 = vmatpush1.msra.mxu0 0.0
        %4016 = vmatprep.subr.mxu0 0.0
        %4017 = vmatpush1.msra.mxu0 0.0
        %4018 = vmatprep.subr.mxu0 0.0
        %4019 = vmatpush1.msra.mxu0 0.0
        %4020 = vmatprep.subr.mxu0 %v652
        %4021 = vmatpush1.msra.mxu0 %v650
        %4022 = vmatprep.subr.mxu0 %v646
        %4023 = vmatpush1.msra.mxu0 %v644
        %4024 = vmatprep.subr.mxu0 %v640
        %4025 = vmatpush1.msra.mxu0 %v638
        %4026 = vmatprep.subr.mxu0 %v634
        %4027 = vmatpush1.msra.mxu0 %v632
        %4028 = vmatprep.subr.mxu0 0.0
        %4029 = vmatpush2.msra.mxu0 0.0
        %4030 = vmatprep.subr.mxu0 0.0
        %4031 = vmatpush2.msra.mxu0 0.0
        %4032 = vmatprep.subr.mxu0 0.0
        %4033 = vmatpush2.msra.mxu0 0.0
        %4034 = vmatprep.subr.mxu0 0.0
        %4035 = vmatpush2.msra.mxu0 0.0
        %4036 = vmatprep.subr.mxu0 0.0
        %4037 = vmatpush2.msra.mxu0 0.0
        %4038 = vmatprep.subr.mxu0 0.0
        %4039 = vmatpush2.msra.mxu0 0.0
        %4040 = vmatprep.subr.mxu0 0.0
        %4041 = vmatpush2.msra.mxu0 0.0
        %4042 = vmatprep.subr.mxu0 0.0
        %4043 = vmatpush2.msra.mxu0 0.0
        %4044 = vmatprep.subr.mxu0 0.0
        %4045 = vmatpush2.msra.mxu0 0.0
        %4046 = vmatprep.subr.mxu0 0.0
        %4047 = vmatpush2.msra.mxu0 0.0
        %4048 = vmatprep.subr.mxu0 0.0
        %4049 = vmatpush2.msra.mxu0 0.0
        %4050 = vmatprep.subr.mxu0 0.0
        %4051 = vmatpush2.msra.mxu0 0.0
        %4052 = vmatprep.subr.mxu0 0.0
        %4053 = vmatpush2.msra.mxu0 0.0
        %4054 = vmatprep.subr.mxu0 0.0
        %4055 = vmatpush2.msra.mxu0 0.0
        %4056 = vmatprep.subr.mxu0 0.0
        %4057 = vmatpush2.msra.mxu0 0.0
        %4058 = vmatprep.subr.mxu0 0.0
        %4059 = vmatpush2.msra.mxu0 0.0
        %4060 = vmatprep.mubr.f32.mxu0 0.0
        %4061 = vmatmul.mubr.f32.gmra.mxu0 %v3901
        %v4062 = vpop.f32.mrf.mxu0
        %v4063 = vadd.f32 0.0, %v4062
        %v4064 = vpop.f32.mrf.mxu0
        %v4065 = vadd.f32 0.0, %v4064
        %4066 = vmatprep.mubr.f32.mxu0 0.0
        %4067 = vmatmul.mubr.f32.gmra.mxu0 %v3904
        %v4068 = vpop.f32.mrf.mxu0
        %v4069 = vadd.f32 0.0, %v4068
        %v4070 = vpop.f32.mrf.mxu0
        %v4071 = vadd.f32 0.0, %v4070
        %4072 = vmatprep.mubr.f32.mxu0 0.0
        %4073 = vmatmul.mubr.f32.gmra.mxu0 %v3907
        %v4074 = vpop.f32.mrf.mxu0
        %v4075 = vadd.f32 0.0, %v4074
        %v4076 = vpop.f32.mrf.mxu0
        %v4077 = vadd.f32 0.0, %v4076
        %4078 = vmatprep.mubr.f32.mxu0 0.0
        %4079 = vmatmul.mubr.f32.gmra.mxu0 %v3910
        %v4080 = vpop.f32.mrf.mxu0
        %v4081 = vadd.f32 0.0, %v4080
        %v4082 = vpop.f32.mrf.mxu0
        %v4083 = vadd.f32 0.0, %v4082
        %4084 = vmatprep.mubr.f32.mxu0 0.0
        %4085 = vmatmul.mubr.f32.gmra.mxu0 %v3913
        %v4086 = vpop.f32.mrf.mxu0
        %v4087 = vadd.f32 0.0, %v4086
        %v4088 = vpop.f32.mrf.mxu0
        %v4089 = vadd.f32 0.0, %v4088
        %4090 = vmatprep.mubr.f32.mxu0 0.0
        %4091 = vmatmul.mubr.f32.gmra.mxu0 %v3916
        %v4092 = vpop.f32.mrf.mxu0
        %v4093 = vadd.f32 0.0, %v4092
        %v4094 = vpop.f32.mrf.mxu0
        %v4095 = vadd.f32 0.0, %v4094
        %4096 = vmatprep.mubr.f32.mxu0 0.0
        %4097 = vmatmul.mubr.f32.gmra.mxu0 %v3919
        %v4098 = vpop.f32.mrf.mxu0
        %v4099 = vadd.f32 0.0, %v4098
        %v4100 = vpop.f32.mrf.mxu0
        %v4101 = vadd.f32 0.0, %v4100
        %4102 = vmatprep.mubr.f32.mxu0 0.0
        %4103 = vmatmul.mubr.f32.gmra.mxu0 %v3922
        %v4104 = vpop.f32.mrf.mxu0
        %v4105 = vadd.f32 0.0, %v4104
        %v4106 = vpop.f32.mrf.mxu0
        %v4107 = vadd.f32 0.0, %v4106
        %4108 = vmatprep.mubr.f32.mxu0 0.0
        %4109 = vmatmul.mubr.f32.gmra.mxu0 %v3925
        %v4110 = vpop.f32.mrf.mxu0
        %v4111 = vadd.f32 0.0, %v4110
        %v4112 = vpop.f32.mrf.mxu0
        %v4113 = vadd.f32 0.0, %v4112
        %4114 = vmatprep.mubr.f32.mxu0 0.0
        %4115 = vmatmul.mubr.f32.gmra.mxu0 %v3928
        %v4116 = vpop.f32.mrf.mxu0
        %v4117 = vadd.f32 0.0, %v4116
        %v4118 = vpop.f32.mrf.mxu0
        %v4119 = vadd.f32 0.0, %v4118
        %4120 = vmatprep.mubr.f32.mxu0 0.0
        %4121 = vmatmul.mubr.f32.gmra.mxu0 %v3931
        %v4122 = vpop.f32.mrf.mxu0
        %v4123 = vadd.f32 0.0, %v4122
        %v4124 = vpop.f32.mrf.mxu0
        %v4125 = vadd.f32 0.0, %v4124
        %4126 = vmatprep.mubr.f32.mxu0 0.0
        %4127 = vmatmul.mubr.f32.gmra.mxu0 %v3934
        %v4128 = vpop.f32.mrf.mxu0
        %v4129 = vadd.f32 0.0, %v4128
        %v4130 = vpop.f32.mrf.mxu0
        %v4131 = vadd.f32 0.0, %v4130
        %4132 = vmatprep.mubr.f32.mxu0 0.0
        %4133 = vmatmul.mubr.f32.gmra.mxu0 %v3937
        %v4134 = vpop.f32.mrf.mxu0
        %v4135 = vadd.f32 0.0, %v4134
        %v4136 = vpop.f32.mrf.mxu0
        %v4137 = vadd.f32 0.0, %v4136
        %4138 = vmatprep.mubr.f32.mxu0 0.0
        %4139 = vmatmul.mubr.f32.gmra.mxu0 %v3940
        %v4140 = vpop.f32.mrf.mxu0
        %v4141 = vadd.f32 0.0, %v4140
        %v4142 = vpop.f32.mrf.mxu0
        %v4143 = vadd.f32 0.0, %v4142
        %4144 = vmatprep.mubr.f32.mxu0 0.0
        %4145 = vmatmul.mubr.f32.gmra.mxu0 %v3943
        %v4146 = vpop.f32.mrf.mxu0
        %v4147 = vadd.f32 0.0, %v4146
        %v4148 = vpop.f32.mrf.mxu0
        %v4149 = vadd.f32 0.0, %v4148
        %4150 = vmatprep.mubr.f32.mxu0 0.0
        %4151 = vmatmul.mubr.f32.gmra.mxu0 %v3946
        %v4152 = vpop.f32.mrf.mxu0
        %v4153 = vadd.f32 0.0, %v4152
        %v4154 = vpop.f32.mrf.mxu0
        %v4155 = vadd.f32 0.0, %v4154
        %4156 = vmatprep.mubr.f32.mxu0 0.0
        %4157 = vmatmul.mubr.f32.gmra.mxu0 %v3949
        %v4158 = vpop.f32.mrf.mxu0
        %v4159 = vadd.f32 0.0, %v4158
        %v4160 = vpop.f32.mrf.mxu0
        %v4161 = vadd.f32 0.0, %v4160
        %4162 = vmatprep.mubr.f32.mxu0 0.0
        %4163 = vmatmul.mubr.f32.gmra.mxu0 %v3952
        %v4164 = vpop.f32.mrf.mxu0
        %v4165 = vadd.f32 0.0, %v4164
        %v4166 = vpop.f32.mrf.mxu0
        %v4167 = vadd.f32 0.0, %v4166
        %4168 = vmatprep.mubr.f32.mxu0 0.0
        %4169 = vmatmul.mubr.f32.gmra.mxu0 %v3955
        %v4170 = vpop.f32.mrf.mxu0
        %v4171 = vadd.f32 0.0, %v4170
        %v4172 = vpop.f32.mrf.mxu0
        %v4173 = vadd.f32 0.0, %v4172
        %4174 = vmatprep.mubr.f32.mxu0 0.0
        %4175 = vmatmul.mubr.f32.gmra.mxu0 %v3958
        %v4176 = vpop.f32.mrf.mxu0
        %v4177 = vadd.f32 0.0, %v4176
        %v4178 = vpop.f32.mrf.mxu0
        %v4179 = vadd.f32 0.0, %v4178
        %4180 = vmatprep.mubr.f32.mxu0 0.0
        %4181 = vmatmul.mubr.f32.gmra.mxu0 %v3961
        %v4182 = vpop.f32.mrf.mxu0
        %v4183 = vadd.f32 0.0, %v4182
        %v4184 = vpop.f32.mrf.mxu0
        %v4185 = vadd.f32 0.0, %v4184
        %4186 = vmatprep.mubr.f32.mxu0 0.0
        %4187 = vmatmul.mubr.f32.gmra.mxu0 %v3964
        %v4188 = vpop.f32.mrf.mxu0
        %v4189 = vadd.f32 0.0, %v4188
        %v4190 = vpop.f32.mrf.mxu0
        %v4191 = vadd.f32 0.0, %v4190
        %4192 = vmatprep.mubr.f32.mxu0 0.0
        %4193 = vmatmul.mubr.f32.gmra.mxu0 %v3967
        %v4194 = vpop.f32.mrf.mxu0
        %v4195 = vadd.f32 0.0, %v4194
        %v4196 = vpop.f32.mrf.mxu0
        %v4197 = vadd.f32 0.0, %v4196
        %4198 = vmatprep.mubr.f32.mxu0 0.0
        %4199 = vmatmul.mubr.f32.gmra.mxu0 %v3970
        %v4200 = vpop.f32.mrf.mxu0
        %v4201 = vadd.f32 0.0, %v4200
        %v4202 = vpop.f32.mrf.mxu0
        %v4203 = vadd.f32 0.0, %v4202
        %4204 = vmatprep.mubr.f32.mxu0 0.0
        %4205 = vmatmul.mubr.f32.gmra.mxu0 %v3973
        %v4206 = vpop.f32.mrf.mxu0
        %v4207 = vadd.f32 0.0, %v4206
        %v4208 = vpop.f32.mrf.mxu0
        %v4209 = vadd.f32 0.0, %v4208
        %4210 = vmatprep.mubr.f32.mxu0 0.0
        %4211 = vmatmul.mubr.f32.gmra.mxu0 %v3976
        %v4212 = vpop.f32.mrf.mxu0
        %v4213 = vadd.f32 0.0, %v4212
        %v4214 = vpop.f32.mrf.mxu0
        %v4215 = vadd.f32 0.0, %v4214
        %4216 = vmatprep.mubr.f32.mxu0 0.0
        %4217 = vmatmul.mubr.f32.gmra.mxu0 %v3979
        %v4218 = vpop.f32.mrf.mxu0
        %v4219 = vadd.f32 0.0, %v4218
        %v4220 = vpop.f32.mrf.mxu0
        %v4221 = vadd.f32 0.0, %v4220
        %4222 = vmatprep.mubr.f32.mxu0 0.0
        %4223 = vmatmul.mubr.f32.gmra.mxu0 %v3982
        %v4224 = vpop.f32.mrf.mxu0
        %v4225 = vadd.f32 0.0, %v4224
        %v4226 = vpop.f32.mrf.mxu0
        %v4227 = vadd.f32 0.0, %v4226
        %4228 = vmatprep.mubr.f32.mxu0 0.0
        %4229 = vmatmul.mubr.f32.gmra.mxu0 %v3985
        %v4230 = vpop.f32.mrf.mxu0
        %v4231 = vadd.f32 0.0, %v4230
        %v4232 = vpop.f32.mrf.mxu0
        %v4233 = vadd.f32 0.0, %v4232
        %4234 = vmatprep.mubr.f32.mxu0 0.0
        %4235 = vmatmul.mubr.f32.gmra.mxu0 %v3988
        %v4236 = vpop.f32.mrf.mxu0
        %v4237 = vadd.f32 0.0, %v4236
        %v4238 = vpop.f32.mrf.mxu0
        %v4239 = vadd.f32 0.0, %v4238
        %4240 = vmatprep.mubr.f32.mxu0 0.0
        %4241 = vmatmul.mubr.f32.gmra.mxu0 %v3991
        %v4242 = vpop.f32.mrf.mxu0
        %v4243 = vadd.f32 0.0, %v4242
        %v4244 = vpop.f32.mrf.mxu0
        %v4245 = vadd.f32 0.0, %v4244
        %4246 = vmatprep.mubr.f32.mxu0 0.0
        %4247 = vmatmul.mubr.f32.gmra.mxu0 %v3994
        %v4248 = vpop.f32.mrf.mxu0
        %v4249 = vadd.f32 0.0, %v4248
        %v4250 = vpop.f32.mrf.mxu0
        %v4251 = vadd.f32 0.0, %v4250
        %4252 = vdwg.mxu0
        %v4253 = vmax.f32 %v4063, %v4065
        %4254 = vmax.xlane.f32.xlu0 %v4253
        %v4255 = vpop.xlane.xlu0 %4254
        %v4256 = vmax.f32 %v4069, %v4071
        %4257 = vmax.xlane.f32.xlu0 %v4256
        %v4258 = vpop.xlane.xlu0 %4257
        %v4259 = vmax.f32 %v4075, %v4077
        %4260 = vmax.xlane.f32.xlu0 %v4259
        %v4261 = vpop.xlane.xlu0 %4260
        %v4262 = vmax.f32 %v4081, %v4083
        %4263 = vmax.xlane.f32.xlu0 %v4262
        %v4264 = vpop.xlane.xlu0 %4263
        %v4265 = vmax.f32 %v4087, %v4089
        %4266 = vmax.xlane.f32.xlu0 %v4265
        %v4267 = vpop.xlane.xlu0 %4266
        %v4268 = vmax.f32 %v4093, %v4095
        %4269 = vmax.xlane.f32.xlu0 %v4268
        %v4270 = vpop.xlane.xlu0 %4269
        %v4271 = vmax.f32 %v4099, %v4101
        %4272 = vmax.xlane.f32.xlu0 %v4271
        %v4273 = vpop.xlane.xlu0 %4272
        %v4274 = vmax.f32 %v4105, %v4107
        %4275 = vmax.xlane.f32.xlu0 %v4274
        %v4276 = vpop.xlane.xlu0 %4275
        %v4277 = vmax.f32 %v4111, %v4113
        %4278 = vmax.xlane.f32.xlu0 %v4277
        %v4279 = vpop.xlane.xlu0 %4278
        %v4280 = vmax.f32 %v4117, %v4119
        %4281 = vmax.xlane.f32.xlu0 %v4280
        %v4282 = vpop.xlane.xlu0 %4281
        %v4283 = vmax.f32 %v4123, %v4125
        %4284 = vmax.xlane.f32.xlu0 %v4283
        %v4285 = vpop.xlane.xlu0 %4284
        %v4286 = vmax.f32 %v4129, %v4131
        %4287 = vmax.xlane.f32.xlu0 %v4286
        %v4288 = vpop.xlane.xlu0 %4287
        %v4289 = vmax.f32 %v4135, %v4137
        %4290 = vmax.xlane.f32.xlu0 %v4289
        %v4291 = vpop.xlane.xlu0 %4290
        %v4292 = vmax.f32 %v4141, %v4143
        %4293 = vmax.xlane.f32.xlu0 %v4292
        %v4294 = vpop.xlane.xlu0 %4293
        %v4295 = vmax.f32 %v4147, %v4149
        %4296 = vmax.xlane.f32.xlu0 %v4295
        %v4297 = vpop.xlane.xlu0 %4296
        %v4298 = vmax.f32 %v4153, %v4155
        %4299 = vmax.xlane.f32.xlu0 %v4298
        %v4300 = vpop.xlane.xlu0 %4299
        %v4301 = vmax.f32 %v4159, %v4161
        %4302 = vmax.xlane.f32.xlu0 %v4301
        %v4303 = vpop.xlane.xlu0 %4302
        %v4304 = vmax.f32 %v4165, %v4167
        %4305 = vmax.xlane.f32.xlu0 %v4304
        %v4306 = vpop.xlane.xlu0 %4305
        %v4307 = vmax.f32 %v4171, %v4173
        %4308 = vmax.xlane.f32.xlu0 %v4307
        %v4309 = vpop.xlane.xlu0 %4308
        %v4310 = vmax.f32 %v4177, %v4179
        %4311 = vmax.xlane.f32.xlu0 %v4310
        %v4312 = vpop.xlane.xlu0 %4311
        %v4313 = vmax.f32 %v4183, %v4185
        %4314 = vmax.xlane.f32.xlu0 %v4313
        %v4315 = vpop.xlane.xlu0 %4314
        %v4316 = vmax.f32 %v4189, %v4191
        %4317 = vmax.xlane.f32.xlu0 %v4316
        %v4318 = vpop.xlane.xlu0 %4317
        %v4319 = vmax.f32 %v4195, %v4197
        %4320 = vmax.xlane.f32.xlu0 %v4319
        %v4321 = vpop.xlane.xlu0 %4320
        %v4322 = vmax.f32 %v4201, %v4203
        %4323 = vmax.xlane.f32.xlu0 %v4322
        %v4324 = vpop.xlane.xlu0 %4323
        %v4325 = vmax.f32 %v4207, %v4209
        %4326 = vmax.xlane.f32.xlu0 %v4325
        %v4327 = vpop.xlane.xlu0 %4326
        %v4328 = vmax.f32 %v4213, %v4215
        %4329 = vmax.xlane.f32.xlu0 %v4328
        %v4330 = vpop.xlane.xlu0 %4329
        %v4331 = vmax.f32 %v4219, %v4221
        %4332 = vmax.xlane.f32.xlu0 %v4331
        %v4333 = vpop.xlane.xlu0 %4332
        %v4334 = vmax.f32 %v4225, %v4227
        %4335 = vmax.xlane.f32.xlu0 %v4334
        %v4336 = vpop.xlane.xlu0 %4335
        %v4337 = vmax.f32 %v4231, %v4233
        %4338 = vmax.xlane.f32.xlu0 %v4337
        %v4339 = vpop.xlane.xlu0 %4338
        %v4340 = vmax.f32 %v4237, %v4239
        %4341 = vmax.xlane.f32.xlu0 %v4340
        %v4342 = vpop.xlane.xlu0 %4341
        %v4343 = vmax.f32 %v4243, %v4245
        %4344 = vmax.xlane.f32.xlu0 %v4343
        %v4345 = vpop.xlane.xlu0 %4344
        %v4346 = vmax.f32 %v4249, %v4251
        %4347 = vmax.xlane.f32.xlu0 %v4346
        %v4348 = vpop.xlane.xlu0 %4347
        %v4349 = vsub.f32 %v4063, %v4255
        %v4350 = vsub.f32 %v4065, %v4255
        %v4351 = vsub.f32 %v4069, %v4258
        %v4352 = vsub.f32 %v4071, %v4258
        %v4353 = vsub.f32 %v4075, %v4261
        %v4354 = vsub.f32 %v4077, %v4261
        %v4355 = vsub.f32 %v4081, %v4264
        %v4356 = vsub.f32 %v4083, %v4264
        %v4357 = vsub.f32 %v4087, %v4267
        %v4358 = vsub.f32 %v4089, %v4267
        %v4359 = vsub.f32 %v4093, %v4270
        %v4360 = vsub.f32 %v4095, %v4270
        %v4361 = vsub.f32 %v4099, %v4273
        %v4362 = vsub.f32 %v4101, %v4273
        %v4363 = vsub.f32 %v4105, %v4276
        %v4364 = vsub.f32 %v4107, %v4276
        %v4365 = vsub.f32 %v4111, %v4279
        %v4366 = vsub.f32 %v4113, %v4279
        %v4367 = vsub.f32 %v4117, %v4282
        %v4368 = vsub.f32 %v4119, %v4282
        %v4369 = vsub.f32 %v4123, %v4285
        %v4370 = vsub.f32 %v4125, %v4285
        %v4371 = vsub.f32 %v4129, %v4288
        %v4372 = vsub.f32 %v4131, %v4288
        %v4373 = vsub.f32 %v4135, %v4291
        %v4374 = vsub.f32 %v4137, %v4291
        %v4375 = vsub.f32 %v4141, %v4294
        %v4376 = vsub.f32 %v4143, %v4294
        %v4377 = vsub.f32 %v4147, %v4297
        %v4378 = vsub.f32 %v4149, %v4297
        %v4379 = vsub.f32 %v4153, %v4300
        %v4380 = vsub.f32 %v4155, %v4300
        %v4381 = vsub.f32 %v4159, %v4303
        %v4382 = vsub.f32 %v4161, %v4303
        %v4383 = vsub.f32 %v4165, %v4306
        %v4384 = vsub.f32 %v4167, %v4306
        %v4385 = vsub.f32 %v4171, %v4309
        %v4386 = vsub.f32 %v4173, %v4309
        %v4387 = vsub.f32 %v4177, %v4312
        %v4388 = vsub.f32 %v4179, %v4312
        %v4389 = vsub.f32 %v4183, %v4315
        %v4390 = vsub.f32 %v4185, %v4315
        %v4391 = vsub.f32 %v4189, %v4318
        %v4392 = vsub.f32 %v4191, %v4318
        %v4393 = vsub.f32 %v4195, %v4321
        %v4394 = vsub.f32 %v4197, %v4321
        %v4395 = vsub.f32 %v4201, %v4324
        %v4396 = vsub.f32 %v4203, %v4324
        %v4397 = vsub.f32 %v4207, %v4327
        %v4398 = vsub.f32 %v4209, %v4327
        %v4399 = vsub.f32 %v4213, %v4330
        %v4400 = vsub.f32 %v4215, %v4330
        %v4401 = vsub.f32 %v4219, %v4333
        %v4402 = vsub.f32 %v4221, %v4333
        %v4403 = vsub.f32 %v4225, %v4336
        %v4404 = vsub.f32 %v4227, %v4336
        %v4405 = vsub.f32 %v4231, %v4339
        %v4406 = vsub.f32 %v4233, %v4339
        %v4407 = vsub.f32 %v4237, %v4342
        %v4408 = vsub.f32 %v4239, %v4342
        %v4409 = vsub.f32 %v4243, %v4345
        %v4410 = vsub.f32 %v4245, %v4345
        %v4411 = vsub.f32 %v4249, %v4348
        %v4412 = vsub.f32 %v4251, %v4348
        %v4413 = vmul.f32 %v4349, 1.442695
        %v4414 = vpow.pop %v4413
        %v4415 = vmul.f32 %v4350, 1.442695
        %v4416 = vpow.pop %v4415
        %v4417 = vmul.f32 %v4351, 1.442695
        %v4418 = vpow.pop %v4417
        %v4419 = vmul.f32 %v4352, 1.442695
        %v4420 = vpow.pop %v4419
        %v4421 = vmul.f32 %v4353, 1.442695
        %v4422 = vpow.pop %v4421
        %v4423 = vmul.f32 %v4354, 1.442695
        %v4424 = vpow.pop %v4423
        %v4425 = vmul.f32 %v4355, 1.442695
        %v4426 = vpow.pop %v4425
        %v4427 = vmul.f32 %v4356, 1.442695
        %v4428 = vpow.pop %v4427
        %v4429 = vmul.f32 %v4357, 1.442695
        %v4430 = vpow.pop %v4429
        %v4431 = vmul.f32 %v4358, 1.442695
        %v4432 = vpow.pop %v4431
        %v4433 = vmul.f32 %v4359, 1.442695
        %v4434 = vpow.pop %v4433
        %v4435 = vmul.f32 %v4360, 1.442695
        %v4436 = vpow.pop %v4435
        %v4437 = vmul.f32 %v4361, 1.442695
        %v4438 = vpow.pop %v4437
        %v4439 = vmul.f32 %v4362, 1.442695
        %v4440 = vpow.pop %v4439
        %v4441 = vmul.f32 %v4363, 1.442695
        %v4442 = vpow.pop %v4441
        %v4443 = vmul.f32 %v4364, 1.442695
        %v4444 = vpow.pop %v4443
        %v4445 = vmul.f32 %v4365, 1.442695
        %v4446 = vpow.pop %v4445
        %v4447 = vmul.f32 %v4366, 1.442695
        %v4448 = vpow.pop %v4447
        %v4449 = vmul.f32 %v4367, 1.442695
        %v4450 = vpow.pop %v4449
        %v4451 = vmul.f32 %v4368, 1.442695
        %v4452 = vpow.pop %v4451
        %v4453 = vmul.f32 %v4369, 1.442695
        %v4454 = vpow.pop %v4453
        %v4455 = vmul.f32 %v4370, 1.442695
        %v4456 = vpow.pop %v4455
        %v4457 = vmul.f32 %v4371, 1.442695
        %v4458 = vpow.pop %v4457
        %v4459 = vmul.f32 %v4372, 1.442695
        %v4460 = vpow.pop %v4459
        %v4461 = vmul.f32 %v4373, 1.442695
        %v4462 = vpow.pop %v4461
        %v4463 = vmul.f32 %v4374, 1.442695
        %v4464 = vpow.pop %v4463
        %v4465 = vmul.f32 %v4375, 1.442695
        %v4466 = vpow.pop %v4465
        %v4467 = vmul.f32 %v4376, 1.442695
        %v4468 = vpow.pop %v4467
        %v4469 = vmul.f32 %v4377, 1.442695
        %v4470 = vpow.pop %v4469
        %v4471 = vmul.f32 %v4378, 1.442695
        %v4472 = vpow.pop %v4471
        %v4473 = vmul.f32 %v4379, 1.442695
        %v4474 = vpow.pop %v4473
        %v4475 = vmul.f32 %v4380, 1.442695
        %v4476 = vpow.pop %v4475
        %v4477 = vmul.f32 %v4381, 1.442695
        %v4478 = vpow.pop %v4477
        %v4479 = vmul.f32 %v4382, 1.442695
        %v4480 = vpow.pop %v4479
        %v4481 = vmul.f32 %v4383, 1.442695
        %v4482 = vpow.pop %v4481
        %v4483 = vmul.f32 %v4384, 1.442695
        %v4484 = vpow.pop %v4483
        %v4485 = vmul.f32 %v4385, 1.442695
        %v4486 = vpow.pop %v4485
        %v4487 = vmul.f32 %v4386, 1.442695
        %v4488 = vpow.pop %v4487
        %v4489 = vmul.f32 %v4387, 1.442695
        %v4490 = vpow.pop %v4489
        %v4491 = vmul.f32 %v4388, 1.442695
        %v4492 = vpow.pop %v4491
        %v4493 = vmul.f32 %v4389, 1.442695
        %v4494 = vpow.pop %v4493
        %v4495 = vmul.f32 %v4390, 1.442695
        %v4496 = vpow.pop %v4495
        %v4497 = vmul.f32 %v4391, 1.442695
        %v4498 = vpow.pop %v4497
        %v4499 = vmul.f32 %v4392, 1.442695
        %v4500 = vpow.pop %v4499
        %v4501 = vmul.f32 %v4393, 1.442695
        %v4502 = vpow.pop %v4501
        %v4503 = vmul.f32 %v4394, 1.442695
        %v4504 = vpow.pop %v4503
        %v4505 = vmul.f32 %v4395, 1.442695
        %v4506 = vpow.pop %v4505
        %v4507 = vmul.f32 %v4396, 1.442695
        %v4508 = vpow.pop %v4507
        %v4509 = vmul.f32 %v4397, 1.442695
        %v4510 = vpow.pop %v4509
        %v4511 = vmul.f32 %v4398, 1.442695
        %v4512 = vpow.pop %v4511
        %v4513 = vmul.f32 %v4399, 1.442695
        %v4514 = vpow.pop %v4513
        %v4515 = vmul.f32 %v4400, 1.442695
        %v4516 = vpow.pop %v4515
        %v4517 = vmul.f32 %v4401, 1.442695
        %v4518 = vpow.pop %v4517
        %v4519 = vmul.f32 %v4402, 1.442695
        %v4520 = vpow.pop %v4519
        %v4521 = vmul.f32 %v4403, 1.442695
        %v4522 = vpow.pop %v4521
        %v4523 = vmul.f32 %v4404, 1.442695
        %v4524 = vpow.pop %v4523
        %v4525 = vmul.f32 %v4405, 1.442695
        %v4526 = vpow.pop %v4525
        %v4527 = vmul.f32 %v4406, 1.442695
        %v4528 = vpow.pop %v4527
        %v4529 = vmul.f32 %v4407, 1.442695
        %v4530 = vpow.pop %v4529
        %v4531 = vmul.f32 %v4408, 1.442695
        %v4532 = vpow.pop %v4531
        %v4533 = vmul.f32 %v4409, 1.442695
        %v4534 = vpow.pop %v4533
        %v4535 = vmul.f32 %v4410, 1.442695
        %v4536 = vpow.pop %v4535
        %v4537 = vmul.f32 %v4411, 1.442695
        %v4538 = vpow.pop %v4537
        %v4539 = vmul.f32 %v4412, 1.442695
        %v4540 = vpow.pop %v4539
        %v4541 = vadd.f32 %v4414, %v4416
        %4542 = vadd.xlane.f32.xlu0 %v4541
        %v4543 = vpop.xlane.xlu0 %4542
        %v4544 = vadd.f32 %v4418, %v4420
        %4545 = vadd.xlane.f32.xlu0 %v4544
        %v4546 = vpop.xlane.xlu0 %4545
        %v4547 = vadd.f32 %v4422, %v4424
        %4548 = vadd.xlane.f32.xlu0 %v4547
        %v4549 = vpop.xlane.xlu0 %4548
        %v4550 = vadd.f32 %v4426, %v4428
        %4551 = vadd.xlane.f32.xlu0 %v4550
        %v4552 = vpop.xlane.xlu0 %4551
        %v4553 = vadd.f32 %v4430, %v4432
        %4554 = vadd.xlane.f32.xlu0 %v4553
        %v4555 = vpop.xlane.xlu0 %4554
        %v4556 = vadd.f32 %v4434, %v4436
        %4557 = vadd.xlane.f32.xlu0 %v4556
        %v4558 = vpop.xlane.xlu0 %4557
        %v4559 = vadd.f32 %v4438, %v4440
        %4560 = vadd.xlane.f32.xlu0 %v4559
        %v4561 = vpop.xlane.xlu0 %4560
        %v4562 = vadd.f32 %v4442, %v4444
        %4563 = vadd.xlane.f32.xlu0 %v4562
        %v4564 = vpop.xlane.xlu0 %4563
        %v4565 = vadd.f32 %v4446, %v4448
        %4566 = vadd.xlane.f32.xlu0 %v4565
        %v4567 = vpop.xlane.xlu0 %4566
        %v4568 = vadd.f32 %v4450, %v4452
        %4569 = vadd.xlane.f32.xlu0 %v4568
        %v4570 = vpop.xlane.xlu0 %4569
        %v4571 = vadd.f32 %v4454, %v4456
        %4572 = vadd.xlane.f32.xlu0 %v4571
        %v4573 = vpop.xlane.xlu0 %4572
        %v4574 = vadd.f32 %v4458, %v4460
        %4575 = vadd.xlane.f32.xlu0 %v4574
        %v4576 = vpop.xlane.xlu0 %4575
        %v4577 = vadd.f32 %v4462, %v4464
        %4578 = vadd.xlane.f32.xlu0 %v4577
        %v4579 = vpop.xlane.xlu0 %4578
        %v4580 = vadd.f32 %v4466, %v4468
        %4581 = vadd.xlane.f32.xlu0 %v4580
        %v4582 = vpop.xlane.xlu0 %4581
        %v4583 = vadd.f32 %v4470, %v4472
        %4584 = vadd.xlane.f32.xlu0 %v4583
        %v4585 = vpop.xlane.xlu0 %4584
        %v4586 = vadd.f32 %v4474, %v4476
        %4587 = vadd.xlane.f32.xlu0 %v4586
        %v4588 = vpop.xlane.xlu0 %4587
        %v4589 = vadd.f32 %v4478, %v4480
        %4590 = vadd.xlane.f32.xlu0 %v4589
        %v4591 = vpop.xlane.xlu0 %4590
        %v4592 = vadd.f32 %v4482, %v4484
        %4593 = vadd.xlane.f32.xlu0 %v4592
        %v4594 = vpop.xlane.xlu0 %4593
        %v4595 = vadd.f32 %v4486, %v4488
        %4596 = vadd.xlane.f32.xlu0 %v4595
        %v4597 = vpop.xlane.xlu0 %4596
        %v4598 = vadd.f32 %v4490, %v4492
        %4599 = vadd.xlane.f32.xlu0 %v4598
        %v4600 = vpop.xlane.xlu0 %4599
        %v4601 = vadd.f32 %v4494, %v4496
        %4602 = vadd.xlane.f32.xlu0 %v4601
        %v4603 = vpop.xlane.xlu0 %4602
        %v4604 = vadd.f32 %v4498, %v4500
        %4605 = vadd.xlane.f32.xlu0 %v4604
        %v4606 = vpop.xlane.xlu0 %4605
        %v4607 = vadd.f32 %v4502, %v4504
        %4608 = vadd.xlane.f32.xlu0 %v4607
        %v4609 = vpop.xlane.xlu0 %4608
        %v4610 = vadd.f32 %v4506, %v4508
        %4611 = vadd.xlane.f32.xlu0 %v4610
        %v4612 = vpop.xlane.xlu0 %4611
        %v4613 = vadd.f32 %v4510, %v4512
        %4614 = vadd.xlane.f32.xlu0 %v4613
        %v4615 = vpop.xlane.xlu0 %4614
        %v4616 = vadd.f32 %v4514, %v4516
        %4617 = vadd.xlane.f32.xlu0 %v4616
        %v4618 = vpop.xlane.xlu0 %4617
        %v4619 = vadd.f32 %v4518, %v4520
        %4620 = vadd.xlane.f32.xlu0 %v4619
        %v4621 = vpop.xlane.xlu0 %4620
        %v4622 = vadd.f32 %v4522, %v4524
        %4623 = vadd.xlane.f32.xlu0 %v4622
        %v4624 = vpop.xlane.xlu0 %4623
        %v4625 = vadd.f32 %v4526, %v4528
        %4626 = vadd.xlane.f32.xlu0 %v4625
        %v4627 = vpop.xlane.xlu0 %4626
        %v4628 = vadd.f32 %v4530, %v4532
        %4629 = vadd.xlane.f32.xlu0 %v4628
        %v4630 = vpop.xlane.xlu0 %4629
        %v4631 = vadd.f32 %v4534, %v4536
        %4632 = vadd.xlane.f32.xlu0 %v4631
        %v4633 = vpop.xlane.xlu0 %4632
        %v4634 = vadd.f32 %v4538, %v4540
        %4635 = vadd.xlane.f32.xlu0 %v4634
        %v4636 = vpop.xlane.xlu0 %4635
        %v4637 = vrcp.pop %v4543
        %v4638 = vmul.f32 %v4414, %v4637
        %v4639 = vmul.f32 %v4416, %v4637
        %v4640 = vrcp.pop %v4546
        %v4641 = vmul.f32 %v4418, %v4640
        %v4642 = vmul.f32 %v4420, %v4640
        %v4643 = vrcp.pop %v4549
        %v4644 = vmul.f32 %v4422, %v4643
        %v4645 = vmul.f32 %v4424, %v4643
        %v4646 = vrcp.pop %v4552
        %v4647 = vmul.f32 %v4426, %v4646
        %v4648 = vmul.f32 %v4428, %v4646
        %v4649 = vrcp.pop %v4555
        %v4650 = vmul.f32 %v4430, %v4649
        %v4651 = vmul.f32 %v4432, %v4649
        %v4652 = vrcp.pop %v4558
        %v4653 = vmul.f32 %v4434, %v4652
        %v4654 = vmul.f32 %v4436, %v4652
        %v4655 = vrcp.pop %v4561
        %v4656 = vmul.f32 %v4438, %v4655
        %v4657 = vmul.f32 %v4440, %v4655
        %v4658 = vrcp.pop %v4564
        %v4659 = vmul.f32 %v4442, %v4658
        %v4660 = vmul.f32 %v4444, %v4658
        %v4661 = vrcp.pop %v4567
        %v4662 = vmul.f32 %v4446, %v4661
        %v4663 = vmul.f32 %v4448, %v4661
        %v4664 = vrcp.pop %v4570
        %v4665 = vmul.f32 %v4450, %v4664
        %v4666 = vmul.f32 %v4452, %v4664
        %v4667 = vrcp.pop %v4573
        %v4668 = vmul.f32 %v4454, %v4667
        %v4669 = vmul.f32 %v4456, %v4667
        %v4670 = vrcp.pop %v4576
        %v4671 = vmul.f32 %v4458, %v4670
        %v4672 = vmul.f32 %v4460, %v4670
        %v4673 = vrcp.pop %v4579
        %v4674 = vmul.f32 %v4462, %v4673
        %v4675 = vmul.f32 %v4464, %v4673
        %v4676 = vrcp.pop %v4582
        %v4677 = vmul.f32 %v4466, %v4676
        %v4678 = vmul.f32 %v4468, %v4676
        %v4679 = vrcp.pop %v4585
        %v4680 = vmul.f32 %v4470, %v4679
        %v4681 = vmul.f32 %v4472, %v4679
        %v4682 = vrcp.pop %v4588
        %v4683 = vmul.f32 %v4474, %v4682
        %v4684 = vmul.f32 %v4476, %v4682
        %v4685 = vrcp.pop %v4591
        %v4686 = vmul.f32 %v4478, %v4685
        %v4687 = vmul.f32 %v4480, %v4685
        %v4688 = vrcp.pop %v4594
        %v4689 = vmul.f32 %v4482, %v4688
        %v4690 = vmul.f32 %v4484, %v4688
        %v4691 = vrcp.pop %v4597
        %v4692 = vmul.f32 %v4486, %v4691
        %v4693 = vmul.f32 %v4488, %v4691
        %v4694 = vrcp.pop %v4600
        %v4695 = vmul.f32 %v4490, %v4694
        %v4696 = vmul.f32 %v4492, %v4694
        %v4697 = vrcp.pop %v4603
        %v4698 = vmul.f32 %v4494, %v4697
        %v4699 = vmul.f32 %v4496, %v4697
        %v4700 = vrcp.pop %v4606
        %v4701 = vmul.f32 %v4498, %v4700
        %v4702 = vmul.f32 %v4500, %v4700
        %v4703 = vrcp.pop %v4609
        %v4704 = vmul.f32 %v4502, %v4703
        %v4705 = vmul.f32 %v4504, %v4703
        %v4706 = vrcp.pop %v4612
        %v4707 = vmul.f32 %v4506, %v4706
        %v4708 = vmul.f32 %v4508, %v4706
        %v4709 = vrcp.pop %v4615
        %v4710 = vmul.f32 %v4510, %v4709
        %v4711 = vmul.f32 %v4512, %v4709
        %v4712 = vrcp.pop %v4618
        %v4713 = vmul.f32 %v4514, %v4712
        %v4714 = vmul.f32 %v4516, %v4712
        %v4715 = vrcp.pop %v4621
        %v4716 = vmul.f32 %v4518, %v4715
        %v4717 = vmul.f32 %v4520, %v4715
        %v4718 = vrcp.pop %v4624
        %v4719 = vmul.f32 %v4522, %v4718
        %v4720 = vmul.f32 %v4524, %v4718
        %v4721 = vrcp.pop %v4627
        %v4722 = vmul.f32 %v4526, %v4721
        %v4723 = vmul.f32 %v4528, %v4721
        %v4724 = vrcp.pop %v4630
        %v4725 = vmul.f32 %v4530, %v4724
        %v4726 = vmul.f32 %v4532, %v4724
        %v4727 = vrcp.pop %v4633
        %v4728 = vmul.f32 %v4534, %v4727
        %v4729 = vmul.f32 %v4536, %v4727
        %v4730 = vrcp.pop %v4636
        %v4731 = vmul.f32 %v4538, %v4730
        %v4732 = vmul.f32 %v4540, %v4730
        %4733 = vmatprep.subr.mxu0 %v4684
        %4734 = vmatpush1.xpose.msra.mxu0 %v4683
        %4735 = vmatprep.subr.mxu0 %v4681
        %4736 = vmatpush1.xpose.msra.mxu0 %v4680
        %4737 = vmatprep.subr.mxu0 %v4678
        %4738 = vmatpush1.xpose.msra.mxu0 %v4677
        %4739 = vmatprep.subr.mxu0 %v4675
        %4740 = vmatpush1.xpose.msra.mxu0 %v4674
        %4741 = vmatprep.subr.mxu0 %v4672
        %4742 = vmatpush1.xpose.msra.mxu0 %v4671
        %4743 = vmatprep.subr.mxu0 %v4669
        %4744 = vmatpush1.xpose.msra.mxu0 %v4668
        %4745 = vmatprep.subr.mxu0 %v4666
        %4746 = vmatpush1.xpose.msra.mxu0 %v4665
        %4747 = vmatprep.subr.mxu0 %v4663
        %4748 = vmatpush1.xpose.msra.mxu0 %v4662
        %4749 = vmatprep.subr.mxu0 %v4660
        %4750 = vmatpush1.xpose.msra.mxu0 %v4659
        %4751 = vmatprep.subr.mxu0 %v4657
        %4752 = vmatpush1.xpose.msra.mxu0 %v4656
        %4753 = vmatprep.subr.mxu0 %v4654
        %4754 = vmatpush1.xpose.msra.mxu0 %v4653
        %4755 = vmatprep.subr.mxu0 %v4651
        %4756 = vmatpush1.xpose.msra.mxu0 %v4650
        %4757 = vmatprep.subr.mxu0 %v4648
        %4758 = vmatpush1.xpose.msra.mxu0 %v4647
        %4759 = vmatprep.subr.mxu0 %v4645
        %4760 = vmatpush1.xpose.msra.mxu0 %v4644
        %4761 = vmatprep.subr.mxu0 %v4642
        %4762 = vmatpush1.xpose.msra.mxu0 %v4641
        %4763 = vmatprep.subr.mxu0 %v4639
        %4764 = vmatpush1.xpose.msra.mxu0 %v4638
        %4765 = vmatprep.subr.mxu0 %v4732
        %4766 = vmatpush2.xpose.msra.mxu0 %v4731
        %4767 = vmatprep.subr.mxu0 %v4729
        %4768 = vmatpush2.xpose.msra.mxu0 %v4728
        %4769 = vmatprep.subr.mxu0 %v4726
        %4770 = vmatpush2.xpose.msra.mxu0 %v4725
        %4771 = vmatprep.subr.mxu0 %v4723
        %4772 = vmatpush2.xpose.msra.mxu0 %v4722
        %4773 = vmatprep.subr.mxu0 %v4720
        %4774 = vmatpush2.xpose.msra.mxu0 %v4719
        %4775 = vmatprep.subr.mxu0 %v4717
        %4776 = vmatpush2.xpose.msra.mxu0 %v4716
        %4777 = vmatprep.subr.mxu0 %v4714
        %4778 = vmatpush2.xpose.msra.mxu0 %v4713
        %4779 = vmatprep.subr.mxu0 %v4711
        %4780 = vmatpush2.xpose.msra.mxu0 %v4710
        %4781 = vmatprep.subr.mxu0 %v4708
        %4782 = vmatpush2.xpose.msra.mxu0 %v4707
        %4783 = vmatprep.subr.mxu0 %v4705
        %4784 = vmatpush2.xpose.msra.mxu0 %v4704
        %4785 = vmatprep.subr.mxu0 %v4702
        %4786 = vmatpush2.xpose.msra.mxu0 %v4701
        %4787 = vmatprep.subr.mxu0 %v4699
        %4788 = vmatpush2.xpose.msra.mxu0 %v4698
        %4789 = vmatprep.subr.mxu0 %v4696
        %4790 = vmatpush2.xpose.msra.mxu0 %v4695
        %4791 = vmatprep.subr.mxu0 %v4693
        %4792 = vmatpush2.xpose.msra.mxu0 %v4692
        %4793 = vmatprep.subr.mxu0 %v4690
        %4794 = vmatpush2.xpose.msra.mxu0 %v4689
        %4795 = vmatprep.subr.mxu0 %v4687
        %4796 = vmatpush2.xpose.msra.mxu0 %v4686
        %4797 = vmatprep.mubr.f32.mxu0 %v730
        %4798 = vmatmul.mubr.f32.gmra.mxu0 %v728
        %v4799 = vpop.f32.mrf.mxu0
        %v4800 = vadd.f32 0.0, %v4799
        %v4801 = vpop.f32.mrf.mxu0
        %v4802 = vadd.f32 0.0, %v4801
        %4803 = vmatprep.mubr.f32.mxu0 %v736
        %4804 = vmatmul.mubr.f32.gmra.mxu0 %v734
        %v4805 = vpop.f32.mrf.mxu0
        %v4806 = vadd.f32 0.0, %v4805
        %v4807 = vpop.f32.mrf.mxu0
        %v4808 = vadd.f32 0.0, %v4807
        %4809 = vmatprep.mubr.f32.mxu0 %v742
        %4810 = vmatmul.mubr.f32.gmra.mxu0 %v740
        %v4811 = vpop.f32.mrf.mxu0
        %v4812 = vadd.f32 0.0, %v4811
        %v4813 = vpop.f32.mrf.mxu0
        %v4814 = vadd.f32 0.0, %v4813
        %4815 = vmatprep.mubr.f32.mxu0 %v748
        %4816 = vmatmul.mubr.f32.gmra.mxu0 %v746
        %v4817 = vpop.f32.mrf.mxu0
        %v4818 = vadd.f32 0.0, %v4817
        %v4819 = vpop.f32.mrf.mxu0
        %v4820 = vadd.f32 0.0, %v4819
        %4821 = vdwg.mxu0
        %v4822 = vld [vmem:[%s2] sm:$0xff]
        %v4823 = vld [vmem:[%s2 + $0x8] sm:$0xff]
        %v4824 = vld [vmem:[%s2 + $0x10] sm:$0xff]
        %v4825 = vld [vmem:[%s2 + $0x18] sm:$0xff]
        %v4826 = vld [vmem:[%s3] sm:$0xff]
        %v4827 = vld [vmem:[%s3 + $0x8] sm:$0xff]
        %v4828 = vld [vmem:[%s3 + $0x10] sm:$0xff]
        %v4829 = vld [vmem:[%s3 + $0x18] sm:$0xff]
        %4831 = vset.pattern.permute.xlu0 0
        %4832 = vperm.xlu0 %4831, %v4826
        %v4833 = vpop.permute.xlu0 %4832
        %4836 = vset.pattern.permute.xlu0 0
        %4837 = vperm.xlu0 %4836, %v4827
        %v4838 = vpop.permute.xlu0 %4837
        %4841 = vset.pattern.permute.xlu0 0
        %4842 = vperm.xlu0 %4841, %v4828
        %v4843 = vpop.permute.xlu0 %4842
        %4846 = vset.pattern.permute.xlu0 0
        %4847 = vperm.xlu0 %4846, %v4829
        %v4848 = vpop.permute.xlu0 %4847
        %4850 = vmatprep.subr.mxu0 %v4820
        %4851 = vmatpush1.msra.mxu0 %v4818
        %4852 = vmatprep.subr.mxu0 %v4814
        %4853 = vmatpush1.msra.mxu0 %v4812
        %4854 = vmatprep.subr.mxu0 %v4808
        %4855 = vmatpush1.msra.mxu0 %v4806
        %4856 = vmatprep.subr.mxu0 %v4802
        %4857 = vmatpush1.msra.mxu0 %v4800
        %4858 = vmatprep.subr.mxu0 %v3802
        %4859 = vmatpush1.msra.mxu0 %v3800
        %4860 = vmatprep.subr.mxu0 %v3796
        %4861 = vmatpush1.msra.mxu0 %v3794
        %4862 = vmatprep.subr.mxu0 %v3790
        %4863 = vmatpush1.msra.mxu0 %v3788
        %4864 = vmatprep.subr.mxu0 %v3784
        %4865 = vmatpush1.msra.mxu0 %v3782
        %4866 = vmatprep.subr.mxu0 %v2784
        %4867 = vmatpush1.msra.mxu0 %v2782
        %4868 = vmatprep.subr.mxu0 %v2778
        %4869 = vmatpush1.msra.mxu0 %v2776
        %4870 = vmatprep.subr.mxu0 %v2772
        %4871 = vmatpush1.msra.mxu0 %v2770
        %4872 = vmatprep.subr.mxu0 %v2766
        %4873 = vmatpush1.msra.mxu0 %v2764
        %4874 = vmatprep.subr.mxu0 %v1766
        %4875 = vmatpush1.msra.mxu0 %v1764
        %4876 = vmatprep.subr.mxu0 %v1760
        %4877 = vmatpush1.msra.mxu0 %v1758
        %4878 = vmatprep.subr.mxu0 %v1754
        %4879 = vmatpush1.msra.mxu0 %v1752
        %4880 = vmatprep.subr.mxu0 %v1748
        %4881 = vmatpush1.msra.mxu0 %v1746
        %4882 = vmatprep.subr.mxu0 0.0
        %4883 = vmatpush2.msra.mxu0 0.0
        %4884 = vmatprep.subr.mxu0 0.0
        %4885 = vmatpush2.msra.mxu0 0.0
        %4886 = vmatprep.subr.mxu0 0.0
        %4887 = vmatpush2.msra.mxu0 0.0
        %4888 = vmatprep.subr.mxu0 0.0
        %4889 = vmatpush2.msra.mxu0 0.0
        %4890 = vmatprep.subr.mxu0 0.0
        %4891 = vmatpush2.msra.mxu0 0.0
        %4892 = vmatprep.subr.mxu0 0.0
        %4893 = vmatpush2.msra.mxu0 0.0
        %4894 = vmatprep.subr.mxu0 0.0
        %4895 = vmatpush2.msra.mxu0 0.0
        %4896 = vmatprep.subr.mxu0 0.0
        %4897 = vmatpush2.msra.mxu0 0.0
        %4898 = vmatprep.subr.mxu0 0.0
        %4899 = vmatpush2.msra.mxu0 0.0
        %4900 = vmatprep.subr.mxu0 0.0
        %4901 = vmatpush2.msra.mxu0 0.0
        %4902 = vmatprep.subr.mxu0 0.0
        %4903 = vmatpush2.msra.mxu0 0.0
        %4904 = vmatprep.subr.mxu0 0.0
        %4905 = vmatpush2.msra.mxu0 0.0
        %4906 = vmatprep.subr.mxu0 0.0
        %4907 = vmatpush2.msra.mxu0 0.0
        %4908 = vmatprep.subr.mxu0 0.0
        %4909 = vmatpush2.msra.mxu0 0.0
        %4910 = vmatprep.subr.mxu0 0.0
        %4911 = vmatpush2.msra.mxu0 0.0
        %4912 = vmatprep.subr.mxu0 0.0
        %4913 = vmatpush2.msra.mxu0 0.0
        %4914 = vmatprep.mubr.f32.mxu0 0.0
        %4915 = vmatmul.mubr.f32.gmra.mxu0 %v4822
        %v4916 = vpop.f32.mrf.mxu0
        %v4917 = vadd.f32 %v4833, %v4916
        %v4918 = vpop.f32.mrf.mxu0
        %v4919 = vadd.f32 %v4833, %v4918
        %4920 = vmatprep.mubr.f32.mxu0 0.0
        %4921 = vmatmul.mubr.f32.gmra.mxu0 %v4823
        %v4922 = vpop.f32.mrf.mxu0
        %v4923 = vadd.f32 %v4838, %v4922
        %v4924 = vpop.f32.mrf.mxu0
        %v4925 = vadd.f32 %v4838, %v4924
        %4926 = vmatprep.mubr.f32.mxu0 0.0
        %4927 = vmatmul.mubr.f32.gmra.mxu0 %v4824
        %v4928 = vpop.f32.mrf.mxu0
        %v4929 = vadd.f32 %v4843, %v4928
        %v4930 = vpop.f32.mrf.mxu0
        %v4931 = vadd.f32 %v4843, %v4930
        %4932 = vmatprep.mubr.f32.mxu0 0.0
        %4933 = vmatmul.mubr.f32.gmra.mxu0 %v4825
        %v4934 = vpop.f32.mrf.mxu0
        %v4935 = vadd.f32 %v4848, %v4934
        %v4936 = vpop.f32.mrf.mxu0
        %v4937 = vadd.f32 %v4848, %v4936
        %4938 = vdwg.mxu0
        %v4939 = vadd.f32 %v4917, %v4919
        %4940 = vadd.xlane.f32.xlu0 %v4939
        %v4941 = vpop.xlane.xlu0 %4940
        %v4942 = vadd.f32 %v4923, %v4925
        %4943 = vadd.xlane.f32.xlu0 %v4942
        %v4944 = vpop.xlane.xlu0 %4943
        %v4945 = vadd.f32 %v4929, %v4931
        %4946 = vadd.xlane.f32.xlu0 %v4945
        %v4947 = vpop.xlane.xlu0 %4946
        %v4948 = vadd.f32 %v4935, %v4937
        %4949 = vadd.xlane.f32.xlu0 %v4948
        %v4950 = vpop.xlane.xlu0 %4949
        %v4951 = vadd.f32 %v4941, %v4944
        %v4952 = vadd.f32 %v4951, %v4947
        %v4953 = vadd.f32 %v4952, %v4950
        %v4954 = vrot.slane %v4953, 4
        %v4955 = vadd.f32 %v4953, %v4954
        %v4956 = vrot.slane %v4955, 2
        %v4957 = vadd.f32 %v4955, %v4956
        %v4958 = vrot.slane %v4957, 1
        %v4959 = vadd.f32 %v4957, %v4958
        %v4960 = vrcp.pop 8192.0
        %v4961 = vmul.f32 %v4959, %v4960
        %v4962 = vsub.f32 %v4917, %v4961
        %v4963 = vsub.f32 %v4919, %v4961
        %v4964 = vsub.f32 %v4923, %v4961
        %v4965 = vsub.f32 %v4925, %v4961
        %v4966 = vsub.f32 %v4929, %v4961
        %v4967 = vsub.f32 %v4931, %v4961
        %v4968 = vsub.f32 %v4935, %v4961
        %v4969 = vsub.f32 %v4937, %v4961
        %v4970 = vmul.f32 %v4962, %v4962
        %v4971 = vmul.f32 %v4963, %v4963
        %v4972 = vmul.f32 %v4964, %v4964
        %v4973 = vmul.f32 %v4965, %v4965
        %v4974 = vmul.f32 %v4966, %v4966
        %v4975 = vmul.f32 %v4967, %v4967
        %v4976 = vmul.f32 %v4968, %v4968
        %v4977 = vmul.f32 %v4969, %v4969
        %v4978 = vadd.f32 %v4970, %v4971
        %4979 = vadd.xlane.f32.xlu0 %v4978
        %v4980 = vpop.xlane.xlu0 %4979
        %v4981 = vadd.f32 %v4972, %v4973
        %4982 = vadd.xlane.f32.xlu0 %v4981
        %v4983 = vpop.xlane.xlu0 %4982
        %v4984 = vadd.f32 %v4974, %v4975
        %4985 = vadd.xlane.f32.xlu0 %v4984
        %v4986 = vpop.xlane.xlu0 %4985
        %v4987 = vadd.f32 %v4976, %v4977
        %4988 = vadd.xlane.f32.xlu0 %v4987
        %v4989 = vpop.xlane.xlu0 %4988
        %v4990 = vadd.f32 %v4980, %v4983
        %v4991 = vadd.f32 %v4990, %v4986
        %v4992 = vadd.f32 %v4991, %v4989
        %v4993 = vrot.slane %v4992, 4
        %v4994 = vadd.f32 %v4992, %v4993
        %v4995 = vrot.slane %v4994, 2
        %v4996 = vadd.f32 %v4994, %v4995
        %v4997 = vrot.slane %v4996, 1
        %v4998 = vadd.f32 %v4996, %v4997
        %v4999 = vmul.f32 %v4998, %v4960
        %v5000 = vadd.f32 %v4999, 1e-05
        %v5001 = vrsqrt.pop %v5000
        %v5002 = vmul.f32 %v4962, %v5001
        %v5003 = vmul.f32 %v4963, %v5001
        %v5004 = vmul.f32 %v4964, %v5001
        %v5005 = vmul.f32 %v4965, %v5001
        %v5006 = vmul.f32 %v4966, %v5001
        %v5007 = vmul.f32 %v4967, %v5001
        %v5008 = vmul.f32 %v4968, %v5001
        %v5009 = vmul.f32 %v4969, %v5001
        %5010 = vset.pattern.permute.xlu0 1
        %5011 = vperm.xlu0 %5010, %v4826
        %v5012 = vpop.permute.xlu0 %5011
        %5014 = vset.pattern.permute.xlu0 1
        %5015 = vperm.xlu0 %5014, %v4827
        %v5016 = vpop.permute.xlu0 %5015
        %5018 = vset.pattern.permute.xlu0 1
        %5019 = vperm.xlu0 %5018, %v4828
        %v5020 = vpop.permute.xlu0 %5019
        %5022 = vset.pattern.permute.xlu0 1
        %5023 = vperm.xlu0 %5022, %v4829
        %v5024 = vpop.permute.xlu0 %5023
        %v5026 = vmul.f32 %v5002, %v5012
        %v5027 = vmul.f32 %v5003, %v5012
        %v5028 = vmul.f32 %v5004, %v5016
        %v5029 = vmul.f32 %v5005, %v5016
        %v5030 = vmul.f32 %v5006, %v5020
        %v5031 = vmul.f32 %v5007, %v5020
        %v5032 = vmul.f32 %v5008, %v5024
        %v5033 = vmul.f32 %v5009, %v5024
        %5034 = vset.pattern.permute.xlu0 2
        %5035 = vperm.xlu0 %5034, %v4826
        %v5036 = vpop.permute.xlu0 %5035
        %5038 = vset.pattern.permute.xlu0 2
        %5039 = vperm.xlu0 %5038, %v4827
        %v5040 = vpop.permute.xlu0 %5039
        %5042 = vset.pattern.permute.xlu0 2
        %5043 = vperm.xlu0 %5042, %v4828
        %v5044 = vpop.permute.xlu0 %5043
        %5046 = vset.pattern.permute.xlu0 2
        %5047 = vperm.xlu0 %5046, %v4829
        %v5048 = vpop.permute.xlu0 %5047
        %v5050 = vadd.f32 %v5026, %v5036
        %v5051 = vadd.f32 %v5027, %v5036
        %v5052 = vadd.f32 %v5028, %v5040
        %v5053 = vadd.f32 %v5029, %v5040
        %v5054 = vadd.f32 %v5030, %v5044
        %v5055 = vadd.f32 %v5031, %v5044
        %v5056 = vadd.f32 %v5032, %v5048
        %v5057 = vadd.f32 %v5033, %v5048
        %5058 = vst [vmem:[%s190] sm:$0xff] %v5050
        %5059 = vst [vmem:[%s190 + $0x8] sm:$0xff] %v5051
        %5060 = vst [vmem:[%s190 + $0x10] sm:$0xff] %v5052
        %5061 = vst [vmem:[%s190 + $0x18] sm:$0xff] %v5053
        %5062 = vst [vmem:[%s190 + $0x20] sm:$0xff] %v5054
        %5063 = vst [vmem:[%s190 + $0x28] sm:$0xff] %v5055
        %5064 = vst [vmem:[%s190 + $0x30] sm:$0xff] %v5056
        %5065 = vst [vmem:[%s190 + $0x38] sm:$0xff] %v5057
        %s5066 = sand.u32 %s115, 1
        %s5067 = scalar_lea.sflag [#allocation3], %s5066
        %s5068 = sand.u32 %s115, 1
        %s5069 = smul.addr %s5068, 64
        %s5070 = scalar_lea.vmem [#allocation2], %s5069
        // Predicated region
        $region37: #{tpu_custom_call.1} parent=35 // pred_check
          %p5071 = pneg %p125
        $region38: #{tpu_custom_call.1} parent=35 // pred_check_branch
          %5073 = sbr.rel (%p5071) target = $region40
        $region39: #{tpu_custom_call.1} parent=35 // pred_region
          %s5075 = ssub.s32 1024, 1024
          %5076 = vsyncadd %s5067, %s5075
          %s5077 = smul.addr %s18, 8
          %s5078 = smul.addr %s5077, 128
          %s5079 = scalar_lea.hbm %s4, %s5078
          %s5080 = sshll.u32 %s5070, 4
          %s5081 = int_to_ptr.vmem [resolvable:$true] %s5080
          %5086 = dma.vmem_to_hbm [thread:$0]  %s5081, 1024, %s5079, %s5067, 256, 256, 16
        $region40: #{tpu_custom_call.1} parent=35 // pred_fallthru
          _
      $region36: #{tpu_custom_call.1} parent=5 // pred_fallthru
        _
      %p5087 = scmp.le.s32.totalorder 2, %s13
      // Predicated region
      $region41: #{tpu_custom_call.1} parent=5 // pred_check
        %p5088 = pneg %p5087
      $region42: #{tpu_custom_call.1} parent=5 // pred_check_branch
        %5090 = sbr.rel (%p5088) target = $region44
      $region43: #{tpu_custom_call.1} parent=5 // pred_region
        %s5091 = ssub.s32 %s13, 2
        // Predicated region
        $region45: #{tpu_custom_call.1} parent=43 // pred_check
          %p5092 = pneg %p131
        $region46: #{tpu_custom_call.1} parent=43 // pred_check_branch
          %5094 = sbr.rel (%p5092) target = $region48
        $region47: #{tpu_custom_call.1} parent=43 // pred_region
          %s5095 = sand.u32 %s116, 1
          %s5096 = scalar_lea.sflag [#allocation3], %s5095
          %s5097 = sand.u32 %s116, 1
          %s5098 = smul.addr %s5097, 64
          %s5099 = scalar_lea.vmem [#allocation2], %s5098
          %5100 = dma.done %s5096, 1024
        $region48: #{tpu_custom_call.1} parent=43 // pred_fallthru
          _
      $region44: #{tpu_custom_call.1} parent=5 // pred_fallthru
        _
    $region6: #{tpu_custom_call.1} parent=1 // loop_footer
      %s17 = sadd.s32 1, %s13
    $region7: #{tpu_custom_call.1} parent=1 // loop_footer_branch
      %12 = sbr.rel target = $region3
    $region8: #{tpu_custom_call.1} parent=1 // loop_exit
      _
    %5101 = vsyncpa [#allocation3], 1
    %s5102 = scalar_lea.sflag [#allocation3], 1
    %5103 = vsyncpa %s5102, 1

</llo_original>
